<compile_context>
chip_gen: v6e
topology: v6e:2x2x1
jax: 0.10.0
libtpu: 0.0.40
codegen_flags: <defaults>
</compile_context>

<pallas_src>
import functools

import jax
import jax.numpy as jnp
from jax.experimental import pallas as pl
from jax.experimental.pallas import tpu as pltpu


# ------------------------------ generation-aware knobs ------------------------------

def _device_kind():
    try:
        return jax.devices()[0].device_kind.lower()
    except Exception:
        return ""


_KIND = _device_kind()
_IS_V7X = ("v7" in _KIND) or ("7x" in _KIND)          # 2 TensorCores, 64 MiB VMEM
_HAS_BF16_VALU = not any(t in _KIND for t in ("v2", "v3", "v4", "v5"))
_VMEM_LIMIT = (44 if _IS_V7X else 96) * 1024 * 1024   # leave headroom under physical


def _pick_tile(extent, cap, prefer_two_steps=False):
    """Largest tile <= cap that divides `extent` and keeps 8-sublane alignment.

    Falls back to the full extent (always legal) instead of asserting on ragged
    sizes. With prefer_two_steps (v7x), keep >=2 grid steps so both TCs are busy.
    """
    cap = max(8, min(cap, extent))
    cands = [t for t in range(cap, 7, -1) if extent % t == 0 and t % 8 == 0]
    tile = cands[0] if cands else extent
    if prefer_two_steps and extent // tile < 2:
        smaller = [t for t in cands if extent // t >= 2]
        if smaller:
            tile = smaller[0]
    return tile


def _silu(x):
    return x * jax.nn.sigmoid(x)


# -------------------- fused stem 3x3 (as matmul) + expand 1x1, row-tiled --------------------

def _stem_expand_kernel(p_ref, ws_ref, bs_ref, we_ref, be_ref, stem_ref, exp_ref):
    # p: (TM, Kp) bf16 patches; weights bf16; biases f32. Stem stays in VMEM and feeds
    # the expand matmul directly; both outputs stored bf16.
    s = jnp.dot(p_ref[...], ws_ref[...], preferred_element_type=jnp.float32) + bs_ref[...]
    s = _silu(s)
    stem_ref[...] = s.astype(stem_ref.dtype)
    e = jnp.dot(s.astype(jnp.bfloat16), we_ref[...],
                preferred_element_type=jnp.float32) + be_ref[...]
    exp_ref[...] = _silu(e).astype(exp_ref.dtype)


def stem_expand(p, w_stem, b_stem, w_exp, b_exp, tm=256):
    M, Kp = p.shape
    Cs = w_stem.shape[1]
    Ce = w_exp.shape[1]
    tm = _pick_tile(M, tm, prefer_two_steps=_IS_V7X)
    return pl.pallas_call(
        _stem_expand_kernel,
        out_shape=(jax.ShapeDtypeStruct((M, Cs), jnp.bfloat16),
                   jax.ShapeDtypeStruct((M, Ce), jnp.bfloat16)),
        grid=(M // tm,),
        in_specs=[
            pl.BlockSpec((tm, Kp), lambda i: (i, 0)),
            pl.BlockSpec((Kp, Cs), lambda i: (0, 0)),
            pl.BlockSpec((1, Cs), lambda i: (0, 0)),
            pl.BlockSpec((Cs, Ce), lambda i: (0, 0)),
            pl.BlockSpec((1, Ce), lambda i: (0, 0)),
        ],
        out_specs=(pl.BlockSpec((tm, Cs), lambda i: (i, 0)),
                   pl.BlockSpec((tm, Ce), lambda i: (i, 0))),
        compiler_params=pltpu.CompilerParams(
            dimension_semantics=("parallel",),
            vmem_limit_bytes=_VMEM_LIMIT,
        ),
    )(p, w_stem, b_stem, w_exp, b_exp)


# ----------- depthwise 3x3 (VMEM halo scratch) + GAP + SE FCs, fused per batch ------------

def _dw_se_kernel(xe_ref, wdw_ref, bdw_ref, w1_ref, b1_ref, w2_ref, b2_ref,
                  dw_ref, gate_ref, xpad_ref, *, compute_bf16):
    # xe: (1, Ho, Wo, Ce) bf16, UNPADDED. The 1-pixel halo is built in VMEM scratch,
    # so no extra HBM pad op / round trip for the largest activation.
    _, Ho, Wo, Ce = xe_ref.shape
    cdt = jnp.bfloat16 if compute_bf16 else jnp.float32   # bf16 VALU on v6e/v7x only

    xpad_ref[...] = jnp.zeros_like(xpad_ref)               # zero halo (cheap VMEM op)
    xpad_ref[1:Ho + 1, 1:Wo + 1, :] = xe_ref[0].astype(cdt)

    # depthwise 3x3: 9 shifted-window reads of the halo scratch, no im2col
    # (the dj=1,2 window reads could use pltpu.roll to land on the XLU instead)
    w = wdw_ref[...].astype(cdt)                            # (9, 1, 1, Ce)
    acc = jnp.zeros((Ho, Wo, Ce), cdt)
    tap = 0
    for di in range(3):
        for dj in range(3):
            acc = acc + xpad_ref[di:di + Ho, dj:dj + Wo, :] * w[tap]
            tap += 1
    y = _silu(acc.astype(jnp.float32) + bdw_ref[...])
    dw_ref[0] = y.astype(dw_ref.dtype)                      # bf16 store

    # fused global-average-pool + squeeze-excite FCs (tiny, stay on-chip)
    colsum = jnp.sum(y, axis=0)                              # (Wo, Ce)
    pooled = jnp.sum(colsum, axis=0, keepdims=True) * (1.0 / float(Ho * Wo))
    s1 = _silu(jnp.dot(pooled.astype(jnp.bfloat16), w1_ref[...],
                       preferred_element_type=jnp.float32) + b1_ref[...])
    g = jnp.dot(s1.astype(jnp.bfloat16), w2_ref[...],
                preferred_element_type=jnp.float32) + b2_ref[...]
    gate_ref[0] = jax.nn.sigmoid(g)                          # (1, Ce) f32


def dwconv_se(exp4, w_dw, b_dw, w_se1, b_se1, w_se2, b_se2):
    N, Ho, Wo, Ce = exp4.shape
    Cse = w_se1.shape[1]
    cdt = jnp.bfloat16 if _HAS_BF16_VALU else jnp.float32
    return pl.pallas_call(
        functools.partial(_dw_se_kernel, compute_bf16=_HAS_BF16_VALU),
        out_shape=(
            jax.ShapeDtypeStruct((N, Ho, Wo, Ce), jnp.bfloat16),
            jax.ShapeDtypeStruct((N, 1, Ce), jnp.float32),
        ),
        grid=(N,),
        in_specs=[
            pl.BlockSpec((1, Ho, Wo, Ce), lambda n: (n, 0, 0, 0)),
            pl.BlockSpec((9, 1, 1, Ce), lambda n: (0, 0, 0, 0)),
            pl.BlockSpec((1, 1, Ce), lambda n: (0, 0, 0)),
            pl.BlockSpec((Ce, Cse), lambda n: (0, 0)),
            pl.BlockSpec((1, Cse), lambda n: (0, 0)),
            pl.BlockSpec((Cse, Ce), lambda n: (0, 0)),
            pl.BlockSpec((1, Ce), lambda n: (0, 0)),
        ],
        out_specs=(
            pl.BlockSpec((1, Ho, Wo, Ce), lambda n: (n, 0, 0, 0)),
            pl.BlockSpec((1, 1, Ce), lambda n: (n, 0, 0)),
        ),
        scratch_shapes=[pltpu.VMEM((Ho + 2, Wo + 2, Ce), cdt)],
        compiler_params=pltpu.CompilerParams(
            dimension_semantics=("parallel",),
            vmem_limit_bytes=_VMEM_LIMIT,
        ),
    )(exp4, w_dw, b_dw, w_se1, b_se1, w_se2, b_se2)


# ------ fused MBConv tail: SE gate * x -> project -> +residual -> head 1x1 -> GAP -> FC ------

def _tail_kernel(dw_ref, stem_ref, gate_ref, wp_ref, bp_ref, wh_ref, bh_ref,
                 wf_ref, bf_ref, emb_ref, acc_ref, *, inv_hw):
    s = pl.program_id(1)

    @pl.when(s == 0)
    def _():
        acc_ref[...] = jnp.zeros_like(acc_ref)

    x = dw_ref[0] * gate_ref[0].astype(jnp.bfloat16)                 # SE gating (TS, Ce) bf16
    proj = jnp.dot(x, wp_ref[...], preferred_element_type=jnp.float32) + bp_ref[...]
    blk = proj + stem_ref[0].astype(jnp.float32)                     # residual (TS, Cs)
    h = _silu(jnp.dot(blk.astype(jnp.bfloat16), wh_ref[...],
                      preferred_element_type=jnp.float32) + bh_ref[...])
    acc_ref[...] += jnp.sum(h, axis=0, keepdims=True)                # GAP accumulator

    @pl.when(s == pl.num_programs(1) - 1)
    def _():
        feat = (acc_ref[...] * inv_hw).astype(jnp.bfloat16)          # (1, Ch)
        emb_ref[0] = (jnp.dot(feat, wf_ref[...],
                              preferred_element_type=jnp.float32) + bf_ref[...])


def mbconv_tail(dw3, stem3, gate, w_proj, b_proj, w_head, b_head, w_fc, b_fc, ts=128):
    N, HW, Ce = dw3.shape
    Cs = stem3.shape[-1]
    Ch = w_head.shape[1]
    E = w_fc.shape[1]
    ts = _pick_tile(HW, ts)
    out = pl.pallas_call(
        functools.partial(_tail_kernel, inv_hw=1.0 / float(HW)),
        out_shape=jax.ShapeDtypeStruct((N, 1, E), jnp.float32),
        grid=(N, HW // ts),
        in_specs=[
            pl.BlockSpec((1, ts, Ce), lambda n, s: (n, s, 0)),
            pl.BlockSpec((1, ts, Cs), lambda n, s: (n, s, 0)),
            pl.BlockSpec((1, 1, Ce), lambda n, s: (n, 0, 0)),
            pl.BlockSpec((Ce, Cs), lambda n, s: (0, 0)),
            pl.BlockSpec((1, Cs), lambda n, s: (0, 0)),
            pl.BlockSpec((Cs, Ch), lambda n, s: (0, 0)),
            pl.BlockSpec((1, Ch), lambda n, s: (0, 0)),
            pl.BlockSpec((Ch, E), lambda n, s: (0, 0)),
            pl.BlockSpec((1, E), lambda n, s: (0, 0)),
        ],
        out_specs=pl.BlockSpec((1, 1, E), lambda n, s: (n, 0, 0)),
        scratch_shapes=[pltpu.VMEM((1, Ch), jnp.float32)],
        compiler_params=pltpu.CompilerParams(
            dimension_semantics=("parallel", "arbitrary"),
            vmem_limit_bytes=_VMEM_LIMIT,
        ),
    )(dw3, stem3, gate, w_proj, b_proj, w_head, b_head, w_fc, b_fc)
    return out[:, 0, :]


# ----------------------------------- JAX glue --------------------------------------------

def build_stem_patches(x_nhwc, k_pad, stride=2, pad=1):
    """3x3/s2 im2col by channel-axis concat of 9 shifted slices; K zero-padded inline."""
    N, H, W, C = x_nhwc.shape
    xp = jnp.pad(x_nhwc, ((0, 0), (pad, pad), (pad, pad), (0, 0)))
    Ho = (H + 2 * pad - 3) // stride + 1
    Wo = (W + 2 * pad - 3) // stride + 1
    taps = [xp[:, i:i + stride * Ho:stride, j:j + stride * Wo:stride, :]
            for i in range(3) for j in range(3)]
    if k_pad > 9 * C:
        taps.append(jnp.zeros((N, Ho, Wo, k_pad - 9 * C), x_nhwc.dtype))
    p = jnp.concatenate(taps, axis=-1)                 # (N, Ho, Wo, k_pad)
    return p.reshape(N * Ho * Wo, k_pad), Ho, Wo


def init_params(key, c_in, c_stem, c_exp, c_se, c_head, emb_size):
    ks = jax.random.split(key, 16)

    def n(k, shape, s=0.1, dt=jnp.float32):
        return (s * jax.random.normal(k, shape)).astype(dt)

    k_stem = 9 * c_in
    k_pad = ((k_stem + 7) // 8) * 8                    # pad K=27 -> 32 (sublane multiple)
    w_stem = jnp.zeros((k_pad, c_stem), jnp.float32).at[:k_stem].set(
        0.1 * jax.random.normal(ks[0], (k_stem, c_stem))).astype(jnp.bfloat16)
    return dict(
        w_stem=w_stem,                                  b_stem=n(ks[1], (1, c_stem), 0.05),
        w_exp=n(ks[2], (c_stem, c_exp), dt=jnp.bfloat16), b_exp=n(ks[3], (1, c_exp), 0.05),
        w_dw=n(ks[4], (9, 1, 1, c_exp)),                b_dw=n(ks[5], (1, 1, c_exp), 0.05),
        w_se1=n(ks[6], (c_exp, c_se), dt=jnp.bfloat16), b_se1=n(ks[7], (1, c_se), 0.05),
        w_se2=n(ks[8], (c_se, c_exp), dt=jnp.bfloat16), b_se2=n(ks[9], (1, c_exp), 0.05),
        w_proj=n(ks[10], (c_exp, c_stem), dt=jnp.bfloat16), b_proj=n(ks[11], (1, c_stem), 0.05),
        w_head=n(ks[12], (c_stem, c_head), dt=jnp.bfloat16), b_head=n(ks[13], (1, c_head), 0.05),
        w_fc=n(ks[14], (c_head, emb_size), dt=jnp.bfloat16), b_fc=n(ks[15], (1, emb_size), 0.05),
    )


def embeddings_net_forward(x_nchw, params, tile_m=256, tile_s=128):
    """x_nchw: (N, C, H, W) float32 -> embeddings (N, emb_size) float32."""
    x = jnp.transpose(x_nchw, (0, 2, 3, 1)).astype(jnp.bfloat16)     # NHWC, bf16 activations
    N = x.shape[0]

    # ---- stem conv 3x3 / s2 (+ folded BN, SiLU) fused with expand 1x1 (+SiLU) ----
    p, Ho, Wo = build_stem_patches(x, params["w_stem"].shape[0], stride=2, pad=1)
    stem, exp = stem_expand(p, params["w_stem"], params["b_stem"],
                            params["w_exp"], params["b_exp"], tm=tile_m)
    Cs, Ce = stem.shape[1], exp.shape[1]

    # ---- depthwise 3x3 (+SiLU) + GAP + SE FCs, halo built in VMEM (no HBM pad) ----
    dw, gate = dwconv_se(exp.reshape(N, Ho, Wo, Ce),
                         params["w_dw"], params["b_dw"],
                         params["w_se1"], params["b_se1"],
                         params["w_se2"], params["b_se2"])

    # ---- fused tail: SE gate -> project 1x1 -> +residual -> head 1x1 -> GAP -> Linear ----
    emb = mbconv_tail(dw.reshape(N, Ho * Wo, Ce), stem.reshape(N, Ho * Wo, Cs), gate,
                      params["w_proj"], params["b_proj"],
                      params["w_head"], params["b_head"],
                      params["w_fc"], params["b_fc"], ts=tile_s)
    return emb


# ------------------------------------- main ------------------------------------------------

if __name__ == "__main__":
    key = jax.random.PRNGKey(0)
    k_x, k_p = jax.random.split(key)

    # small, EfficientNet-consistent shapes (lane-dense 128-wide channels where hot)
    batch, c_in, hw = 2, 3, 16
    c_stem, c_exp, c_se, c_head, emb_size = 32, 128, 8, 128, 128

    x = jax.random.normal(k_x, (batch, c_in, hw, hw), dtype=jnp.float32)  # NCHW like PyTorch
    params = init_params(k_p, c_in, c_stem, c_exp, c_se, c_head, emb_size)

    fwd = jax.jit(embeddings_net_forward)
    out = jax.block_until_ready(fwd(x, params))

    assert out.shape == (batch, emb_size), out.shape
    assert out.dtype == jnp.float32
    assert bool(jnp.all(jnp.isfinite(out)))
    print("KERNEL_OK")
</pallas_src>

<mosaic_0001>
module attributes {stable_mosaic.version = 11 : i64} {
  func.func @_dw_se_kernel(%arg0: i32, %arg1: memref<1x8x8x128xbf16, #tpu.memory_space<vmem>>, %arg2: memref<9x1x1x128xf32, #tpu.memory_space<vmem>>, %arg3: memref<1x1x128xf32, #tpu.memory_space<vmem>>, %arg4: memref<128x8xbf16, #tpu.memory_space<vmem>>, %arg5: memref<1x8xf32, #tpu.memory_space<vmem>>, %arg6: memref<8x128xbf16, #tpu.memory_space<vmem>>, %arg7: memref<1x128xf32, #tpu.memory_space<vmem>>, %arg8: memref<1x8x8x128xbf16, #tpu.memory_space<vmem>>, %arg9: memref<1x1x128xf32, #tpu.memory_space<vmem>>, %arg10: memref<10x10x128xbf16, #tpu.memory_space<vmem>>) attributes {dimension_semantics = [#tpu.dimension_semantics<parallel>], iteration_bounds = array<i64: 2>, scalar_prefetch = 0 : i64, scratch_operands = 1 : i64, tpu.core_type = #tpu.core_type<tc>, window_params = [{transform_indices = @transform_0, window_bounds = array<i64: 1, 8, 8, 128>}, {pipeline_mode = #tpu.pipeline_mode<synchronous>, transform_indices = @transform_1, window_bounds = array<i64: 9, 1, 1, 128>}, {pipeline_mode = #tpu.pipeline_mode<synchronous>, transform_indices = @transform_2, window_bounds = array<i64: 1, 1, 128>}, {pipeline_mode = #tpu.pipeline_mode<synchronous>, transform_indices = @transform_3, window_bounds = array<i64: 128, 8>}, {pipeline_mode = #tpu.pipeline_mode<synchronous>, transform_indices = @transform_4, window_bounds = array<i64: 1, 8>}, {pipeline_mode = #tpu.pipeline_mode<synchronous>, transform_indices = @transform_5, window_bounds = array<i64: 8, 128>}, {pipeline_mode = #tpu.pipeline_mode<synchronous>, transform_indices = @transform_6, window_bounds = array<i64: 1, 128>}, {transform_indices = @transform_7, window_bounds = array<i64: 1, 8, 8, 128>}, {transform_indices = @transform_8, window_bounds = array<i64: 1, 1, 128>}]} {
    %cst = arith.constant 0.000000e+00 : bf16
    %0 = vector.broadcast %cst : bf16 to vector<10x10x128xbf16>
    %c0 = arith.constant 0 : index
    %c0_0 = arith.constant 0 : index
    %c0_1 = arith.constant 0 : index
    %1 = vector.load %arg10[%c0, %c0_0, %c0_1] : memref<10x10x128xbf16, #tpu.memory_space<vmem>>, vector<10x10x128xbf16>
    tpu.vector_store %arg10[%c0, %c0_0, %c0_1], %0 {strides = array<i32>} : memref<10x10x128xbf16, #tpu.memory_space<vmem>>, vector<10x10x128xbf16>,
    %c0_2 = arith.constant 0 : index
    %c0_3 = arith.constant 0 : index
    %c0_4 = arith.constant 0 : index
    %c0_5 = arith.constant 0 : index
    %2 = vector.load %arg1[%c0_2, %c0_3, %c0_4, %c0_5] : memref<1x8x8x128xbf16, #tpu.memory_space<vmem>>, vector<1x8x8x128xbf16>
    %3 = vector.shape_cast %2 : vector<1x8x8x128xbf16> to vector<8x8x128xbf16>
    %c1 = arith.constant 1 : index
    %c1_6 = arith.constant 1 : index
    %c0_7 = arith.constant 0 : index
    %4 = vector.load %arg10[%c1, %c1_6, %c0_7] : memref<10x10x128xbf16, #tpu.memory_space<vmem>>, vector<8x8x128xbf16>
    tpu.vector_store %arg10[%c1, %c1_6, %c0_7], %3 {strides = array<i32>} : memref<10x10x128xbf16, #tpu.memory_space<vmem>>, vector<8x8x128xbf16>,
    %c0_8 = arith.constant 0 : index
    %c0_9 = arith.constant 0 : index
    %c0_10 = arith.constant 0 : index
    %c0_11 = arith.constant 0 : index
    %5 = vector.load %arg2[%c0_8, %c0_9, %c0_10, %c0_11] : memref<9x1x1x128xf32, #tpu.memory_space<vmem>>, vector<9x1x1x128xf32>
    %6 = arith.truncf %5 : vector<9x1x1x128xf32> to vector<9x1x1x128xbf16>
    %cst_12 = arith.constant 0.000000e+00 : bf16
    %7 = vector.broadcast %cst_12 : bf16 to vector<8x8x128xbf16>
    %c0_13 = arith.constant 0 : index
    %c0_14 = arith.constant 0 : index
    %c0_15 = arith.constant 0 : index
    %8 = vector.load %arg10[%c0_13, %c0_14, %c0_15] : memref<10x10x128xbf16, #tpu.memory_space<vmem>>, vector<8x8x128xbf16>
    %9 = vector.extract_strided_slice %6 {offsets = [0, 0, 0, 0], sizes = [1, 1, 1, 128], strides = [1, 1, 1, 1]} : vector<9x1x1x128xbf16> to vector<1x1x1x128xbf16>
    %10 = vector.shape_cast %9 : vector<1x1x1x128xbf16> to vector<1x1x128xbf16>
    %11 = vector.broadcast %10 : vector<1x1x128xbf16> to vector<8x8x128xbf16>
    %12 = arith.mulf %8, %11 : vector<8x8x128xbf16>
    %13 = arith.addf %7, %12 : vector<8x8x128xbf16>
    %c0_16 = arith.constant 0 : index
    %c1_17 = arith.constant 1 : index
    %c0_18 = arith.constant 0 : index
    %14 = vector.load %arg10[%c0_16, %c1_17, %c0_18] : memref<10x10x128xbf16, #tpu.memory_space<vmem>>, vector<8x8x128xbf16>
    %15 = vector.extract_strided_slice %6 {offsets = [1, 0, 0, 0], sizes = [1, 1, 1, 128], strides = [1, 1, 1, 1]} : vector<9x1x1x128xbf16> to vector<1x1x1x128xbf16>
    %16 = vector.shape_cast %15 : vector<1x1x1x128xbf16> to vector<1x1x128xbf16>
    %17 = vector.broadcast %16 : vector<1x1x128xbf16> to vector<8x8x128xbf16>
    %18 = arith.mulf %14, %17 : vector<8x8x128xbf16>
    %19 = arith.addf %13, %18 : vector<8x8x128xbf16>
    %c0_19 = arith.constant 0 : index
    %c2 = arith.constant 2 : index
    %c0_20 = arith.constant 0 : index
    %20 = vector.load %arg10[%c0_19, %c2, %c0_20] : memref<10x10x128xbf16, #tpu.memory_space<vmem>>, vector<8x8x128xbf16>
    %21 = vector.extract_strided_slice %6 {offsets = [2, 0, 0, 0], sizes = [1, 1, 1, 128], strides = [1, 1, 1, 1]} : vector<9x1x1x128xbf16> to vector<1x1x1x128xbf16>
    %22 = vector.shape_cast %21 : vector<1x1x1x128xbf16> to vector<1x1x128xbf16>
    %23 = vector.broadcast %22 : vector<1x1x128xbf16> to vector<8x8x128xbf16>
    %24 = arith.mulf %20, %23 : vector<8x8x128xbf16>
    %25 = arith.addf %19, %24 : vector<8x8x128xbf16>
    %c1_21 = arith.constant 1 : index
    %c0_22 = arith.constant 0 : index
    %c0_23 = arith.constant 0 : index
    %26 = vector.load %arg10[%c1_21, %c0_22, %c0_23] : memref<10x10x128xbf16, #tpu.memory_space<vmem>>, vector<8x8x128xbf16>
    %27 = vector.extract_strided_slice %6 {offsets = [3, 0, 0, 0], sizes = [1, 1, 1, 128], strides = [1, 1, 1, 1]} : vector<9x1x1x128xbf16> to vector<1x1x1x128xbf16>
    %28 = vector.shape_cast %27 : vector<1x1x1x128xbf16> to vector<1x1x128xbf16>
    %29 = vector.broadcast %28 : vector<1x1x128xbf16> to vector<8x8x128xbf16>
    %30 = arith.mulf %26, %29 : vector<8x8x128xbf16>
    %31 = arith.addf %25, %30 : vector<8x8x128xbf16>
    %c1_24 = arith.constant 1 : index
    %c1_25 = arith.constant 1 : index
    %c0_26 = arith.constant 0 : index
    %32 = vector.load %arg10[%c1_24, %c1_25, %c0_26] : memref<10x10x128xbf16, #tpu.memory_space<vmem>>, vector<8x8x128xbf16>
    %33 = vector.extract_strided_slice %6 {offsets = [4, 0, 0, 0], sizes = [1, 1, 1, 128], strides = [1, 1, 1, 1]} : vector<9x1x1x128xbf16> to vector<1x1x1x128xbf16>
    %34 = vector.shape_cast %33 : vector<1x1x1x128xbf16> to vector<1x1x128xbf16>
    %35 = vector.broadcast %34 : vector<1x1x128xbf16> to vector<8x8x128xbf16>
    %36 = arith.mulf %32, %35 : vector<8x8x128xbf16>
    %37 = arith.addf %31, %36 : vector<8x8x128xbf16>
    %c1_27 = arith.constant 1 : index
    %c2_28 = arith.constant 2 : index
    %c0_29 = arith.constant 0 : index
    %38 = vector.load %arg10[%c1_27, %c2_28, %c0_29] : memref<10x10x128xbf16, #tpu.memory_space<vmem>>, vector<8x8x128xbf16>
    %39 = vector.extract_strided_slice %6 {offsets = [5, 0, 0, 0], sizes = [1, 1, 1, 128], strides = [1, 1, 1, 1]} : vector<9x1x1x128xbf16> to vector<1x1x1x128xbf16>
    %40 = vector.shape_cast %39 : vector<1x1x1x128xbf16> to vector<1x1x128xbf16>
    %41 = vector.broadcast %40 : vector<1x1x128xbf16> to vector<8x8x128xbf16>
    %42 = arith.mulf %38, %41 : vector<8x8x128xbf16>
    %43 = arith.addf %37, %42 : vector<8x8x128xbf16>
    %c2_30 = arith.constant 2 : index
    %c0_31 = arith.constant 0 : index
    %c0_32 = arith.constant 0 : index
    %44 = vector.load %arg10[%c2_30, %c0_31, %c0_32] : memref<10x10x128xbf16, #tpu.memory_space<vmem>>, vector<8x8x128xbf16>
    %45 = vector.extract_strided_slice %6 {offsets = [6, 0, 0, 0], sizes = [1, 1, 1, 128], strides = [1, 1, 1, 1]} : vector<9x1x1x128xbf16> to vector<1x1x1x128xbf16>
    %46 = vector.shape_cast %45 : vector<1x1x1x128xbf16> to vector<1x1x128xbf16>
    %47 = vector.broadcast %46 : vector<1x1x128xbf16> to vector<8x8x128xbf16>
    %48 = arith.mulf %44, %47 : vector<8x8x128xbf16>
    %49 = arith.addf %43, %48 : vector<8x8x128xbf16>
    %c2_33 = arith.constant 2 : index
    %c1_34 = arith.constant 1 : index
    %c0_35 = arith.constant 0 : index
    %50 = vector.load %arg10[%c2_33, %c1_34, %c0_35] : memref<10x10x128xbf16, #tpu.memory_space<vmem>>, vector<8x8x128xbf16>
    %51 = vector.extract_strided_slice %6 {offsets = [7, 0, 0, 0], sizes = [1, 1, 1, 128], strides = [1, 1, 1, 1]} : vector<9x1x1x128xbf16> to vector<1x1x1x128xbf16>
    %52 = vector.shape_cast %51 : vector<1x1x1x128xbf16> to vector<1x1x128xbf16>
    %53 = vector.broadcast %52 : vector<1x1x128xbf16> to vector<8x8x128xbf16>
    %54 = arith.mulf %50, %53 : vector<8x8x128xbf16>
    %55 = arith.addf %49, %54 : vector<8x8x128xbf16>
    %c2_36 = arith.constant 2 : index
    %c2_37 = arith.constant 2 : index
    %c0_38 = arith.constant 0 : index
    %56 = vector.load %arg10[%c2_36, %c2_37, %c0_38] : memref<10x10x128xbf16, #tpu.memory_space<vmem>>, vector<8x8x128xbf16>
    %57 = vector.extract_strided_slice %6 {offsets = [8, 0, 0, 0], sizes = [1, 1, 1, 128], strides = [1, 1, 1, 1]} : vector<9x1x1x128xbf16> to vector<1x1x1x128xbf16>
    %58 = vector.shape_cast %57 : vector<1x1x1x128xbf16> to vector<1x1x128xbf16>
    %59 = vector.broadcast %58 : vector<1x1x128xbf16> to vector<8x8x128xbf16>
    %60 = arith.mulf %56, %59 : vector<8x8x128xbf16>
    %61 = arith.addf %55, %60 : vector<8x8x128xbf16>
    %62 = arith.extf %61 : vector<8x8x128xbf16> to vector<8x8x128xf32>
    %c0_39 = arith.constant 0 : index
    %c0_40 = arith.constant 0 : index
    %c0_41 = arith.constant 0 : index
    %63 = vector.load %arg3[%c0_39, %c0_40, %c0_41] : memref<1x1x128xf32, #tpu.memory_space<vmem>>, vector<1x1x128xf32>
    %64 = vector.broadcast %63 : vector<1x1x128xf32> to vector<8x8x128xf32>
    %65 = arith.addf %62, %64 : vector<8x8x128xf32>
    %66 = arith.negf %65 : vector<8x8x128xf32>
    %67 = math.exp %66 : vector<8x8x128xf32>
    %cst_42 = arith.constant 1.000000e+00 : f32
    %68 = vector.broadcast %cst_42 : f32 to vector<8x8x128xf32>
    %69 = arith.addf %68, %67 : vector<8x8x128xf32>
    %70 = arith.divf %68, %69 : vector<8x8x128xf32>
    %71 = arith.mulf %65, %70 : vector<8x8x128xf32>
    %72 = arith.truncf %71 : vector<8x8x128xf32> to vector<8x8x128xbf16>
    %c0_43 = arith.constant 0 : index
    %c0_44 = arith.constant 0 : index
    %c0_45 = arith.constant 0 : index
    %c0_46 = arith.constant 0 : index
    %73 = vector.load %arg8[%c0_43, %c0_44, %c0_45, %c0_46] : memref<1x8x8x128xbf16, #tpu.memory_space<vmem>>, vector<1x8x8x128xbf16>
    %74 = vector.shape_cast %73 : vector<1x8x8x128xbf16> to vector<8x8x128xbf16>
    %75 = vector.shape_cast %72 : vector<8x8x128xbf16> to vector<1x8x8x128xbf16>
    tpu.vector_store %arg8[%c0_43, %c0_44, %c0_45, %c0_46], %75 {strides = array<i32>} : memref<1x8x8x128xbf16, #tpu.memory_space<vmem>>, vector<1x8x8x128xbf16>,
    %cst_47 = arith.constant dense<0.000000e+00> : vector<8x128xf32>
    %76 = vector.multi_reduction <add>, %71, %cst_47 [0] : vector<8x8x128xf32> to vector<8x128xf32>
    %cst_48 = arith.constant dense<0.000000e+00> : vector<128xf32>
    %77 = vector.multi_reduction <add>, %76, %cst_48 [0] : vector<8x128xf32> to vector<128xf32>
    %78 = vector.shape_cast %77 : vector<128xf32> to vector<1x128xf32>
    %cst_49 = arith.constant 1.562500e-02 : f32
    %79 = vector.broadcast %cst_49 : f32 to vector<1x128xf32>
    %80 = arith.mulf %78, %79 : vector<1x128xf32>
    %81 = arith.truncf %80 : vector<1x128xf32> to vector<1x128xbf16>
    %c0_50 = arith.constant 0 : index
    %c0_51 = arith.constant 0 : index
    %82 = vector.load %arg4[%c0_50, %c0_51] : memref<128x8xbf16, #tpu.memory_space<vmem>>, vector<128x8xbf16>
    %cst_52 = arith.constant dense<0.000000e+00> : vector<1x8xf32>
    %83 = tpu.matmul %81, %82, %cst_52 {dimension_numbers = #tpu.dot_dimension_numbers<[1], [0], [0], [1], [0, 0, 1, 1], [], []>} : vector<1x128xbf16>, vector<128x8xbf16>, vector<1x8xf32> -> vector<1x8xf32>
    %c0_53 = arith.constant 0 : index
    %c0_54 = arith.constant 0 : index
    %84 = vector.load %arg5[%c0_53, %c0_54] : memref<1x8xf32, #tpu.memory_space<vmem>>, vector<1x8xf32>
    %85 = arith.addf %83, %84 : vector<1x8xf32>
    %86 = arith.negf %85 : vector<1x8xf32>
    %87 = math.exp %86 : vector<1x8xf32>
    %cst_55 = arith.constant 1.000000e+00 : f32
    %88 = vector.broadcast %cst_55 : f32 to vector<1x8xf32>
    %89 = arith.addf %88, %87 : vector<1x8xf32>
    %90 = arith.divf %88, %89 : vector<1x8xf32>
    %91 = arith.mulf %85, %90 : vector<1x8xf32>
    %92 = arith.truncf %91 : vector<1x8xf32> to vector<1x8xbf16>
    %c0_56 = arith.constant 0 : index
    %c0_57 = arith.constant 0 : index
    %93 = vector.load %arg6[%c0_56, %c0_57] : memref<8x128xbf16, #tpu.memory_space<vmem>>, vector<8x128xbf16>
    %cst_58 = arith.constant dense<0.000000e+00> : vector<1x128xf32>
    %94 = tpu.matmul %92, %93, %cst_58 {dimension_numbers = #tpu.dot_dimension_numbers<[1], [0], [0], [1], [0, 0, 1, 1], [], []>} : vector<1x8xbf16>, vector<8x128xbf16>, vector<1x128xf32> -> vector<1x128xf32>
    %c0_59 = arith.constant 0 : index
    %c0_60 = arith.constant 0 : index
    %95 = vector.load %arg7[%c0_59, %c0_60] : memref<1x128xf32, #tpu.memory_space<vmem>>, vector<1x128xf32>
    %96 = arith.addf %94, %95 : vector<1x128xf32>
    %97 = arith.negf %96 : vector<1x128xf32>
    %98 = math.exp %97 : vector<1x128xf32>
    %cst_61 = arith.constant 1.000000e+00 : f32
    %99 = vector.broadcast %cst_61 : f32 to vector<1x128xf32>
    %100 = arith.addf %99, %98 : vector<1x128xf32>
    %101 = arith.divf %99, %100 : vector<1x128xf32>
    %c0_62 = arith.constant 0 : index
    %c0_63 = arith.constant 0 : index
    %c0_64 = arith.constant 0 : index
    %102 = vector.load %arg9[%c0_62, %c0_63, %c0_64] : memref<1x1x128xf32, #tpu.memory_space<vmem>>, vector<1x1x128xf32>
    %103 = vector.shape_cast %102 : vector<1x1x128xf32> to vector<1x128xf32>
    %104 = vector.shape_cast %101 : vector<1x128xf32> to vector<1x1x128xf32>
    tpu.vector_store %arg9[%c0_62, %c0_63, %c0_64], %104 {strides = array<i32>} : memref<1x1x128xf32, #tpu.memory_space<vmem>>, vector<1x1x128xf32>,
    return
  }
  func.func @transform_0(%arg0: i32) -> (i32, i32, i32, i32) {
    %c0_i32 = arith.constant 0 : i32
    %c0_i32_0 = arith.constant 0 : i32
    %c0_i32_1 = arith.constant 0 : i32
    %c0_i32_2 = arith.constant 0 : i32
    return %arg0, %c0_i32, %c0_i32_0, %c0_i32_1 : i32, i32, i32, i32
  }
  func.func @transform_1(%arg0: i32) -> (i32, i32, i32, i32) {
    %c0_i32 = arith.constant 0 : i32
    %c0_i32_0 = arith.constant 0 : i32
    %c0_i32_1 = arith.constant 0 : i32
    %c0_i32_2 = arith.constant 0 : i32
    %c0_i32_3 = arith.constant 0 : i32
    return %c0_i32, %c0_i32_0, %c0_i32_1, %c0_i32_2 : i32, i32, i32, i32
  }
  func.func @transform_2(%arg0: i32) -> (i32, i32, i32) {
    %c0_i32 = arith.constant 0 : i32
    %c0_i32_0 = arith.constant 0 : i32
    %c0_i32_1 = arith.constant 0 : i32
    %c0_i32_2 = arith.constant 0 : i32
    return %c0_i32, %c0_i32_0, %c0_i32_1 : i32, i32, i32
  }
  func.func @transform_3(%arg0: i32) -> (i32, i32) {
    %c0_i32 = arith.constant 0 : i32
    %c0_i32_0 = arith.constant 0 : i32
    %c0_i32_1 = arith.constant 0 : i32
    return %c0_i32, %c0_i32_0 : i32, i32
  }
  func.func @transform_4(%arg0: i32) -> (i32, i32) {
    %c0_i32 = arith.constant 0 : i32
    %c0_i32_0 = arith.constant 0 : i32
    %c0_i32_1 = arith.constant 0 : i32
    return %c0_i32, %c0_i32_0 : i32, i32
  }
  func.func @transform_5(%arg0: i32) -> (i32, i32) {
    %c0_i32 = arith.constant 0 : i32
    %c0_i32_0 = arith.constant 0 : i32
    %c0_i32_1 = arith.constant 0 : i32
    return %c0_i32, %c0_i32_0 : i32, i32
  }
  func.func @transform_6(%arg0: i32) -> (i32, i32) {
    %c0_i32 = arith.constant 0 : i32
    %c0_i32_0 = arith.constant 0 : i32
    %c0_i32_1 = arith.constant 0 : i32
    return %c0_i32, %c0_i32_0 : i32, i32
  }
  func.func @transform_7(%arg0: i32) -> (i32, i32, i32, i32) {
    %c0_i32 = arith.constant 0 : i32
    %c0_i32_0 = arith.constant 0 : i32
    %c0_i32_1 = arith.constant 0 : i32
    %c0_i32_2 = arith.constant 0 : i32
    return %arg0, %c0_i32, %c0_i32_0, %c0_i32_1 : i32, i32, i32, i32
  }
  func.func @transform_8(%arg0: i32) -> (i32, i32, i32) {
    %c0_i32 = arith.constant 0 : i32
    %c0_i32_0 = arith.constant 0 : i32
    %c0_i32_1 = arith.constant 0 : i32
    return %arg0, %c0_i32, %c0_i32_0 : i32, i32, i32
  }
}

module attributes {stable_mosaic.version = 11 : i64} {
  func.func @_stem_expand_kernel(%arg0: i32, %arg1: memref<128x32xbf16, #tpu.memory_space<vmem>>, %arg2: memref<32x32xbf16, #tpu.memory_space<vmem>>, %arg3: memref<1x32xf32, #tpu.memory_space<vmem>>, %arg4: memref<32x128xbf16, #tpu.memory_space<vmem>>, %arg5: memref<1x128xf32, #tpu.memory_space<vmem>>, %arg6: memref<128x32xbf16, #tpu.memory_space<vmem>>, %arg7: memref<128x128xbf16, #tpu.memory_space<vmem>>) attributes {dimension_semantics = [#tpu.dimension_semantics<parallel>], iteration_bounds = array<i64: 1>, scalar_prefetch = 0 : i64, scratch_operands = 0 : i64, tpu.core_type = #tpu.core_type<tc>, window_params = [{transform_indices = @transform_0, window_bounds = array<i64: 128, 32>}, {pipeline_mode = #tpu.pipeline_mode<synchronous>, transform_indices = @transform_1, window_bounds = array<i64: 32, 32>}, {pipeline_mode = #tpu.pipeline_mode<synchronous>, transform_indices = @transform_2, window_bounds = array<i64: 1, 32>}, {pipeline_mode = #tpu.pipeline_mode<synchronous>, transform_indices = @transform_3, window_bounds = array<i64: 32, 128>}, {pipeline_mode = #tpu.pipeline_mode<synchronous>, transform_indices = @transform_4, window_bounds = array<i64: 1, 128>}, {transform_indices = @transform_5, window_bounds = array<i64: 128, 32>}, {transform_indices = @transform_6, window_bounds = array<i64: 128, 128>}]} {
    %c0 = arith.constant 0 : index
    %c0_0 = arith.constant 0 : index
    %0 = vector.load %arg1[%c0, %c0_0] : memref<128x32xbf16, #tpu.memory_space<vmem>>, vector<128x32xbf16>
    %c0_1 = arith.constant 0 : index
    %c0_2 = arith.constant 0 : index
    %1 = vector.load %arg2[%c0_1, %c0_2] : memref<32x32xbf16, #tpu.memory_space<vmem>>, vector<32x32xbf16>
    %cst = arith.constant dense<0.000000e+00> : vector<128x32xf32>
    %2 = tpu.matmul %0, %1, %cst {dimension_numbers = #tpu.dot_dimension_numbers<[1], [0], [0], [1], [0, 0, 1, 1], [], []>} : vector<128x32xbf16>, vector<32x32xbf16>, vector<128x32xf32> -> vector<128x32xf32>
    %c0_3 = arith.constant 0 : index
    %c0_4 = arith.constant 0 : index
    %3 = vector.load %arg3[%c0_3, %c0_4] : memref<1x32xf32, #tpu.memory_space<vmem>>, vector<1x32xf32>
    %4 = vector.broadcast %3 : vector<1x32xf32> to vector<128x32xf32>
    %5 = arith.addf %2, %4 : vector<128x32xf32>
    %6 = arith.negf %5 : vector<128x32xf32>
    %7 = math.exp %6 : vector<128x32xf32>
    %cst_5 = arith.constant 1.000000e+00 : f32
    %8 = vector.broadcast %cst_5 : f32 to vector<128x32xf32>
    %9 = arith.addf %8, %7 : vector<128x32xf32>
    %10 = arith.divf %8, %9 : vector<128x32xf32>
    %11 = arith.mulf %5, %10 : vector<128x32xf32>
    %12 = arith.truncf %11 : vector<128x32xf32> to vector<128x32xbf16>
    %c0_6 = arith.constant 0 : index
    %c0_7 = arith.constant 0 : index
    %13 = vector.load %arg6[%c0_6, %c0_7] : memref<128x32xbf16, #tpu.memory_space<vmem>>, vector<128x32xbf16>
    tpu.vector_store %arg6[%c0_6, %c0_7], %12 {strides = array<i32>} : memref<128x32xbf16, #tpu.memory_space<vmem>>, vector<128x32xbf16>,
    %14 = arith.truncf %11 : vector<128x32xf32> to vector<128x32xbf16>
    %c0_8 = arith.constant 0 : index
    %c0_9 = arith.constant 0 : index
    %15 = vector.load %arg4[%c0_8, %c0_9] : memref<32x128xbf16, #tpu.memory_space<vmem>>, vector<32x128xbf16>
    %cst_10 = arith.constant dense<0.000000e+00> : vector<128x128xf32>
    %16 = tpu.matmul %14, %15, %cst_10 {dimension_numbers = #tpu.dot_dimension_numbers<[1], [0], [0], [1], [0, 0, 1, 1], [], []>} : vector<128x32xbf16>, vector<32x128xbf16>, vector<128x128xf32> -> vector<128x128xf32>
    %c0_11 = arith.constant 0 : index
    %c0_12 = arith.constant 0 : index
    %17 = vector.load %arg5[%c0_11, %c0_12] : memref<1x128xf32, #tpu.memory_space<vmem>>, vector<1x128xf32>
    %18 = vector.broadcast %17 : vector<1x128xf32> to vector<128x128xf32>
    %19 = arith.addf %16, %18 : vector<128x128xf32>
    %20 = arith.negf %19 : vector<128x128xf32>
    %21 = math.exp %20 : vector<128x128xf32>
    %cst_13 = arith.constant 1.000000e+00 : f32
    %22 = vector.broadcast %cst_13 : f32 to vector<128x128xf32>
    %23 = arith.addf %22, %21 : vector<128x128xf32>
    %24 = arith.divf %22, %23 : vector<128x128xf32>
    %25 = arith.mulf %19, %24 : vector<128x128xf32>
    %26 = arith.truncf %25 : vector<128x128xf32> to vector<128x128xbf16>
    %c0_14 = arith.constant 0 : index
    %c0_15 = arith.constant 0 : index
    %27 = vector.load %arg7[%c0_14, %c0_15] : memref<128x128xbf16, #tpu.memory_space<vmem>>, vector<128x128xbf16>
    tpu.vector_store %arg7[%c0_14, %c0_15], %26 {strides = array<i32>} : memref<128x128xbf16, #tpu.memory_space<vmem>>, vector<128x128xbf16>,
    return
  }
  func.func @transform_0(%arg0: i32) -> (i32, i32) {
    %c0_i32 = arith.constant 0 : i32
    %c0_i32_0 = arith.constant 0 : i32
    return %arg0, %c0_i32 : i32, i32
  }
  func.func @transform_1(%arg0: i32) -> (i32, i32) {
    %c0_i32 = arith.constant 0 : i32
    %c0_i32_0 = arith.constant 0 : i32
    %c0_i32_1 = arith.constant 0 : i32
    return %c0_i32, %c0_i32_0 : i32, i32
  }
  func.func @transform_2(%arg0: i32) -> (i32, i32) {
    %c0_i32 = arith.constant 0 : i32
    %c0_i32_0 = arith.constant 0 : i32
    %c0_i32_1 = arith.constant 0 : i32
    return %c0_i32, %c0_i32_0 : i32, i32
  }
  func.func @transform_3(%arg0: i32) -> (i32, i32) {
    %c0_i32 = arith.constant 0 : i32
    %c0_i32_0 = arith.constant 0 : i32
    %c0_i32_1 = arith.constant 0 : i32
    return %c0_i32, %c0_i32_0 : i32, i32
  }
  func.func @transform_4(%arg0: i32) -> (i32, i32) {
    %c0_i32 = arith.constant 0 : i32
    %c0_i32_0 = arith.constant 0 : i32
    %c0_i32_1 = arith.constant 0 : i32
    return %c0_i32, %c0_i32_0 : i32, i32
  }
  func.func @transform_5(%arg0: i32) -> (i32, i32) {
    %c0_i32 = arith.constant 0 : i32
    %c0_i32_0 = arith.constant 0 : i32
    return %arg0, %c0_i32 : i32, i32
  }
  func.func @transform_6(%arg0: i32) -> (i32, i32) {
    %c0_i32 = arith.constant 0 : i32
    %c0_i32_0 = arith.constant 0 : i32
    return %arg0, %c0_i32 : i32, i32
  }
}

module attributes {stable_mosaic.version = 11 : i64} {
  func.func @_tail_kernel(%arg0: i32, %arg1: i32, %arg2: memref<1x64x128xbf16, #tpu.memory_space<vmem>>, %arg3: memref<1x64x32xbf16, #tpu.memory_space<vmem>>, %arg4: memref<1x1x128xf32, #tpu.memory_space<vmem>>, %arg5: memref<128x32xbf16, #tpu.memory_space<vmem>>, %arg6: memref<1x32xf32, #tpu.memory_space<vmem>>, %arg7: memref<32x128xbf16, #tpu.memory_space<vmem>>, %arg8: memref<1x128xf32, #tpu.memory_space<vmem>>, %arg9: memref<128x128xbf16, #tpu.memory_space<vmem>>, %arg10: memref<1x128xf32, #tpu.memory_space<vmem>>, %arg11: memref<1x1x128xf32, #tpu.memory_space<vmem>>, %arg12: memref<1x128xf32, #tpu.memory_space<vmem>>) attributes {dimension_semantics = [#tpu.dimension_semantics<parallel>, #tpu.dimension_semantics<arbitrary>], iteration_bounds = array<i64: 2, 1>, scalar_prefetch = 0 : i64, scratch_operands = 1 : i64, tpu.core_type = #tpu.core_type<tc>, window_params = [{transform_indices = @transform_0, window_bounds = array<i64: 1, 64, 128>}, {transform_indices = @transform_1, window_bounds = array<i64: 1, 64, 32>}, {transform_indices = @transform_2, window_bounds = array<i64: 1, 1, 128>}, {pipeline_mode = #tpu.pipeline_mode<synchronous>, transform_indices = @transform_3, window_bounds = array<i64: 128, 32>}, {pipeline_mode = #tpu.pipeline_mode<synchronous>, transform_indices = @transform_4, window_bounds = array<i64: 1, 32>}, {pipeline_mode = #tpu.pipeline_mode<synchronous>, transform_indices = @transform_5, window_bounds = array<i64: 32, 128>}, {pipeline_mode = #tpu.pipeline_mode<synchronous>, transform_indices = @transform_6, window_bounds = array<i64: 1, 128>}, {pipeline_mode = #tpu.pipeline_mode<synchronous>, transform_indices = @transform_7, window_bounds = array<i64: 128, 128>}, {pipeline_mode = #tpu.pipeline_mode<synchronous>, transform_indices = @transform_8, window_bounds = array<i64: 1, 128>}, {transform_indices = @transform_9, window_bounds = array<i64: 1, 1, 128>}]} {
    %c0_i32 = arith.constant 0 : i32
    %0 = arith.cmpi eq, %arg1, %c0_i32 : i32
    %1 = arith.extui %0 : i1 to i32
    %c0_i32_0 = arith.constant 0 : i32
    %2 = arith.cmpi ne, %1, %c0_i32_0 : i32
    scf.if %2 {
      %cst_26 = arith.constant 0.000000e+00 : f32
      %39 = vector.broadcast %cst_26 : f32 to vector<1x128xf32>
      %c0_27 = arith.constant 0 : index
      %c0_28 = arith.constant 0 : index
      %40 = vector.load %arg12[%c0_27, %c0_28] : memref<1x128xf32, #tpu.memory_space<vmem>>, vector<1x128xf32>
      tpu.vector_store %arg12[%c0_27, %c0_28], %39 {strides = array<i32>} : memref<1x128xf32, #tpu.memory_space<vmem>>, vector<1x128xf32>,
    } else {
    }
    %c0 = arith.constant 0 : index
    %c0_1 = arith.constant 0 : index
    %c0_2 = arith.constant 0 : index
    %3 = vector.load %arg2[%c0, %c0_1, %c0_2] : memref<1x64x128xbf16, #tpu.memory_space<vmem>>, vector<1x64x128xbf16>
    %4 = vector.shape_cast %3 : vector<1x64x128xbf16> to vector<64x128xbf16>
    %c0_3 = arith.constant 0 : index
    %c0_4 = arith.constant 0 : index
    %c0_5 = arith.constant 0 : index
    %5 = vector.load %arg4[%c0_3, %c0_4, %c0_5] : memref<1x1x128xf32, #tpu.memory_space<vmem>>, vector<1x1x128xf32>
    %6 = vector.shape_cast %5 : vector<1x1x128xf32> to vector<1x128xf32>
    %7 = arith.truncf %6 : vector<1x128xf32> to vector<1x128xbf16>
    %8 = vector.broadcast %7 : vector<1x128xbf16> to vector<64x128xbf16>
    %9 = arith.mulf %4, %8 : vector<64x128xbf16>
    %c0_6 = arith.constant 0 : index
    %c0_7 = arith.constant 0 : index
    %10 = vector.load %arg5[%c0_6, %c0_7] : memref<128x32xbf16, #tpu.memory_space<vmem>>, vector<128x32xbf16>
    %cst = arith.constant dense<0.000000e+00> : vector<64x32xf32>
    %11 = tpu.matmul %9, %10, %cst {dimension_numbers = #tpu.dot_dimension_numbers<[1], [0], [0], [1], [0, 0, 1, 1], [], []>} : vector<64x128xbf16>, vector<128x32xbf16>, vector<64x32xf32> -> vector<64x32xf32>
    %c0_8 = arith.constant 0 : index
    %c0_9 = arith.constant 0 : index
    %12 = vector.load %arg6[%c0_8, %c0_9] : memref<1x32xf32, #tpu.memory_space<vmem>>, vector<1x32xf32>
    %13 = vector.broadcast %12 : vector<1x32xf32> to vector<64x32xf32>
    %14 = arith.addf %11, %13 : vector<64x32xf32>
    %c0_10 = arith.constant 0 : index
    %c0_11 = arith.constant 0 : index
    %c0_12 = arith.constant 0 : index
    %15 = vector.load %arg3[%c0_10, %c0_11, %c0_12] : memref<1x64x32xbf16, #tpu.memory_space<vmem>>, vector<1x64x32xbf16>
    %16 = vector.shape_cast %15 : vector<1x64x32xbf16> to vector<64x32xbf16>
    %17 = arith.extf %16 : vector<64x32xbf16> to vector<64x32xf32>
    %18 = arith.addf %14, %17 : vector<64x32xf32>
    %19 = arith.truncf %18 : vector<64x32xf32> to vector<64x32xbf16>
    %c0_13 = arith.constant 0 : index
    %c0_14 = arith.constant 0 : index
    %20 = vector.load %arg7[%c0_13, %c0_14] : memref<32x128xbf16, #tpu.memory_space<vmem>>, vector<32x128xbf16>
    %cst_15 = arith.constant dense<0.000000e+00> : vector<64x128xf32>
    %21 = tpu.matmul %19, %20, %cst_15 {dimension_numbers = #tpu.dot_dimension_numbers<[1], [0], [0], [1], [0, 0, 1, 1], [], []>} : vector<64x32xbf16>, vector<32x128xbf16>, vector<64x128xf32> -> vector<64x128xf32>
    %c0_16 = arith.constant 0 : index
    %c0_17 = arith.constant 0 : index
    %22 = vector.load %arg8[%c0_16, %c0_17] : memref<1x128xf32, #tpu.memory_space<vmem>>, vector<1x128xf32>
    %23 = vector.broadcast %22 : vector<1x128xf32> to vector<64x128xf32>
    %24 = arith.addf %21, %23 : vector<64x128xf32>
    %25 = arith.negf %24 : vector<64x128xf32>
    %26 = math.exp %25 : vector<64x128xf32>
    %cst_18 = arith.constant 1.000000e+00 : f32
    %27 = vector.broadcast %cst_18 : f32 to vector<64x128xf32>
    %28 = arith.addf %27, %26 : vector<64x128xf32>
    %29 = arith.divf %27, %28 : vector<64x128xf32>
    %30 = arith.mulf %24, %29 : vector<64x128xf32>
    %c0_19 = arith.constant 0 : index
    %c0_20 = arith.constant 0 : index
    %31 = vector.load %arg12[%c0_19, %c0_20] : memref<1x128xf32, #tpu.memory_space<vmem>>, vector<1x128xf32>
    %cst_21 = arith.constant dense<0.000000e+00> : vector<128xf32>
    %32 = vector.multi_reduction <add>, %30, %cst_21 [0] : vector<64x128xf32> to vector<128xf32>
    %33 = vector.shape_cast %32 : vector<128xf32> to vector<1x128xf32>
    %34 = arith.addf %31, %33 : vector<1x128xf32>
    %c0_22 = arith.constant 0 : index
    %c0_23 = arith.constant 0 : index
    %35 = vector.load %arg12[%c0_22, %c0_23] : memref<1x128xf32, #tpu.memory_space<vmem>>, vector<1x128xf32>
    tpu.vector_store %arg12[%c0_22, %c0_23], %34 {strides = array<i32>} : memref<1x128xf32, #tpu.memory_space<vmem>>, vector<1x128xf32>,
    %c0_i32_24 = arith.constant 0 : i32
    %36 = arith.cmpi eq, %arg1, %c0_i32_24 : i32
    %37 = arith.extui %36 : i1 to i32
    %c0_i32_25 = arith.constant 0 : i32
    %38 = arith.cmpi ne, %37, %c0_i32_25 : i32
    scf.if %38 {
      %c0_26 = arith.constant 0 : index
      %c0_27 = arith.constant 0 : index
      %39 = vector.load %arg12[%c0_26, %c0_27] : memref<1x128xf32, #tpu.memory_space<vmem>>, vector<1x128xf32>
      %cst_28 = arith.constant 1.562500e-02 : f32
      %40 = vector.broadcast %cst_28 : f32 to vector<1x128xf32>
      %41 = arith.mulf %39, %40 : vector<1x128xf32>
      %42 = arith.truncf %41 : vector<1x128xf32> to vector<1x128xbf16>
      %c0_29 = arith.constant 0 : index
      %c0_30 = arith.constant 0 : index
      %43 = vector.load %arg9[%c0_29, %c0_30] : memref<128x128xbf16, #tpu.memory_space<vmem>>, vector<128x128xbf16>
      %cst_31 = arith.constant dense<0.000000e+00> : vector<1x128xf32>
      %44 = tpu.matmul %42, %43, %cst_31 {dimension_numbers = #tpu.dot_dimension_numbers<[1], [0], [0], [1], [0, 0, 1, 1], [], []>} : vector<1x128xbf16>, vector<128x128xbf16>, vector<1x128xf32> -> vector<1x128xf32>
      %c0_32 = arith.constant 0 : index
      %c0_33 = arith.constant 0 : index
      %45 = vector.load %arg10[%c0_32, %c0_33] : memref<1x128xf32, #tpu.memory_space<vmem>>, vector<1x128xf32>
      %46 = arith.addf %44, %45 : vector<1x128xf32>
      %c0_34 = arith.constant 0 : index
      %c0_35 = arith.constant 0 : index
      %c0_36 = arith.constant 0 : index
      %47 = vector.load %arg11[%c0_34, %c0_35, %c0_36] : memref<1x1x128xf32, #tpu.memory_space<vmem>>, vector<1x1x128xf32>
      %48 = vector.shape_cast %47 : vector<1x1x128xf32> to vector<1x128xf32>
      %49 = vector.shape_cast %46 : vector<1x128xf32> to vector<1x1x128xf32>
      tpu.vector_store %arg11[%c0_34, %c0_35, %c0_36], %49 {strides = array<i32>} : memref<1x1x128xf32, #tpu.memory_space<vmem>>, vector<1x1x128xf32>,
    } else {
    }
    return
  }
  func.func @transform_0(%arg0: i32, %arg1: i32) -> (i32, i32, i32) {
    %c0_i32 = arith.constant 0 : i32
    %c0_i32_0 = arith.constant 0 : i32
    return %arg0, %arg1, %c0_i32 : i32, i32, i32
  }
  func.func @transform_1(%arg0: i32, %arg1: i32) -> (i32, i32, i32) {
    %c0_i32 = arith.constant 0 : i32
    %c0_i32_0 = arith.constant 0 : i32
    return %arg0, %arg1, %c0_i32 : i32, i32, i32
  }
  func.func @transform_2(%arg0: i32, %arg1: i32) -> (i32, i32, i32) {
    %c0_i32 = arith.constant 0 : i32
    %c0_i32_0 = arith.constant 0 : i32
    %c0_i32_1 = arith.constant 0 : i32
    return %arg0, %c0_i32, %c0_i32_0 : i32, i32, i32
  }
  func.func @transform_3(%arg0: i32, %arg1: i32) -> (i32, i32) {
    %c0_i32 = arith.constant 0 : i32
    %c0_i32_0 = arith.constant 0 : i32
    %c0_i32_1 = arith.constant 0 : i32
    return %c0_i32, %c0_i32_0 : i32, i32
  }
  func.func @transform_4(%arg0: i32, %arg1: i32) -> (i32, i32) {
    %c0_i32 = arith.constant 0 : i32
    %c0_i32_0 = arith.constant 0 : i32
    %c0_i32_1 = arith.constant 0 : i32
    return %c0_i32, %c0_i32_0 : i32, i32
  }
  func.func @transform_5(%arg0: i32, %arg1: i32) -> (i32, i32) {
    %c0_i32 = arith.constant 0 : i32
    %c0_i32_0 = arith.constant 0 : i32
    %c0_i32_1 = arith.constant 0 : i32
    return %c0_i32, %c0_i32_0 : i32, i32
  }
  func.func @transform_6(%arg0: i32, %arg1: i32) -> (i32, i32) {
    %c0_i32 = arith.constant 0 : i32
    %c0_i32_0 = arith.constant 0 : i32
    %c0_i32_1 = arith.constant 0 : i32
    return %c0_i32, %c0_i32_0 : i32, i32
  }
  func.func @transform_7(%arg0: i32, %arg1: i32) -> (i32, i32) {
    %c0_i32 = arith.constant 0 : i32
    %c0_i32_0 = arith.constant 0 : i32
    %c0_i32_1 = arith.constant 0 : i32
    return %c0_i32, %c0_i32_0 : i32, i32
  }
  func.func @transform_8(%arg0: i32, %arg1: i32) -> (i32, i32) {
    %c0_i32 = arith.constant 0 : i32
    %c0_i32_0 = arith.constant 0 : i32
    %c0_i32_1 = arith.constant 0 : i32
    return %c0_i32, %c0_i32_0 : i32, i32
  }
  func.func @transform_9(%arg0: i32, %arg1: i32) -> (i32, i32, i32) {
    %c0_i32 = arith.constant 0 : i32
    %c0_i32_0 = arith.constant 0 : i32
    %c0_i32_1 = arith.constant 0 : i32
    return %arg0, %c0_i32, %c0_i32_0 : i32, i32, i32
  }
}

</mosaic_0001>

<llo_original>
// kernel: embeddings_net_forward.3
$region0: #{embeddings_net_forward.3}
  #allocation0 [shape = 'u32[]', space=smem, size = 0x4, offset = 0x4, fixed_abs, tag = 'smem constant byte address 0x4 - core index']
  #allocation1 [shape = 'u32[144,128]{1,0:T(1,128)}', space=vmem, size = 0x12000, scoped, tag = 'internal scratch']
  %s0 = inlined_call_operand.vmem [shape: bf16[128,32], index: 0, kind: input, shape index: {}]
  %s1 = inlined_call_operand.vmem [shape: bf16[32,32], index: 1, kind: input, shape index: {}]
  %s2 = inlined_call_operand.vmem [shape: f32[1,32], index: 2, kind: input, shape index: {}]
  %s3 = inlined_call_operand.vmem [shape: bf16[32,128], index: 3, kind: input, shape index: {}]
  %s4 = inlined_call_operand.vmem [shape: f32[1,128], index: 4, kind: input, shape index: {}]
  %s5 = inlined_call_operand.vmem [shape: bf16[128,32], index: 5, kind: output, shape index: {0}]
  %s6 = inlined_call_operand.vmem [shape: bf16[128,128], index: 6, kind: output, shape index: {1}]
  %7 = xla_tuple %s5, %s6
  %s8 = sld [smem:[#allocation0]]
  $region38: #{embeddings_net_forward.3} parent=0
    _
  %s10 = ssub.s32 1, %s8
  %s11 = scalar_select 0, %s10, %s8
  // Predicated region
  $region2: #{embeddings_net_forward.3} parent=0 // pred_check
    _
  $region3: #{embeddings_net_forward.3} parent=0 // pred_check_branch
    %13 = sbr.rel (0) target = $region5
  $region4: #{embeddings_net_forward.3} parent=0 // pred_region
    _
  $region5: #{embeddings_net_forward.3} parent=0 // pred_fallthru
    _
  // Predicated region
  $region6: #{embeddings_net_forward.3} parent=0 // pred_check
    _
  $region7: #{embeddings_net_forward.3} parent=0 // pred_check_branch
    %15 = sbr.rel (0) target = $region9
  $region8: #{embeddings_net_forward.3} parent=0 // pred_region
    _
  $region9: #{embeddings_net_forward.3} parent=0 // pred_fallthru
    _
  // Predicated region
  $region10: #{embeddings_net_forward.3} parent=0 // pred_check
    _
  $region11: #{embeddings_net_forward.3} parent=0 // pred_check_branch
    %17 = sbr.rel (0) target = $region13
  $region12: #{embeddings_net_forward.3} parent=0 // pred_region
    _
  $region13: #{embeddings_net_forward.3} parent=0 // pred_fallthru
    _
  // Predicated region
  $region14: #{embeddings_net_forward.3} parent=0 // pred_check
    _
  $region15: #{embeddings_net_forward.3} parent=0 // pred_check_branch
    %19 = sbr.rel (0) target = $region17
  $region16: #{embeddings_net_forward.3} parent=0 // pred_region
    _
  $region17: #{embeddings_net_forward.3} parent=0 // pred_fallthru
    _
  // Predicated region
  $region18: #{embeddings_net_forward.3} parent=0 // pred_check
    _
  $region19: #{embeddings_net_forward.3} parent=0 // pred_check_branch
    %21 = sbr.rel (0) target = $region21
  $region20: #{embeddings_net_forward.3} parent=0 // pred_region
    _
  $region21: #{embeddings_net_forward.3} parent=0 // pred_fallthru
    _
  %v23 = vld [vmem:[%s0] sm:$0xf]
  %v24 = vld [vmem:[%s0 + $0x4] sm:$0xf]
  %v25 = vld [vmem:[%s0 + $0x8] sm:$0xf]
  %v26 = vld [vmem:[%s0 + $0xc] sm:$0xf]
  %v27 = vld [vmem:[%s0 + $0x10] sm:$0xf]
  %v28 = vld [vmem:[%s0 + $0x14] sm:$0xf]
  %v29 = vld [vmem:[%s0 + $0x18] sm:$0xf]
  %v30 = vld [vmem:[%s0 + $0x1c] sm:$0xf]
  %v31 = vld [vmem:[%s0 + $0x20] sm:$0xf]
  %v32 = vld [vmem:[%s0 + $0x24] sm:$0xf]
  %v33 = vld [vmem:[%s0 + $0x28] sm:$0xf]
  %v34 = vld [vmem:[%s0 + $0x2c] sm:$0xf]
  %v35 = vld [vmem:[%s0 + $0x30] sm:$0xf]
  %v36 = vld [vmem:[%s0 + $0x34] sm:$0xf]
  %v37 = vld [vmem:[%s0 + $0x38] sm:$0xf]
  %v38 = vld [vmem:[%s0 + $0x3c] sm:$0xf]
  %v39 = vld [vmem:[%s1] sm:$0xf]
  %v40 = vld [vmem:[%s1 + $0x4] sm:$0xf]
  %v41 = vld [vmem:[%s1 + $0x8] sm:$0xf]
  %v42 = vld [vmem:[%s1 + $0xc] sm:$0xf]
  %v43 = vld [vmem:[%s2] sm:$0x1]
  %v45 = vlaneseq
  %v46 = vshrl.u32 %v45, 7
  %v47 = vsub.s32 0, %v46
  %v48 = vrot.slane %v43, %v47
  %v66 = vunpack.c.l.b16 %v23
  %v67 = vunpack.c.l.b16 %v24
  %v68 = vunpack.c.l.b16 %v25
  %v69 = vunpack.c.l.b16 %v26
  %v70 = vunpack.c.l.b16 %v27
  %v71 = vunpack.c.l.b16 %v28
  %v72 = vunpack.c.l.b16 %v29
  %v73 = vunpack.c.l.b16 %v30
  %v74 = vunpack.c.l.b16 %v31
  %v75 = vunpack.c.l.b16 %v32
  %v76 = vunpack.c.l.b16 %v33
  %v77 = vunpack.c.l.b16 %v34
  %v78 = vunpack.c.l.b16 %v35
  %v79 = vunpack.c.l.b16 %v36
  %v80 = vunpack.c.l.b16 %v37
  %v81 = vunpack.c.l.b16 %v38
  %v82 = vpack.c.b16 %v67, %v66
  %v83 = vpack.c.b16 %v69, %v68
  %v84 = vpack.c.b16 %v71, %v70
  %v85 = vpack.c.b16 %v73, %v72
  %v86 = vpack.c.b16 %v75, %v74
  %v87 = vpack.c.b16 %v77, %v76
  %v88 = vpack.c.b16 %v79, %v78
  %v89 = vpack.c.b16 %v81, %v80
  %v94 = vunpack.c.l.b16 %v39
  %v95 = vunpack.c.l.b16 %v40
  %v96 = vunpack.c.l.b16 %v41
  %v97 = vunpack.c.l.b16 %v42
  %v98 = vpack.c.b16 %v95, %v94
  %v99 = vpack.c.b16 %v97, %v96
  %vm102 = vcmask 261120
  %v104 = vsel %vm102, %v82, 0
  %v107 = vsel %vm102, %v83, 0
  %v110 = vsel %vm102, %v84, 0
  %v113 = vsel %vm102, %v85, 0
  %v116 = vsel %vm102, %v86, 0
  %v119 = vsel %vm102, %v87, 0
  %v122 = vsel %vm102, %v88, 0
  %v125 = vsel %vm102, %v89, 0
  %127 = vmatprep.subr.bf16.mxu0 0
  %128 = vmatpush1.bf16.msra.mxu0 0
  %129 = vmatprep.subr.bf16.mxu0 0
  %130 = vmatpush1.bf16.msra.mxu0 0
  %131 = vmatprep.subr.bf16.mxu0 0
  %132 = vmatpush1.bf16.msra.mxu0 0
  %133 = vmatprep.subr.bf16.mxu0 0
  %134 = vmatpush1.bf16.msra.mxu0 0
  %135 = vmatprep.subr.bf16.mxu0 0
  %136 = vmatpush1.bf16.msra.mxu0 0
  %137 = vmatprep.subr.bf16.mxu0 0
  %138 = vmatpush1.bf16.msra.mxu0 0
  %139 = vmatprep.subr.bf16.mxu0 0
  %140 = vmatpush1.bf16.msra.mxu0 %v99
  %141 = vmatprep.subr.bf16.mxu0 0
  %142 = vmatpush1.bf16.msra.mxu0 %v98
  %143 = vmatprep.subr.bf16.mxu0 0
  %144 = vmatpush2.bf16.msra.mxu0 0
  %145 = vmatprep.subr.bf16.mxu0 0
  %146 = vmatpush2.bf16.msra.mxu0 0
  %147 = vmatprep.subr.bf16.mxu0 0
  %148 = vmatpush2.bf16.msra.mxu0 0
  %149 = vmatprep.subr.bf16.mxu0 0
  %150 = vmatpush2.bf16.msra.mxu0 0
  %151 = vmatprep.subr.bf16.mxu0 0
  %152 = vmatpush2.bf16.msra.mxu0 0
  %153 = vmatprep.subr.bf16.mxu0 0
  %154 = vmatpush2.bf16.msra.mxu0 0
  %155 = vmatprep.subr.bf16.mxu0 0
  %156 = vmatpush2.bf16.msra.mxu0 0
  %157 = vmatprep.subr.bf16.mxu0 0
  %158 = vmatpush2.bf16.msra.mxu0 0
  %159 = vmatprep.mubr.bf16.mxu0 0
  %160 = vmatmul.mubr.bf16.gmra.mxu0 %v104
  %v161 = vpop.f32.mrf.mxu0
  %v162 = vadd.f32 %v48, %v161
  %v163 = vpop.f32.mrf.mxu0
  %v164 = vpop.f32.mrf.mxu0
  %v165 = vadd.f32 %v48, %v164
  %v166 = vpop.f32.mrf.mxu0
  %167 = vmatprep.mubr.bf16.mxu0 0
  %168 = vmatmul.mubr.bf16.gmra.mxu0 %v107
  %v169 = vpop.f32.mrf.mxu0
  %v170 = vadd.f32 %v48, %v169
  %v171 = vpop.f32.mrf.mxu0
  %v172 = vpop.f32.mrf.mxu0
  %v173 = vadd.f32 %v48, %v172
  %v174 = vpop.f32.mrf.mxu0
  %175 = vmatprep.mubr.bf16.mxu0 0
  %176 = vmatmul.mubr.bf16.gmra.mxu0 %v110
  %v177 = vpop.f32.mrf.mxu0
  %v178 = vadd.f32 %v48, %v177
  %v179 = vpop.f32.mrf.mxu0
  %v180 = vpop.f32.mrf.mxu0
  %v181 = vadd.f32 %v48, %v180
  %v182 = vpop.f32.mrf.mxu0
  %183 = vmatprep.mubr.bf16.mxu0 0
  %184 = vmatmul.mubr.bf16.gmra.mxu0 %v113
  %v185 = vpop.f32.mrf.mxu0
  %v186 = vadd.f32 %v48, %v185
  %v187 = vpop.f32.mrf.mxu0
  %v188 = vpop.f32.mrf.mxu0
  %v189 = vadd.f32 %v48, %v188
  %v190 = vpop.f32.mrf.mxu0
  %191 = vmatprep.mubr.bf16.mxu0 0
  %192 = vmatmul.mubr.bf16.gmra.mxu0 %v116
  %v193 = vpop.f32.mrf.mxu0
  %v194 = vadd.f32 %v48, %v193
  %v195 = vpop.f32.mrf.mxu0
  %v196 = vpop.f32.mrf.mxu0
  %v197 = vadd.f32 %v48, %v196
  %v198 = vpop.f32.mrf.mxu0
  %199 = vmatprep.mubr.bf16.mxu0 0
  %200 = vmatmul.mubr.bf16.gmra.mxu0 %v119
  %v201 = vpop.f32.mrf.mxu0
  %v202 = vadd.f32 %v48, %v201
  %v203 = vpop.f32.mrf.mxu0
  %v204 = vpop.f32.mrf.mxu0
  %v205 = vadd.f32 %v48, %v204
  %v206 = vpop.f32.mrf.mxu0
  %207 = vmatprep.mubr.bf16.mxu0 0
  %208 = vmatmul.mubr.bf16.gmra.mxu0 %v122
  %v209 = vpop.f32.mrf.mxu0
  %v210 = vadd.f32 %v48, %v209
  %v211 = vpop.f32.mrf.mxu0
  %v212 = vpop.f32.mrf.mxu0
  %v213 = vadd.f32 %v48, %v212
  %v214 = vpop.f32.mrf.mxu0
  %215 = vmatprep.mubr.bf16.mxu0 0
  %216 = vmatmul.mubr.bf16.gmra.mxu0 %v125
  %v217 = vpop.f32.mrf.mxu0
  %v218 = vadd.f32 %v48, %v217
  %v219 = vpop.f32.mrf.mxu0
  %v220 = vpop.f32.mrf.mxu0
  %v221 = vadd.f32 %v48, %v220
  %v222 = vpop.f32.mrf.mxu0
  %223 = vdwg.mxu0
  %v224 = vxor.u32 %v162, 2147483648
  %v225 = vxor.u32 %v165, 2147483648
  %v226 = vxor.u32 %v170, 2147483648
  %v227 = vxor.u32 %v173, 2147483648
  %v228 = vxor.u32 %v178, 2147483648
  %v229 = vxor.u32 %v181, 2147483648
  %v230 = vxor.u32 %v186, 2147483648
  %v231 = vxor.u32 %v189, 2147483648
  %v232 = vxor.u32 %v194, 2147483648
  %v233 = vxor.u32 %v197, 2147483648
  %v234 = vxor.u32 %v202, 2147483648
  %v235 = vxor.u32 %v205, 2147483648
  %v236 = vxor.u32 %v210, 2147483648
  %v237 = vxor.u32 %v213, 2147483648
  %v238 = vxor.u32 %v218, 2147483648
  %v239 = vxor.u32 %v221, 2147483648
  %v240 = vmul.f32 %v224, 1.442695
  %v241 = vpow.pop %v240
  %v242 = vmul.f32 %v225, 1.442695
  %v243 = vpow.pop %v242
  %v244 = vmul.f32 %v226, 1.442695
  %v245 = vpow.pop %v244
  %v246 = vmul.f32 %v227, 1.442695
  %v247 = vpow.pop %v246
  %v248 = vmul.f32 %v228, 1.442695
  %v249 = vpow.pop %v248
  %v250 = vmul.f32 %v229, 1.442695
  %v251 = vpow.pop %v250
  %v252 = vmul.f32 %v230, 1.442695
  %v253 = vpow.pop %v252
  %v254 = vmul.f32 %v231, 1.442695
  %v255 = vpow.pop %v254
  %v256 = vmul.f32 %v232, 1.442695
  %v257 = vpow.pop %v256
  %v258 = vmul.f32 %v233, 1.442695
  %v259 = vpow.pop %v258
  %v260 = vmul.f32 %v234, 1.442695
  %v261 = vpow.pop %v260
  %v262 = vmul.f32 %v235, 1.442695
  %v263 = vpow.pop %v262
  %v264 = vmul.f32 %v236, 1.442695
  %v265 = vpow.pop %v264
  %v266 = vmul.f32 %v237, 1.442695
  %v267 = vpow.pop %v266
  %v268 = vmul.f32 %v238, 1.442695
  %v269 = vpow.pop %v268
  %v270 = vmul.f32 %v239, 1.442695
  %v271 = vpow.pop %v270
  %v272 = vadd.f32 %v241, 1.0
  %v273 = vadd.f32 %v243, 1.0
  %v274 = vadd.f32 %v245, 1.0
  %v275 = vadd.f32 %v247, 1.0
  %v276 = vadd.f32 %v249, 1.0
  %v277 = vadd.f32 %v251, 1.0
  %v278 = vadd.f32 %v253, 1.0
  %v279 = vadd.f32 %v255, 1.0
  %v280 = vadd.f32 %v257, 1.0
  %v281 = vadd.f32 %v259, 1.0
  %v282 = vadd.f32 %v261, 1.0
  %v283 = vadd.f32 %v263, 1.0
  %v284 = vadd.f32 %v265, 1.0
  %v285 = vadd.f32 %v267, 1.0
  %v286 = vadd.f32 %v269, 1.0
  %v287 = vadd.f32 %v271, 1.0
  %v288 = vrcp.pop %v272
  %v289 = vmul.f32 1.0, %v288
  %v290 = vrcp.pop %v273
  %v291 = vmul.f32 1.0, %v290
  %v292 = vrcp.pop %v274
  %v293 = vmul.f32 1.0, %v292
  %v294 = vrcp.pop %v275
  %v295 = vmul.f32 1.0, %v294
  %v296 = vrcp.pop %v276
  %v297 = vmul.f32 1.0, %v296
  %v298 = vrcp.pop %v277
  %v299 = vmul.f32 1.0, %v298
  %v300 = vrcp.pop %v278
  %v301 = vmul.f32 1.0, %v300
  %v302 = vrcp.pop %v279
  %v303 = vmul.f32 1.0, %v302
  %v304 = vrcp.pop %v280
  %v305 = vmul.f32 1.0, %v304
  %v306 = vrcp.pop %v281
  %v307 = vmul.f32 1.0, %v306
  %v308 = vrcp.pop %v282
  %v309 = vmul.f32 1.0, %v308
  %v310 = vrcp.pop %v283
  %v311 = vmul.f32 1.0, %v310
  %v312 = vrcp.pop %v284
  %v313 = vmul.f32 1.0, %v312
  %v314 = vrcp.pop %v285
  %v315 = vmul.f32 1.0, %v314
  %v316 = vrcp.pop %v286
  %v317 = vmul.f32 1.0, %v316
  %v318 = vrcp.pop %v287
  %v319 = vmul.f32 1.0, %v318
  %v320 = vmul.f32 %v162, %v289
  %v321 = vmul.f32 %v165, %v291
  %v322 = vmul.f32 %v170, %v293
  %v323 = vmul.f32 %v173, %v295
  %v324 = vmul.f32 %v178, %v297
  %v325 = vmul.f32 %v181, %v299
  %v326 = vmul.f32 %v186, %v301
  %v327 = vmul.f32 %v189, %v303
  %v328 = vmul.f32 %v194, %v305
  %v329 = vmul.f32 %v197, %v307
  %v330 = vmul.f32 %v202, %v309
  %v331 = vmul.f32 %v205, %v311
  %v332 = vmul.f32 %v210, %v313
  %v333 = vmul.f32 %v213, %v315
  %v334 = vmul.f32 %v218, %v317
  %v335 = vmul.f32 %v221, %v319
  %v336 = vpack.c.bf16 %v321, %v320
  %v337 = vpack.c.bf16 %v323, %v322
  %v338 = vpack.c.bf16 %v325, %v324
  %v339 = vpack.c.bf16 %v327, %v326
  %v340 = vpack.c.bf16 %v329, %v328
  %v341 = vpack.c.bf16 %v331, %v330
  %v342 = vpack.c.bf16 %v333, %v332
  %v343 = vpack.c.bf16 %v335, %v334
  %v352 = vunpack.c.l.b16 %v336
  %v353 = vunpack.c.h.b16 %v336
  %v354 = vunpack.c.l.b16 %v337
  %v355 = vunpack.c.h.b16 %v337
  %v356 = vunpack.c.l.b16 %v338
  %v357 = vunpack.c.h.b16 %v338
  %v358 = vunpack.c.l.b16 %v339
  %v359 = vunpack.c.h.b16 %v339
  %v360 = vunpack.c.l.b16 %v340
  %v361 = vunpack.c.h.b16 %v340
  %v362 = vunpack.c.l.b16 %v341
  %v363 = vunpack.c.h.b16 %v341
  %v364 = vunpack.c.l.b16 %v342
  %v365 = vunpack.c.h.b16 %v342
  %v366 = vunpack.c.l.b16 %v343
  %v367 = vunpack.c.h.b16 %v343
  %v368 = vpack.c.b16 %v352, %v352
  %v369 = vpack.c.b16 %v353, %v353
  %v370 = vpack.c.b16 %v354, %v354
  %v371 = vpack.c.b16 %v355, %v355
  %v372 = vpack.c.b16 %v356, %v356
  %v373 = vpack.c.b16 %v357, %v357
  %v374 = vpack.c.b16 %v358, %v358
  %v375 = vpack.c.b16 %v359, %v359
  %v376 = vpack.c.b16 %v360, %v360
  %v377 = vpack.c.b16 %v361, %v361
  %v378 = vpack.c.b16 %v362, %v362
  %v379 = vpack.c.b16 %v363, %v363
  %v380 = vpack.c.b16 %v364, %v364
  %v381 = vpack.c.b16 %v365, %v365
  %v382 = vpack.c.b16 %v366, %v366
  %v383 = vpack.c.b16 %v367, %v367
  %vm400 = vcmask 257024
  %401 = vst.msk [vmem:[%s5] sm:$0xf] %vm400, %v368
  %402 = vst.msk [vmem:[%s5 + $0x4] sm:$0xf] %vm400, %v369
  %403 = vst.msk [vmem:[%s5 + $0x8] sm:$0xf] %vm400, %v370
  %404 = vst.msk [vmem:[%s5 + $0xc] sm:$0xf] %vm400, %v371
  %405 = vst.msk [vmem:[%s5 + $0x10] sm:$0xf] %vm400, %v372
  %406 = vst.msk [vmem:[%s5 + $0x14] sm:$0xf] %vm400, %v373
  %407 = vst.msk [vmem:[%s5 + $0x18] sm:$0xf] %vm400, %v374
  %408 = vst.msk [vmem:[%s5 + $0x1c] sm:$0xf] %vm400, %v375
  %409 = vst.msk [vmem:[%s5 + $0x20] sm:$0xf] %vm400, %v376
  %410 = vst.msk [vmem:[%s5 + $0x24] sm:$0xf] %vm400, %v377
  %411 = vst.msk [vmem:[%s5 + $0x28] sm:$0xf] %vm400, %v378
  %412 = vst.msk [vmem:[%s5 + $0x2c] sm:$0xf] %vm400, %v379
  %413 = vst.msk [vmem:[%s5 + $0x30] sm:$0xf] %vm400, %v380
  %414 = vst.msk [vmem:[%s5 + $0x34] sm:$0xf] %vm400, %v381
  %415 = vst.msk [vmem:[%s5 + $0x38] sm:$0xf] %vm400, %v382
  %416 = vst.msk [vmem:[%s5 + $0x3c] sm:$0xf] %vm400, %v383
  %v417 = vld [vmem:[%s3] sm:$0xf]
  %v418 = vld [vmem:[%s3 + $0x4] sm:$0xf]
  %v419 = vld [vmem:[%s3 + $0x8] sm:$0xf]
  %v420 = vld [vmem:[%s3 + $0xc] sm:$0xf]
  %v421 = vld [vmem:[%s4] sm:$0x1]
  %v423 = vlaneseq
  %v424 = vshrl.u32 %v423, 7
  %v425 = vsub.s32 0, %v424
  %v426 = vrot.slane %v421, %v425
  %v432 = vunpack.c.l.b16 %v417
  %v433 = vunpack.c.l.b16 %v418
  %v434 = vunpack.c.l.b16 %v419
  %v435 = vunpack.c.l.b16 %v420
  %v436 = vpack.c.b16 %v433, %v432
  %v437 = vpack.c.b16 %v435, %v434
  %v441 = vsel %vm102, %v336, 0
  %v444 = vsel %vm102, %v337, 0
  %v447 = vsel %vm102, %v338, 0
  %v450 = vsel %vm102, %v339, 0
  %v453 = vsel %vm102, %v340, 0
  %v456 = vsel %vm102, %v341, 0
  %v459 = vsel %vm102, %v342, 0
  %v462 = vsel %vm102, %v343, 0
  %464 = vmatprep.subr.bf16.mxu0 0
  %465 = vmatpush1.bf16.msra.mxu0 0
  %466 = vmatprep.subr.bf16.mxu0 0
  %467 = vmatpush1.bf16.msra.mxu0 0
  %468 = vmatprep.subr.bf16.mxu0 0
  %469 = vmatpush1.bf16.msra.mxu0 0
  %470 = vmatprep.subr.bf16.mxu0 0
  %471 = vmatpush1.bf16.msra.mxu0 0
  %472 = vmatprep.subr.bf16.mxu0 0
  %473 = vmatpush1.bf16.msra.mxu0 0
  %474 = vmatprep.subr.bf16.mxu0 0
  %475 = vmatpush1.bf16.msra.mxu0 0
  %476 = vmatprep.subr.bf16.mxu0 0
  %477 = vmatpush1.bf16.msra.mxu0 %v437
  %478 = vmatprep.subr.bf16.mxu0 0
  %479 = vmatpush1.bf16.msra.mxu0 %v436
  %480 = vmatprep.subr.bf16.mxu0 0
  %481 = vmatpush2.bf16.msra.mxu0 0
  %482 = vmatprep.subr.bf16.mxu0 0
  %483 = vmatpush2.bf16.msra.mxu0 0
  %484 = vmatprep.subr.bf16.mxu0 0
  %485 = vmatpush2.bf16.msra.mxu0 0
  %486 = vmatprep.subr.bf16.mxu0 0
  %487 = vmatpush2.bf16.msra.mxu0 0
  %488 = vmatprep.subr.bf16.mxu0 0
  %489 = vmatpush2.bf16.msra.mxu0 0
  %490 = vmatprep.subr.bf16.mxu0 0
  %491 = vmatpush2.bf16.msra.mxu0 0
  %492 = vmatprep.subr.bf16.mxu0 0
  %493 = vmatpush2.bf16.msra.mxu0 0
  %494 = vmatprep.subr.bf16.mxu0 0
  %495 = vmatpush2.bf16.msra.mxu0 0
  %496 = vmatprep.mubr.bf16.mxu0 0
  %497 = vmatmul.mubr.bf16.gmra.mxu0 %v441
  %v498 = vpop.f32.mrf.mxu0
  %v499 = vadd.f32 %v426, %v498
  %v500 = vpop.f32.mrf.mxu0
  %v501 = vpop.f32.mrf.mxu0
  %v502 = vadd.f32 %v426, %v501
  %v503 = vpop.f32.mrf.mxu0
  %504 = vmatprep.mubr.bf16.mxu0 0
  %505 = vmatmul.mubr.bf16.gmra.mxu0 %v444
  %v506 = vpop.f32.mrf.mxu0
  %v507 = vadd.f32 %v426, %v506
  %v508 = vpop.f32.mrf.mxu0
  %v509 = vpop.f32.mrf.mxu0
  %v510 = vadd.f32 %v426, %v509
  %v511 = vpop.f32.mrf.mxu0
  %512 = vmatprep.mubr.bf16.mxu0 0
  %513 = vmatmul.mubr.bf16.gmra.mxu0 %v447
  %v514 = vpop.f32.mrf.mxu0
  %v515 = vadd.f32 %v426, %v514
  %v516 = vpop.f32.mrf.mxu0
  %v517 = vpop.f32.mrf.mxu0
  %v518 = vadd.f32 %v426, %v517
  %v519 = vpop.f32.mrf.mxu0
  %520 = vmatprep.mubr.bf16.mxu0 0
  %521 = vmatmul.mubr.bf16.gmra.mxu0 %v450
  %v522 = vpop.f32.mrf.mxu0
  %v523 = vadd.f32 %v426, %v522
  %v524 = vpop.f32.mrf.mxu0
  %v525 = vpop.f32.mrf.mxu0
  %v526 = vadd.f32 %v426, %v525
  %v527 = vpop.f32.mrf.mxu0
  %528 = vmatprep.mubr.bf16.mxu0 0
  %529 = vmatmul.mubr.bf16.gmra.mxu0 %v453
  %v530 = vpop.f32.mrf.mxu0
  %v531 = vadd.f32 %v426, %v530
  %v532 = vpop.f32.mrf.mxu0
  %v533 = vpop.f32.mrf.mxu0
  %v534 = vadd.f32 %v426, %v533
  %v535 = vpop.f32.mrf.mxu0
  %536 = vmatprep.mubr.bf16.mxu0 0
  %537 = vmatmul.mubr.bf16.gmra.mxu0 %v456
  %v538 = vpop.f32.mrf.mxu0
  %v539 = vadd.f32 %v426, %v538
  %v540 = vpop.f32.mrf.mxu0
  %v541 = vpop.f32.mrf.mxu0
  %v542 = vadd.f32 %v426, %v541
  %v543 = vpop.f32.mrf.mxu0
  %544 = vmatprep.mubr.bf16.mxu0 0
  %545 = vmatmul.mubr.bf16.gmra.mxu0 %v459
  %v546 = vpop.f32.mrf.mxu0
  %v547 = vadd.f32 %v426, %v546
  %v548 = vpop.f32.mrf.mxu0
  %v549 = vpop.f32.mrf.mxu0
  %v550 = vadd.f32 %v426, %v549
  %v551 = vpop.f32.mrf.mxu0
  %552 = vmatprep.mubr.bf16.mxu0 0
  %553 = vmatmul.mubr.bf16.gmra.mxu0 %v462
  %v554 = vpop.f32.mrf.mxu0
  %v555 = vadd.f32 %v426, %v554
  %v556 = vpop.f32.mrf.mxu0
  %v557 = vpop.f32.mrf.mxu0
  %v558 = vadd.f32 %v426, %v557
  %v559 = vpop.f32.mrf.mxu0
  %560 = vdwg.mxu0
  %v561 = vxor.u32 %v499, 2147483648
  %v562 = vxor.u32 %v502, 2147483648
  %v563 = vxor.u32 %v507, 2147483648
  %v564 = vxor.u32 %v510, 2147483648
  %v565 = vxor.u32 %v515, 2147483648
  %v566 = vxor.u32 %v518, 2147483648
  %v567 = vxor.u32 %v523, 2147483648
  %v568 = vxor.u32 %v526, 2147483648
  %v569 = vxor.u32 %v531, 2147483648
  %v570 = vxor.u32 %v534, 2147483648
  %v571 = vxor.u32 %v539, 2147483648
  %v572 = vxor.u32 %v542, 2147483648
  %v573 = vxor.u32 %v547, 2147483648
  %v574 = vxor.u32 %v550, 2147483648
  %v575 = vxor.u32 %v555, 2147483648
  %v576 = vxor.u32 %v558, 2147483648
  %v577 = vmul.f32 %v561, 1.442695
  %v578 = vpow.pop %v577
  %v579 = vmul.f32 %v562, 1.442695
  %v580 = vpow.pop %v579
  %v581 = vmul.f32 %v563, 1.442695
  %v582 = vpow.pop %v581
  %v583 = vmul.f32 %v564, 1.442695
  %v584 = vpow.pop %v583
  %v585 = vmul.f32 %v565, 1.442695
  %v586 = vpow.pop %v585
  %v587 = vmul.f32 %v566, 1.442695
  %v588 = vpow.pop %v587
  %v589 = vmul.f32 %v567, 1.442695
  %v590 = vpow.pop %v589
  %v591 = vmul.f32 %v568, 1.442695
  %v592 = vpow.pop %v591
  %v593 = vmul.f32 %v569, 1.442695
  %v594 = vpow.pop %v593
  %v595 = vmul.f32 %v570, 1.442695
  %v596 = vpow.pop %v595
  %v597 = vmul.f32 %v571, 1.442695
  %v598 = vpow.pop %v597
  %v599 = vmul.f32 %v572, 1.442695
  %v600 = vpow.pop %v599
  %v601 = vmul.f32 %v573, 1.442695
  %v602 = vpow.pop %v601
  %v603 = vmul.f32 %v574, 1.442695
  %v604 = vpow.pop %v603
  %v605 = vmul.f32 %v575, 1.442695
  %v606 = vpow.pop %v605
  %v607 = vmul.f32 %v576, 1.442695
  %v608 = vpow.pop %v607
  %v609 = vadd.f32 %v578, 1.0
  %v610 = vadd.f32 %v580, 1.0
  %v611 = vadd.f32 %v582, 1.0
  %v612 = vadd.f32 %v584, 1.0
  %v613 = vadd.f32 %v586, 1.0
  %v614 = vadd.f32 %v588, 1.0
  %v615 = vadd.f32 %v590, 1.0
  %v616 = vadd.f32 %v592, 1.0
  %v617 = vadd.f32 %v594, 1.0
  %v618 = vadd.f32 %v596, 1.0
  %v619 = vadd.f32 %v598, 1.0
  %v620 = vadd.f32 %v600, 1.0
  %v621 = vadd.f32 %v602, 1.0
  %v622 = vadd.f32 %v604, 1.0
  %v623 = vadd.f32 %v606, 1.0
  %v624 = vadd.f32 %v608, 1.0
  %v625 = vrcp.pop %v609
  %v626 = vmul.f32 1.0, %v625
  %v627 = vrcp.pop %v610
  %v628 = vmul.f32 1.0, %v627
  %v629 = vrcp.pop %v611
  %v630 = vmul.f32 1.0, %v629
  %v631 = vrcp.pop %v612
  %v632 = vmul.f32 1.0, %v631
  %v633 = vrcp.pop %v613
  %v634 = vmul.f32 1.0, %v633
  %v635 = vrcp.pop %v614
  %v636 = vmul.f32 1.0, %v635
  %v637 = vrcp.pop %v615
  %v638 = vmul.f32 1.0, %v637
  %v639 = vrcp.pop %v616
  %v640 = vmul.f32 1.0, %v639
  %v641 = vrcp.pop %v617
  %v642 = vmul.f32 1.0, %v641
  %v643 = vrcp.pop %v618
  %v644 = vmul.f32 1.0, %v643
  %v645 = vrcp.pop %v619
  %v646 = vmul.f32 1.0, %v645
  %v647 = vrcp.pop %v620
  %v648 = vmul.f32 1.0, %v647
  %v649 = vrcp.pop %v621
  %v650 = vmul.f32 1.0, %v649
  %v651 = vrcp.pop %v622
  %v652 = vmul.f32 1.0, %v651
  %v653 = vrcp.pop %v623
  %v654 = vmul.f32 1.0, %v653
  %v655 = vrcp.pop %v624
  %v656 = vmul.f32 1.0, %v655
  %v657 = vmul.f32 %v499, %v626
  %v658 = vmul.f32 %v502, %v628
  %v659 = vmul.f32 %v507, %v630
  %v660 = vmul.f32 %v510, %v632
  %v661 = vmul.f32 %v515, %v634
  %v662 = vmul.f32 %v518, %v636
  %v663 = vmul.f32 %v523, %v638
  %v664 = vmul.f32 %v526, %v640
  %v665 = vmul.f32 %v531, %v642
  %v666 = vmul.f32 %v534, %v644
  %v667 = vmul.f32 %v539, %v646
  %v668 = vmul.f32 %v542, %v648
  %v669 = vmul.f32 %v547, %v650
  %v670 = vmul.f32 %v550, %v652
  %v671 = vmul.f32 %v555, %v654
  %v672 = vmul.f32 %v558, %v656
  %v673 = vpack.c.bf16 %v658, %v657
  %v674 = vpack.c.bf16 %v660, %v659
  %v675 = vpack.c.bf16 %v662, %v661
  %v676 = vpack.c.bf16 %v664, %v663
  %v677 = vpack.c.bf16 %v666, %v665
  %v678 = vpack.c.bf16 %v668, %v667
  %v679 = vpack.c.bf16 %v670, %v669
  %v680 = vpack.c.bf16 %v672, %v671
  %v689 = vunpack.c.l.b16 %v673
  %v690 = vunpack.c.h.b16 %v673
  %v691 = vunpack.c.l.b16 %v674
  %v692 = vunpack.c.h.b16 %v674
  %v693 = vunpack.c.l.b16 %v675
  %v694 = vunpack.c.h.b16 %v675
  %v695 = vunpack.c.l.b16 %v676
  %v696 = vunpack.c.h.b16 %v676
  %v697 = vunpack.c.l.b16 %v677
  %v698 = vunpack.c.h.b16 %v677
  %v699 = vunpack.c.l.b16 %v678
  %v700 = vunpack.c.h.b16 %v678
  %v701 = vunpack.c.l.b16 %v679
  %v702 = vunpack.c.h.b16 %v679
  %v703 = vunpack.c.l.b16 %v680
  %v704 = vunpack.c.h.b16 %v680
  %v705 = vpack.c.b16 %v689, %v689
  %v706 = vpack.c.b16 %v690, %v690
  %v707 = vpack.c.b16 %v691, %v691
  %v708 = vpack.c.b16 %v692, %v692
  %v709 = vpack.c.b16 %v693, %v693
  %v710 = vpack.c.b16 %v694, %v694
  %v711 = vpack.c.b16 %v695, %v695
  %v712 = vpack.c.b16 %v696, %v696
  %v713 = vpack.c.b16 %v697, %v697
  %v714 = vpack.c.b16 %v698, %v698
  %v715 = vpack.c.b16 %v699, %v699
  %v716 = vpack.c.b16 %v700, %v700
  %v717 = vpack.c.b16 %v701, %v701
  %v718 = vpack.c.b16 %v702, %v702
  %v719 = vpack.c.b16 %v703, %v703
  %v720 = vpack.c.b16 %v704, %v704
  %737 = vst [vmem:[%s6] sm:$0xf] %v705
  %738 = vst [vmem:[%s6 + $0x4] sm:$0xf] %v706
  %739 = vst [vmem:[%s6 + $0x8] sm:$0xf] %v707
  %740 = vst [vmem:[%s6 + $0xc] sm:$0xf] %v708
  %741 = vst [vmem:[%s6 + $0x10] sm:$0xf] %v709
  %742 = vst [vmem:[%s6 + $0x14] sm:$0xf] %v710
  %743 = vst [vmem:[%s6 + $0x18] sm:$0xf] %v711
  %744 = vst [vmem:[%s6 + $0x1c] sm:$0xf] %v712
  %745 = vst [vmem:[%s6 + $0x20] sm:$0xf] %v713
  %746 = vst [vmem:[%s6 + $0x24] sm:$0xf] %v714
  %747 = vst [vmem:[%s6 + $0x28] sm:$0xf] %v715
  %748 = vst [vmem:[%s6 + $0x2c] sm:$0xf] %v716
  %749 = vst [vmem:[%s6 + $0x30] sm:$0xf] %v717
  %750 = vst [vmem:[%s6 + $0x34] sm:$0xf] %v718
  %751 = vst [vmem:[%s6 + $0x38] sm:$0xf] %v719
  %752 = vst [vmem:[%s6 + $0x3c] sm:$0xf] %v720
  // Predicated region
  $region22: #{embeddings_net_forward.3} parent=0 // pred_check
    _
  $region23: #{embeddings_net_forward.3} parent=0 // pred_check_branch
    %754 = sbr.rel (0) target = $region25
  $region24: #{embeddings_net_forward.3} parent=0 // pred_region
    _
  $region25: #{embeddings_net_forward.3} parent=0 // pred_fallthru
    _
  // Predicated region
  $region26: #{embeddings_net_forward.3} parent=0 // pred_check
    _
  $region27: #{embeddings_net_forward.3} parent=0 // pred_check_branch
    %756 = sbr.rel (0) target = $region29
  $region28: #{embeddings_net_forward.3} parent=0 // pred_region
    _
  $region29: #{embeddings_net_forward.3} parent=0 // pred_fallthru
    _
  // Predicated region
  $region30: #{embeddings_net_forward.3} parent=0 // pred_check
    _
  $region31: #{embeddings_net_forward.3} parent=0 // pred_check_branch
    %758 = sbr.rel (0) target = $region33
  $region32: #{embeddings_net_forward.3} parent=0 // pred_region
    _
  $region33: #{embeddings_net_forward.3} parent=0 // pred_fallthru
    _
  // Predicated region
  $region34: #{embeddings_net_forward.3} parent=0 // pred_check
    _
  $region35: #{embeddings_net_forward.3} parent=0 // pred_check_branch
    %760 = sbr.rel (0) target = $region37
  $region36: #{embeddings_net_forward.3} parent=0 // pred_region
    _
  $region37: #{embeddings_net_forward.3} parent=0 // pred_fallthru
    _

// kernel: embeddings_net_forward.5
$region0: #{embeddings_net_forward.5}
  #allocation0 [shape = 'u32[]', space=smem, size = 0x4, offset = 0x4, fixed_abs, tag = 'smem constant byte address 0x4 - core index']
  #allocation1 [shape = 'u32[144,128]{1,0:T(1,128)}', space=vmem, size = 0x12000, scoped, tag = 'internal scratch']
  #allocation2 [shape = 'f32[1,128]{1,0:T(1,128)}', space=vmem, size = 0x200, scoped, tag = 'scratch operand']
  %s0 = inlined_call_operand.vmem [shape: bf16[2,64,128], index: 0, kind: input, shape index: {}]
  %s1 = inlined_call_operand.vmem [shape: bf16[2,64,32], index: 1, kind: input, shape index: {}]
  %s2 = inlined_call_operand.vmem [shape: f32[2,1,128], index: 2, kind: input, shape index: {}]
  %s3 = inlined_call_operand.vmem [shape: bf16[128,32], index: 3, kind: input, shape index: {}]
  %s4 = inlined_call_operand.vmem [shape: f32[1,32], index: 4, kind: input, shape index: {}]
  %s5 = inlined_call_operand.vmem [shape: bf16[32,128], index: 5, kind: input, shape index: {}]
  %s6 = inlined_call_operand.vmem [shape: f32[1,128], index: 6, kind: input, shape index: {}]
  %s7 = inlined_call_operand.vmem [shape: bf16[128,128], index: 7, kind: input, shape index: {}]
  %s8 = inlined_call_operand.vmem [shape: f32[1,128], index: 8, kind: input, shape index: {}]
  %s9 = inlined_call_operand.hbm [shape: f32[2,1,128], index: 9, kind: output, shape index: {}]
  %s10 = sld [smem:[#allocation0]]
  $region77: #{embeddings_net_forward.5} parent=0
    _
  %s12 = ssub.s32 1, %s10
  %s13 = scalar_select 0, %s12, %s10
  $region1: #{embeddings_net_forward.5} parent=0
    #allocation3 [shape = 'u8[1024]{0}', space=vmem, size = 0x400, scoped, tag = 'output window, operand 0']
    #allocation4 [shape = 's32[2]{0}', space=sflag, size = 0x8, scoped, tag = 'scoped memory for embeddings_net_forward.5']
    %14 = vsyncpa [#allocation4], 0
    %s15 = scalar_lea.sflag [#allocation4], 1
    %16 = vsyncpa %s15, 0
    loop: start=0, step=1, limit=4
    $region2: #{embeddings_net_forward.5} parent=1 // loop_pre_header
      _
    $region3: #{embeddings_net_forward.5} parent=1 // loop_header
      %s18 = sphi 0, %s22
      %p19 = scmp.ge.s32.totalorder %s18, 4
      %s25 = sphi 0, %s37
      %s26 = sphi 0, %s33
      %s27 = sphi 0, %s25
      %s28 = sphi 0, %s26
      %s29 = sphi 0, %s27
      %s30 = sphi 0, %s28
      %s42 = sphi 0, %s44
      %s45 = sphi 0, %s42
      %s46 = sphi 0, %s45
      %s62 = sphi 0, %s46
      %s70 = sphi 0, %s72
      %s73 = sphi 0, %s70
      %s74 = sphi 0, %s73
      %s90 = sphi 0, %s74
      %s96 = sphi 0, %s98
      %s99 = sphi 0, %s96
      %s100 = sphi 0, %s99
      %s116 = sphi 0, %s100
      %s120 = sphi 0, %s120
      %s122 = sphi 0, %s120
      %s123 = sphi 0, %s122
      %s137 = sphi 0, %s123
      %s141 = sphi 0, %s141
      %s143 = sphi 0, %s141
      %s144 = sphi 0, %s143
      %s158 = sphi 0, %s144
      %s162 = sphi 0, %s162
      %s164 = sphi 0, %s162
      %s165 = sphi 0, %s164
      %s179 = sphi 0, %s165
      %s183 = sphi 0, %s183
      %s185 = sphi 0, %s183
      %s186 = sphi 0, %s185
      %s200 = sphi 0, %s186
      %s204 = sphi 0, %s204
      %s206 = sphi 0, %s204
      %s207 = sphi 0, %s206
      %s221 = sphi 0, %s207
      %s225 = sphi 0, %s225
      %s227 = sphi 0, %s225
      %s228 = sphi 0, %s227
      %s242 = sphi 0, %s228
      %s248 = sphi 0, %s250
      %s251 = sphi 0, %s248
      %s252 = sphi 0, %s251
      %s268 = sphi 0, %s252
    $region4: #{embeddings_net_forward.5} parent=1 // loop_header_branch
      %21 = sbr.rel (%p19) target = $region8
    $region5: #{embeddings_net_forward.5} parent=1 // loop_body
      %s23 = ssub.s32 %s18, 1
      %s24 = ssub.s32 %s18, 2
      %s31 = sadd.s32 1, %s26
      %p32 = scmp.ge.s32.totalorder %s31, 1
      %s33 = scalar_select %p32, 0, %s31
      %s34 = sadd.s32 1, %s25
      %s35 = scalar_select %p32, %s34, %s25
      %p36 = scmp.ge.s32.totalorder %s35, 2
      %s37 = scalar_select %p36, 0, %s35
      %s38 = ssub.s32 %s25, %s37
      %s39 = ssub.s32 %s26, %s33
      %s40 = sor.u32 %s38, %s39
      %p41 = scmp.eq.s32.totalorder %s40, 0
      %s43 = sadd.s32 %s42, 1
      %s44 = scalar_select %p41, %s42, %s43
      %p47 = pneg %p41
      %p48 = scmp.eq.s32.totalorder %s18, 1
      %p49 = por %p47, %p48
      %p50 = scmp.ne.s32.totalorder %s42, %s45
      %p51 = scmp.eq.s32.totalorder %s18, 0
      %p52 = por %p50, %p51
      %p53 = scmp.ne.s32.totalorder %s42, %s45
      %p54 = scmp.eq.s32.totalorder %s23, 1
      %p55 = por %p53, %p54
      %p56 = scmp.ne.s32.totalorder %s45, %s46
      %p57 = scmp.eq.s32.totalorder %s23, 0
      %p58 = por %p56, %p57
      %p59 = scmp.ne.s32.totalorder %s45, %s46
      %p60 = scmp.eq.s32.totalorder %s24, 1
      %p61 = por %p59, %p60
      %p63 = scmp.ne.s32.totalorder %s46, %s62
      %p64 = scmp.eq.s32.totalorder %s24, 0
      %p65 = por %p63, %p64
      %s66 = ssub.s32 %s25, %s37
      %s67 = ssub.s32 %s26, %s33
      %s68 = sor.u32 %s66, %s67
      %p69 = scmp.eq.s32.totalorder %s68, 0
      %s71 = sadd.s32 %s70, 1
      %s72 = scalar_select %p69, %s70, %s71
      %p75 = pneg %p69
      %p76 = scmp.eq.s32.totalorder %s18, 1
      %p77 = por %p75, %p76
      %p78 = scmp.ne.s32.totalorder %s70, %s73
      %p79 = scmp.eq.s32.totalorder %s18, 0
      %p80 = por %p78, %p79
      %p81 = scmp.ne.s32.totalorder %s70, %s73
      %p82 = scmp.eq.s32.totalorder %s23, 1
      %p83 = por %p81, %p82
      %p84 = scmp.ne.s32.totalorder %s73, %s74
      %p85 = scmp.eq.s32.totalorder %s23, 0
      %p86 = por %p84, %p85
      %p87 = scmp.ne.s32.totalorder %s73, %s74
      %p88 = scmp.eq.s32.totalorder %s24, 1
      %p89 = por %p87, %p88
      %p91 = scmp.ne.s32.totalorder %s74, %s90
      %p92 = scmp.eq.s32.totalorder %s24, 0
      %p93 = por %p91, %p92
      %s94 = ssub.s32 %s25, %s37
      %p95 = scmp.eq.s32.totalorder %s94, 0
      %s97 = sadd.s32 %s96, 1
      %s98 = scalar_select %p95, %s96, %s97
      %p101 = pneg %p95
      %p102 = scmp.eq.s32.totalorder %s18, 1
      %p103 = por %p101, %p102
      %p104 = scmp.ne.s32.totalorder %s96, %s99
      %p105 = scmp.eq.s32.totalorder %s18, 0
      %p106 = por %p104, %p105
      %p107 = scmp.ne.s32.totalorder %s96, %s99
      %p108 = scmp.eq.s32.totalorder %s23, 1
      %p109 = por %p107, %p108
      %p110 = scmp.ne.s32.totalorder %s99, %s100
      %p111 = scmp.eq.s32.totalorder %s23, 0
      %p112 = por %p110, %p111
      %p113 = scmp.ne.s32.totalorder %s99, %s100
      %p114 = scmp.eq.s32.totalorder %s24, 1
      %p115 = por %p113, %p114
      %p117 = scmp.ne.s32.totalorder %s100, %s116
      %p118 = scmp.eq.s32.totalorder %s24, 0
      %p119 = por %p117, %p118
      %s121 = sadd.s32 %s120, 1
      %p124 = scmp.eq.s32.totalorder %s18, 1
      %p125 = scmp.ne.s32.totalorder %s120, %s122
      %p126 = scmp.eq.s32.totalorder %s18, 0
      %p127 = por %p125, %p126
      %p128 = scmp.ne.s32.totalorder %s120, %s122
      %p129 = scmp.eq.s32.totalorder %s23, 1
      %p130 = por %p128, %p129
      %p131 = scmp.ne.s32.totalorder %s122, %s123
      %p132 = scmp.eq.s32.totalorder %s23, 0
      %p133 = por %p131, %p132
      %p134 = scmp.ne.s32.totalorder %s122, %s123
      %p135 = scmp.eq.s32.totalorder %s24, 1
      %p136 = por %p134, %p135
      %p138 = scmp.ne.s32.totalorder %s123, %s137
      %p139 = scmp.eq.s32.totalorder %s24, 0
      %p140 = por %p138, %p139
      %s142 = sadd.s32 %s141, 1
      %p145 = scmp.eq.s32.totalorder %s18, 1
      %p146 = scmp.ne.s32.totalorder %s141, %s143
      %p147 = scmp.eq.s32.totalorder %s18, 0
      %p148 = por %p146, %p147
      %p149 = scmp.ne.s32.totalorder %s141, %s143
      %p150 = scmp.eq.s32.totalorder %s23, 1
      %p151 = por %p149, %p150
      %p152 = scmp.ne.s32.totalorder %s143, %s144
      %p153 = scmp.eq.s32.totalorder %s23, 0
      %p154 = por %p152, %p153
      %p155 = scmp.ne.s32.totalorder %s143, %s144
      %p156 = scmp.eq.s32.totalorder %s24, 1
      %p157 = por %p155, %p156
      %p159 = scmp.ne.s32.totalorder %s144, %s158
      %p160 = scmp.eq.s32.totalorder %s24, 0
      %p161 = por %p159, %p160
      %s163 = sadd.s32 %s162, 1
      %p166 = scmp.eq.s32.totalorder %s18, 1
      %p167 = scmp.ne.s32.totalorder %s162, %s164
      %p168 = scmp.eq.s32.totalorder %s18, 0
      %p169 = por %p167, %p168
      %p170 = scmp.ne.s32.totalorder %s162, %s164
      %p171 = scmp.eq.s32.totalorder %s23, 1
      %p172 = por %p170, %p171
      %p173 = scmp.ne.s32.totalorder %s164, %s165
      %p174 = scmp.eq.s32.totalorder %s23, 0
      %p175 = por %p173, %p174
      %p176 = scmp.ne.s32.totalorder %s164, %s165
      %p177 = scmp.eq.s32.totalorder %s24, 1
      %p178 = por %p176, %p177
      %p180 = scmp.ne.s32.totalorder %s165, %s179
      %p181 = scmp.eq.s32.totalorder %s24, 0
      %p182 = por %p180, %p181
      %s184 = sadd.s32 %s183, 1
      %p187 = scmp.eq.s32.totalorder %s18, 1
      %p188 = scmp.ne.s32.totalorder %s183, %s185
      %p189 = scmp.eq.s32.totalorder %s18, 0
      %p190 = por %p188, %p189
      %p191 = scmp.ne.s32.totalorder %s183, %s185
      %p192 = scmp.eq.s32.totalorder %s23, 1
      %p193 = por %p191, %p192
      %p194 = scmp.ne.s32.totalorder %s185, %s186
      %p195 = scmp.eq.s32.totalorder %s23, 0
      %p196 = por %p194, %p195
      %p197 = scmp.ne.s32.totalorder %s185, %s186
      %p198 = scmp.eq.s32.totalorder %s24, 1
      %p199 = por %p197, %p198
      %p201 = scmp.ne.s32.totalorder %s186, %s200
      %p202 = scmp.eq.s32.totalorder %s24, 0
      %p203 = por %p201, %p202
      %s205 = sadd.s32 %s204, 1
      %p208 = scmp.eq.s32.totalorder %s18, 1
      %p209 = scmp.ne.s32.totalorder %s204, %s206
      %p210 = scmp.eq.s32.totalorder %s18, 0
      %p211 = por %p209, %p210
      %p212 = scmp.ne.s32.totalorder %s204, %s206
      %p213 = scmp.eq.s32.totalorder %s23, 1
      %p214 = por %p212, %p213
      %p215 = scmp.ne.s32.totalorder %s206, %s207
      %p216 = scmp.eq.s32.totalorder %s23, 0
      %p217 = por %p215, %p216
      %p218 = scmp.ne.s32.totalorder %s206, %s207
      %p219 = scmp.eq.s32.totalorder %s24, 1
      %p220 = por %p218, %p219
      %p222 = scmp.ne.s32.totalorder %s207, %s221
      %p223 = scmp.eq.s32.totalorder %s24, 0
      %p224 = por %p222, %p223
      %s226 = sadd.s32 %s225, 1
      %p229 = scmp.eq.s32.totalorder %s18, 1
      %p230 = scmp.ne.s32.totalorder %s225, %s227
      %p231 = scmp.eq.s32.totalorder %s18, 0
      %p232 = por %p230, %p231
      %p233 = scmp.ne.s32.totalorder %s225, %s227
      %p234 = scmp.eq.s32.totalorder %s23, 1
      %p235 = por %p233, %p234
      %p236 = scmp.ne.s32.totalorder %s227, %s228
      %p237 = scmp.eq.s32.totalorder %s23, 0
      %p238 = por %p236, %p237
      %p239 = scmp.ne.s32.totalorder %s227, %s228
      %p240 = scmp.eq.s32.totalorder %s24, 1
      %p241 = por %p239, %p240
      %p243 = scmp.ne.s32.totalorder %s228, %s242
      %p244 = scmp.eq.s32.totalorder %s24, 0
      %p245 = por %p243, %p244
      %s246 = ssub.s32 %s25, %s37
      %p247 = scmp.eq.s32.totalorder %s246, 0
      %s249 = sadd.s32 %s248, 1
      %s250 = scalar_select %p247, %s248, %s249
      %p253 = pneg %p247
      %p254 = scmp.eq.s32.totalorder %s18, 1
      %p255 = por %p253, %p254
      %p256 = scmp.ne.s32.totalorder %s248, %s251
      %p257 = scmp.eq.s32.totalorder %s18, 0
      %p258 = por %p256, %p257
      %p259 = scmp.ne.s32.totalorder %s248, %s251
      %p260 = scmp.eq.s32.totalorder %s23, 1
      %p261 = por %p259, %p260
      %p262 = scmp.ne.s32.totalorder %s251, %s252
      %p263 = scmp.eq.s32.totalorder %s23, 0
      %p264 = por %p262, %p263
      %p265 = scmp.ne.s32.totalorder %s251, %s252
      %p266 = scmp.eq.s32.totalorder %s24, 1
      %p267 = por %p265, %p266
      %p269 = scmp.ne.s32.totalorder %s252, %s268
      %p270 = scmp.eq.s32.totalorder %s24, 0
      %p271 = por %p269, %p270
      %p272 = scmp.le.s32.totalorder 1, %s18
      %p273 = scmp.lt.s32.totalorder %s18, 3
      %p274 = pnand %p272, %p273
      %p275 = pneg %p274
      // Predicated region
      $region9: #{embeddings_net_forward.5} parent=5 // pred_check
        _
      $region10: #{embeddings_net_forward.5} parent=5 // pred_check_branch
        %277 = sbr.rel (%p274) target = $region12
      $region11: #{embeddings_net_forward.5} parent=5 // pred_region
        %s278 = ssub.s32 %s18, 1
        // Predicated region
        $region13: #{embeddings_net_forward.5} parent=11 // pred_check
          %p279 = pneg %p133
        $region14: #{embeddings_net_forward.5} parent=11 // pred_check_branch
          %281 = sbr.rel (%p279) target = $region16
        $region15: #{embeddings_net_forward.5} parent=11 // pred_region
          _
        $region16: #{embeddings_net_forward.5} parent=11 // pred_fallthru
          _
        // Predicated region
        $region17: #{embeddings_net_forward.5} parent=11 // pred_check
          %p282 = pneg %p154
        $region18: #{embeddings_net_forward.5} parent=11 // pred_check_branch
          %284 = sbr.rel (%p282) target = $region20
        $region19: #{embeddings_net_forward.5} parent=11 // pred_region
          _
        $region20: #{embeddings_net_forward.5} parent=11 // pred_fallthru
          _
        // Predicated region
        $region21: #{embeddings_net_forward.5} parent=11 // pred_check
          %p285 = pneg %p175
        $region22: #{embeddings_net_forward.5} parent=11 // pred_check_branch
          %287 = sbr.rel (%p285) target = $region24
        $region23: #{embeddings_net_forward.5} parent=11 // pred_region
          _
        $region24: #{embeddings_net_forward.5} parent=11 // pred_fallthru
          _
        // Predicated region
        $region25: #{embeddings_net_forward.5} parent=11 // pred_check
          %p288 = pneg %p196
        $region26: #{embeddings_net_forward.5} parent=11 // pred_check_branch
          %290 = sbr.rel (%p288) target = $region28
        $region27: #{embeddings_net_forward.5} parent=11 // pred_region
          _
        $region28: #{embeddings_net_forward.5} parent=11 // pred_fallthru
          _
        // Predicated region
        $region29: #{embeddings_net_forward.5} parent=11 // pred_check
          %p291 = pneg %p217
        $region30: #{embeddings_net_forward.5} parent=11 // pred_check_branch
          %293 = sbr.rel (%p291) target = $region32
        $region31: #{embeddings_net_forward.5} parent=11 // pred_region
          _
        $region32: #{embeddings_net_forward.5} parent=11 // pred_fallthru
          _
        // Predicated region
        $region33: #{embeddings_net_forward.5} parent=11 // pred_check
          %p294 = pneg %p238
        $region34: #{embeddings_net_forward.5} parent=11 // pred_check_branch
          %296 = sbr.rel (%p294) target = $region36
        $region35: #{embeddings_net_forward.5} parent=11 // pred_region
          _
        $region36: #{embeddings_net_forward.5} parent=11 // pred_fallthru
          _
      $region12: #{embeddings_net_forward.5} parent=5 // pred_fallthru
        _
      %p297 = scmp.lt.s32.totalorder %s18, 2
      // Predicated region
      $region37: #{embeddings_net_forward.5} parent=5 // pred_check
        %p298 = pneg %p297
      $region38: #{embeddings_net_forward.5} parent=5 // pred_check_branch
        %300 = sbr.rel (%p298) target = $region40
      $region39: #{embeddings_net_forward.5} parent=5 // pred_region
        // Predicated region
        $region41: #{embeddings_net_forward.5} parent=39 // pred_check
          %p301 = pneg %p52
        $region42: #{embeddings_net_forward.5} parent=39 // pred_check_branch
          %303 = sbr.rel (%p301) target = $region44
        $region43: #{embeddings_net_forward.5} parent=39 // pred_region
          %s304 = smul.u32 8, %s26
          %p305 = scmp.lt.s32.totalorder %s25, 1
          %s306 = scalar_select %p305, %s25, 1
          %p307 = scmp.lt.s32.totalorder %s304, 7
          %s308 = scalar_select %p307, %s304, 7
          %s309 = smul.addr %s306, 8
          %s310 = sadd.s32 %s308, %s309
          %s311 = smul.addr %s310, 4
          %s312 = scalar_lea.vmem %s0, %s311
          %s313 = smul.u32 8, %s26
        $region44: #{embeddings_net_forward.5} parent=39 // pred_fallthru
          _
        // Predicated region
        $region45: #{embeddings_net_forward.5} parent=39 // pred_check
          %p314 = pneg %p80
        $region46: #{embeddings_net_forward.5} parent=39 // pred_check_branch
          %316 = sbr.rel (%p314) target = $region48
        $region47: #{embeddings_net_forward.5} parent=39 // pred_region
          %s317 = smul.u32 8, %s26
          %p318 = scmp.lt.s32.totalorder %s25, 1
          %s319 = scalar_select %p318, %s25, 1
          %p320 = scmp.lt.s32.totalorder %s317, 7
          %s321 = scalar_select %p320, %s317, 7
          %s322 = smul.addr %s319, 8
          %s323 = sadd.s32 %s321, %s322
          %s324 = smul.addr %s323, 4
          %s325 = scalar_lea.vmem %s1, %s324
          %s326 = smul.u32 8, %s26
        $region48: #{embeddings_net_forward.5} parent=39 // pred_fallthru
          _
        // Predicated region
        $region49: #{embeddings_net_forward.5} parent=39 // pred_check
          %p327 = pneg %p106
        $region50: #{embeddings_net_forward.5} parent=39 // pred_check_branch
          %329 = sbr.rel (%p327) target = $region52
        $region51: #{embeddings_net_forward.5} parent=39 // pred_region
          %p330 = scmp.lt.s32.totalorder %s25, 1
          %s331 = scalar_select %p330, %s25, 1
          %s332 = scalar_lea.vmem %s2, %s331
        $region52: #{embeddings_net_forward.5} parent=39 // pred_fallthru
          _
      $region40: #{embeddings_net_forward.5} parent=5 // pred_fallthru
        _
      %p333 = scmp.le.s32.totalorder 1, %s18
      %p334 = scmp.lt.s32.totalorder %s18, 3
      %p335 = pnand %p333, %p334
      %p336 = pneg %p335
      // Predicated region
      $region53: #{embeddings_net_forward.5} parent=5 // pred_check
        _
      $region54: #{embeddings_net_forward.5} parent=5 // pred_check_branch
        %338 = sbr.rel (%p335) target = $region56
      $region55: #{embeddings_net_forward.5} parent=5 // pred_region
        %s339 = ssub.s32 %s18, 1
        %s340 = smul.u32 8, %s28
        %p341 = scmp.lt.s32.totalorder %s27, 1
        %s342 = scalar_select %p341, %s27, 1
        %p343 = scmp.lt.s32.totalorder %s340, 7
        %s344 = scalar_select %p343, %s340, 7
        %s345 = smul.addr %s342, 8
        %s346 = sadd.s32 %s344, %s345
        %s347 = smul.addr %s346, 4
        %s348 = scalar_lea.vmem %s0, %s347
        %p349 = pneg %p58
        %p350 = pneg %p55
        %s351 = smul.u32 8, %s28
        %p352 = scmp.lt.s32.totalorder %s27, 1
        %s353 = scalar_select %p352, %s27, 1
        %p354 = scmp.lt.s32.totalorder %s351, 7
        %s355 = scalar_select %p354, %s351, 7
        %s356 = smul.addr %s353, 8
        %s357 = sadd.s32 %s355, %s356
        %s358 = smul.addr %s357, 4
        %s359 = scalar_lea.vmem %s1, %s358
        %p360 = pneg %p86
        %p361 = pneg %p83
        %p362 = scmp.lt.s32.totalorder %s27, 1
        %s363 = scalar_select %p362, %s27, 1
        %s364 = scalar_lea.vmem %s2, %s363
        %p365 = pneg %p112
        %p366 = pneg %p109
        %p367 = pneg %p133
        %p368 = pneg %p130
        %p369 = pneg %p154
        %p370 = pneg %p151
        %p371 = pneg %p175
        %p372 = pneg %p172
        %p373 = pneg %p196
        %p374 = pneg %p193
        %p375 = pneg %p217
        %p376 = pneg %p214
        %p377 = pneg %p238
        %p378 = pneg %p235
        %p379 = pneg %p264
        %p380 = pneg %p261
        %s381 = sand.u32 %s251, 1
        %s382 = scalar_lea.sflag [#allocation4], %s381
        %s383 = sand.u32 %s251, 1
        %s384 = scalar_lea.vmem [#allocation3], %s383
        %s385 = smul.u32 8, %s28
        %p386 = scmp.lt.s32.totalorder %s27, 1
        %s387 = scalar_select %p386, %s27, 1
        %p388 = scmp.lt.s32.totalorder %s385, 7
        %s389 = scalar_select %p388, %s385, 7
        %s390 = smul.addr %s387, 8
        %s391 = sadd.s32 %s389, %s390
        %s392 = smul.addr %s391, 4
        %s393 = scalar_lea.vmem %s0, %s392
        %s394 = smul.u32 8, %s28
        %s395 = smul.u32 8, %s28
        %p396 = scmp.lt.s32.totalorder %s27, 1
        %s397 = scalar_select %p396, %s27, 1
        %p398 = scmp.lt.s32.totalorder %s395, 7
        %s399 = scalar_select %p398, %s395, 7
        %s400 = smul.addr %s397, 8
        %s401 = sadd.s32 %s399, %s400
        %s402 = smul.addr %s401, 4
        %s403 = scalar_lea.vmem %s1, %s402
        %s404 = smul.u32 8, %s28
        %p405 = scmp.lt.s32.totalorder %s27, 1
        %s406 = scalar_select %p405, %s27, 1
        %s407 = scalar_lea.vmem %s2, %s406
        %p409 = scmp.eq.s32.totalorder %s28, 0
        // Predicated region
        $region57: #{embeddings_net_forward.5} parent=55 // pred_check
          %p410 = pneg %p409
        $region58: #{embeddings_net_forward.5} parent=55 // pred_check_branch
          %412 = sbr.rel (%p410) target = $region60
        $region59: #{embeddings_net_forward.5} parent=55 // pred_region
          %413 = vst [vmem:[#allocation2] sm:$0x1] 0.0
        $region60: #{embeddings_net_forward.5} parent=55 // pred_fallthru
          _
        %v414 = vld [vmem:[%s393] sm:$0xf]
        %v415 = vld [vmem:[%s393 + $0x4] sm:$0xf]
        %v416 = vld [vmem:[%s393 + $0x8] sm:$0xf]
        %v417 = vld [vmem:[%s393 + $0xc] sm:$0xf]
        %v418 = vld [vmem:[%s393 + $0x10] sm:$0xf]
        %v419 = vld [vmem:[%s393 + $0x14] sm:$0xf]
        %v420 = vld [vmem:[%s393 + $0x18] sm:$0xf]
        %v421 = vld [vmem:[%s393 + $0x1c] sm:$0xf]
        %v422 = vld [vmem:[%s407] sm:$0x1]
        %v423 = vpack.c.bf16 %v422, %v422
        %v425 = vpack.i.b16 %v423, %v423
        %v427 = vlaneseq
        %v428 = vshrl.u32 %v427, 7
        %v429 = vsub.s32 0, %v428
        %v430 = vrot.slane %v425, %v429
        %v432 = vunpack.c.l.b16 %v430
        %v433 = vpack.c.b16 %v432, %v432
        %v435 = vmul.bf16 %v414, %v433
        %v436 = vmul.bf16 %v415, %v433
        %v437 = vmul.bf16 %v416, %v433
        %v438 = vmul.bf16 %v417, %v433
        %v439 = vmul.bf16 %v418, %v433
        %v440 = vmul.bf16 %v419, %v433
        %v441 = vmul.bf16 %v420, %v433
        %v442 = vmul.bf16 %v421, %v433
        %v443 = vld [vmem:[%s3] sm:$0xf]
        %v444 = vld [vmem:[%s3 + $0x4] sm:$0xf]
        %v445 = vld [vmem:[%s3 + $0x8] sm:$0xf]
        %v446 = vld [vmem:[%s3 + $0xc] sm:$0xf]
        %v447 = vld [vmem:[%s3 + $0x10] sm:$0xf]
        %v448 = vld [vmem:[%s3 + $0x14] sm:$0xf]
        %v449 = vld [vmem:[%s3 + $0x18] sm:$0xf]
        %v450 = vld [vmem:[%s3 + $0x1c] sm:$0xf]
        %v451 = vld [vmem:[%s3 + $0x20] sm:$0xf]
        %v452 = vld [vmem:[%s3 + $0x24] sm:$0xf]
        %v453 = vld [vmem:[%s3 + $0x28] sm:$0xf]
        %v454 = vld [vmem:[%s3 + $0x2c] sm:$0xf]
        %v455 = vld [vmem:[%s3 + $0x30] sm:$0xf]
        %v456 = vld [vmem:[%s3 + $0x34] sm:$0xf]
        %v457 = vld [vmem:[%s3 + $0x38] sm:$0xf]
        %v458 = vld [vmem:[%s3 + $0x3c] sm:$0xf]
        %v459 = vld [vmem:[%s4] sm:$0x1]
        %v461 = vlaneseq
        %v462 = vshrl.u32 %v461, 7
        %v463 = vsub.s32 0, %v462
        %v464 = vrot.slane %v459, %v463
        %v474 = vunpack.c.l.b16 %v435
        %v475 = vunpack.c.l.b16 %v436
        %v476 = vunpack.c.l.b16 %v437
        %v477 = vunpack.c.l.b16 %v438
        %v478 = vunpack.c.l.b16 %v439
        %v479 = vunpack.c.l.b16 %v440
        %v480 = vunpack.c.l.b16 %v441
        %v481 = vunpack.c.l.b16 %v442
        %v482 = vpack.c.b16 %v475, %v474
        %v483 = vpack.c.b16 %v477, %v476
        %v484 = vpack.c.b16 %v479, %v478
        %v485 = vpack.c.b16 %v481, %v480
        %v506 = vunpack.c.l.b16 %v443
        %v507 = vunpack.c.l.b16 %v444
        %v508 = vunpack.c.l.b16 %v445
        %v509 = vunpack.c.l.b16 %v446
        %v510 = vunpack.c.l.b16 %v447
        %v511 = vunpack.c.l.b16 %v448
        %v512 = vunpack.c.l.b16 %v449
        %v513 = vunpack.c.l.b16 %v450
        %v514 = vunpack.c.l.b16 %v451
        %v515 = vunpack.c.l.b16 %v452
        %v516 = vunpack.c.l.b16 %v453
        %v517 = vunpack.c.l.b16 %v454
        %v518 = vunpack.c.l.b16 %v455
        %v519 = vunpack.c.l.b16 %v456
        %v520 = vunpack.c.l.b16 %v457
        %v521 = vunpack.c.l.b16 %v458
        %v522 = vpack.c.b16 %v507, %v506
        %v523 = vpack.c.b16 %v509, %v508
        %v524 = vpack.c.b16 %v511, %v510
        %v525 = vpack.c.b16 %v513, %v512
        %v526 = vpack.c.b16 %v515, %v514
        %v527 = vpack.c.b16 %v517, %v516
        %v528 = vpack.c.b16 %v519, %v518
        %v529 = vpack.c.b16 %v521, %v520
        %538 = vmatprep.subr.bf16.mxu0 0
        %539 = vmatpush1.bf16.msra.mxu0 %v529
        %540 = vmatprep.subr.bf16.mxu0 0
        %541 = vmatpush1.bf16.msra.mxu0 %v528
        %542 = vmatprep.subr.bf16.mxu0 0
        %543 = vmatpush1.bf16.msra.mxu0 %v527
        %544 = vmatprep.subr.bf16.mxu0 0
        %545 = vmatpush1.bf16.msra.mxu0 %v526
        %546 = vmatprep.subr.bf16.mxu0 0
        %547 = vmatpush1.bf16.msra.mxu0 %v525
        %548 = vmatprep.subr.bf16.mxu0 0
        %549 = vmatpush1.bf16.msra.mxu0 %v524
        %550 = vmatprep.subr.bf16.mxu0 0
        %551 = vmatpush1.bf16.msra.mxu0 %v523
        %552 = vmatprep.subr.bf16.mxu0 0
        %553 = vmatpush1.bf16.msra.mxu0 %v522
        %554 = vmatprep.subr.bf16.mxu0 0
        %555 = vmatpush2.bf16.msra.mxu0 0
        %556 = vmatprep.subr.bf16.mxu0 0
        %557 = vmatpush2.bf16.msra.mxu0 0
        %558 = vmatprep.subr.bf16.mxu0 0
        %559 = vmatpush2.bf16.msra.mxu0 0
        %560 = vmatprep.subr.bf16.mxu0 0
        %561 = vmatpush2.bf16.msra.mxu0 0
        %562 = vmatprep.subr.bf16.mxu0 0
        %563 = vmatpush2.bf16.msra.mxu0 0
        %564 = vmatprep.subr.bf16.mxu0 0
        %565 = vmatpush2.bf16.msra.mxu0 0
        %566 = vmatprep.subr.bf16.mxu0 0
        %567 = vmatpush2.bf16.msra.mxu0 0
        %568 = vmatprep.subr.bf16.mxu0 0
        %569 = vmatpush2.bf16.msra.mxu0 0
        %570 = vmatprep.mubr.bf16.mxu0 0
        %571 = vmatmul.mubr.bf16.gmra.mxu0 %v482
        %v572 = vpop.f32.mrf.mxu0
        %v573 = vadd.f32 %v464, %v572
        %v574 = vpop.f32.mrf.mxu0
        %v575 = vpop.f32.mrf.mxu0
        %v576 = vadd.f32 %v464, %v575
        %v577 = vpop.f32.mrf.mxu0
        %578 = vmatprep.mubr.bf16.mxu0 0
        %579 = vmatmul.mubr.bf16.gmra.mxu0 %v483
        %v580 = vpop.f32.mrf.mxu0
        %v581 = vadd.f32 %v464, %v580
        %v582 = vpop.f32.mrf.mxu0
        %v583 = vpop.f32.mrf.mxu0
        %v584 = vadd.f32 %v464, %v583
        %v585 = vpop.f32.mrf.mxu0
        %586 = vmatprep.mubr.bf16.mxu0 0
        %587 = vmatmul.mubr.bf16.gmra.mxu0 %v484
        %v588 = vpop.f32.mrf.mxu0
        %v589 = vadd.f32 %v464, %v588
        %v590 = vpop.f32.mrf.mxu0
        %v591 = vpop.f32.mrf.mxu0
        %v592 = vadd.f32 %v464, %v591
        %v593 = vpop.f32.mrf.mxu0
        %594 = vmatprep.mubr.bf16.mxu0 0
        %595 = vmatmul.mubr.bf16.gmra.mxu0 %v485
        %v596 = vpop.f32.mrf.mxu0
        %v597 = vadd.f32 %v464, %v596
        %v598 = vpop.f32.mrf.mxu0
        %v599 = vpop.f32.mrf.mxu0
        %v600 = vadd.f32 %v464, %v599
        %v601 = vpop.f32.mrf.mxu0
        %602 = vdwg.mxu0
        %v603 = vld [vmem:[%s403] sm:$0xf]
        %v604 = vld [vmem:[%s403 + $0x4] sm:$0xf]
        %v605 = vld [vmem:[%s403 + $0x8] sm:$0xf]
        %v606 = vld [vmem:[%s403 + $0xc] sm:$0xf]
        %v607 = vld [vmem:[%s403 + $0x10] sm:$0xf]
        %v608 = vld [vmem:[%s403 + $0x14] sm:$0xf]
        %v609 = vld [vmem:[%s403 + $0x18] sm:$0xf]
        %v610 = vld [vmem:[%s403 + $0x1c] sm:$0xf]
        %v611 = vunpack.c.l.bf16 %v603
        %v612 = vunpack.c.l.bf16 %v604
        %v613 = vunpack.c.l.bf16 %v605
        %v614 = vunpack.c.l.bf16 %v606
        %v615 = vunpack.c.l.bf16 %v607
        %v616 = vunpack.c.l.bf16 %v608
        %v617 = vunpack.c.l.bf16 %v609
        %v618 = vunpack.c.l.bf16 %v610
        %v619 = vadd.f32 %v573, %v611
        %v620 = vadd.f32 %v576, %v612
        %v621 = vadd.f32 %v581, %v613
        %v622 = vadd.f32 %v584, %v614
        %v623 = vadd.f32 %v589, %v615
        %v624 = vadd.f32 %v592, %v616
        %v625 = vadd.f32 %v597, %v617
        %v626 = vadd.f32 %v600, %v618
        %v627 = vpack.c.bf16 %v620, %v619
        %v628 = vpack.c.bf16 %v622, %v621
        %v629 = vpack.c.bf16 %v624, %v623
        %v630 = vpack.c.bf16 %v626, %v625
        %v631 = vld [vmem:[%s5] sm:$0xf]
        %v632 = vld [vmem:[%s5 + $0x4] sm:$0xf]
        %v633 = vld [vmem:[%s5 + $0x8] sm:$0xf]
        %v634 = vld [vmem:[%s5 + $0xc] sm:$0xf]
        %v635 = vld [vmem:[%s6] sm:$0x1]
        %v637 = vlaneseq
        %v638 = vshrl.u32 %v637, 7
        %v639 = vsub.s32 0, %v638
        %v640 = vrot.slane %v635, %v639
        %v646 = vunpack.c.l.b16 %v631
        %v647 = vunpack.c.l.b16 %v632
        %v648 = vunpack.c.l.b16 %v633
        %v649 = vunpack.c.l.b16 %v634
        %v650 = vpack.c.b16 %v647, %v646
        %v651 = vpack.c.b16 %v649, %v648
        %vm654 = vcmask 261120
        %v656 = vsel %vm654, %v627, 0
        %v659 = vsel %vm654, %v628, 0
        %v662 = vsel %vm654, %v629, 0
        %v665 = vsel %vm654, %v630, 0
        %667 = vmatprep.subr.bf16.mxu0 0
        %668 = vmatpush1.bf16.msra.mxu0 0
        %669 = vmatprep.subr.bf16.mxu0 0
        %670 = vmatpush1.bf16.msra.mxu0 0
        %671 = vmatprep.subr.bf16.mxu0 0
        %672 = vmatpush1.bf16.msra.mxu0 0
        %673 = vmatprep.subr.bf16.mxu0 0
        %674 = vmatpush1.bf16.msra.mxu0 0
        %675 = vmatprep.subr.bf16.mxu0 0
        %676 = vmatpush1.bf16.msra.mxu0 0
        %677 = vmatprep.subr.bf16.mxu0 0
        %678 = vmatpush1.bf16.msra.mxu0 0
        %679 = vmatprep.subr.bf16.mxu0 0
        %680 = vmatpush1.bf16.msra.mxu0 %v651
        %681 = vmatprep.subr.bf16.mxu0 0
        %682 = vmatpush1.bf16.msra.mxu0 %v650
        %683 = vmatprep.subr.bf16.mxu0 0
        %684 = vmatpush2.bf16.msra.mxu0 0
        %685 = vmatprep.subr.bf16.mxu0 0
        %686 = vmatpush2.bf16.msra.mxu0 0
        %687 = vmatprep.subr.bf16.mxu0 0
        %688 = vmatpush2.bf16.msra.mxu0 0
        %689 = vmatprep.subr.bf16.mxu0 0
        %690 = vmatpush2.bf16.msra.mxu0 0
        %691 = vmatprep.subr.bf16.mxu0 0
        %692 = vmatpush2.bf16.msra.mxu0 0
        %693 = vmatprep.subr.bf16.mxu0 0
        %694 = vmatpush2.bf16.msra.mxu0 0
        %695 = vmatprep.subr.bf16.mxu0 0
        %696 = vmatpush2.bf16.msra.mxu0 0
        %697 = vmatprep.subr.bf16.mxu0 0
        %698 = vmatpush2.bf16.msra.mxu0 0
        %699 = vmatprep.mubr.bf16.mxu0 0
        %700 = vmatmul.mubr.bf16.gmra.mxu0 %v656
        %v701 = vpop.f32.mrf.mxu0
        %v702 = vadd.f32 %v640, %v701
        %v703 = vpop.f32.mrf.mxu0
        %v704 = vpop.f32.mrf.mxu0
        %v705 = vadd.f32 %v640, %v704
        %v706 = vpop.f32.mrf.mxu0
        %707 = vmatprep.mubr.bf16.mxu0 0
        %708 = vmatmul.mubr.bf16.gmra.mxu0 %v659
        %v709 = vpop.f32.mrf.mxu0
        %v710 = vadd.f32 %v640, %v709
        %v711 = vpop.f32.mrf.mxu0
        %v712 = vpop.f32.mrf.mxu0
        %v713 = vadd.f32 %v640, %v712
        %v714 = vpop.f32.mrf.mxu0
        %715 = vmatprep.mubr.bf16.mxu0 0
        %716 = vmatmul.mubr.bf16.gmra.mxu0 %v662
        %v717 = vpop.f32.mrf.mxu0
        %v718 = vadd.f32 %v640, %v717
        %v719 = vpop.f32.mrf.mxu0
        %v720 = vpop.f32.mrf.mxu0
        %v721 = vadd.f32 %v640, %v720
        %v722 = vpop.f32.mrf.mxu0
        %723 = vmatprep.mubr.bf16.mxu0 0
        %724 = vmatmul.mubr.bf16.gmra.mxu0 %v665
        %v725 = vpop.f32.mrf.mxu0
        %v726 = vadd.f32 %v640, %v725
        %v727 = vpop.f32.mrf.mxu0
        %v728 = vpop.f32.mrf.mxu0
        %v729 = vadd.f32 %v640, %v728
        %v730 = vpop.f32.mrf.mxu0
        %731 = vdwg.mxu0
        %v732 = vxor.u32 %v702, 2147483648
        %v733 = vxor.u32 %v705, 2147483648
        %v734 = vxor.u32 %v710, 2147483648
        %v735 = vxor.u32 %v713, 2147483648
        %v736 = vxor.u32 %v718, 2147483648
        %v737 = vxor.u32 %v721, 2147483648
        %v738 = vxor.u32 %v726, 2147483648
        %v739 = vxor.u32 %v729, 2147483648
        %v740 = vmul.f32 %v732, 1.442695
        %v741 = vpow.pop %v740
        %v742 = vmul.f32 %v733, 1.442695
        %v743 = vpow.pop %v742
        %v744 = vmul.f32 %v734, 1.442695
        %v745 = vpow.pop %v744
        %v746 = vmul.f32 %v735, 1.442695
        %v747 = vpow.pop %v746
        %v748 = vmul.f32 %v736, 1.442695
        %v749 = vpow.pop %v748
        %v750 = vmul.f32 %v737, 1.442695
        %v751 = vpow.pop %v750
        %v752 = vmul.f32 %v738, 1.442695
        %v753 = vpow.pop %v752
        %v754 = vmul.f32 %v739, 1.442695
        %v755 = vpow.pop %v754
        %v756 = vadd.f32 %v741, 1.0
        %v757 = vadd.f32 %v743, 1.0
        %v758 = vadd.f32 %v745, 1.0
        %v759 = vadd.f32 %v747, 1.0
        %v760 = vadd.f32 %v749, 1.0
        %v761 = vadd.f32 %v751, 1.0
        %v762 = vadd.f32 %v753, 1.0
        %v763 = vadd.f32 %v755, 1.0
        %v764 = vrcp.pop %v756
        %v765 = vmul.f32 1.0, %v764
        %v766 = vrcp.pop %v757
        %v767 = vmul.f32 1.0, %v766
        %v768 = vrcp.pop %v758
        %v769 = vmul.f32 1.0, %v768
        %v770 = vrcp.pop %v759
        %v771 = vmul.f32 1.0, %v770
        %v772 = vrcp.pop %v760
        %v773 = vmul.f32 1.0, %v772
        %v774 = vrcp.pop %v761
        %v775 = vmul.f32 1.0, %v774
        %v776 = vrcp.pop %v762
        %v777 = vmul.f32 1.0, %v776
        %v778 = vrcp.pop %v763
        %v779 = vmul.f32 1.0, %v778
        %v780 = vmul.f32 %v702, %v765
        %v781 = vmul.f32 %v705, %v767
        %v782 = vmul.f32 %v710, %v769
        %v783 = vmul.f32 %v713, %v771
        %v784 = vmul.f32 %v718, %v773
        %v785 = vmul.f32 %v721, %v775
        %v786 = vmul.f32 %v726, %v777
        %v787 = vmul.f32 %v729, %v779
        %v788 = vld [vmem:[#allocation2] sm:$0x1]
        %v789 = vadd.f32 %v780, %v781
        %v790 = vadd.f32 %v789, %v782
        %v791 = vadd.f32 %v790, %v783
        %v792 = vadd.f32 %v791, %v784
        %v793 = vadd.f32 %v792, %v785
        %v794 = vadd.f32 %v793, %v786
        %v795 = vadd.f32 %v794, %v787
        %v796 = vrot.slane %v795, 4
        %v797 = vadd.f32 %v795, %v796
        %v798 = vrot.slane %v797, 2
        %v799 = vadd.f32 %v797, %v798
        %v800 = vrot.slane %v799, 1
        %v801 = vadd.f32 %v799, %v800
        %v802 = vadd.f32 %v788, %v801
        %803 = vst [vmem:[#allocation2] sm:$0x1] %v802
        // Predicated region
        $region61: #{embeddings_net_forward.5} parent=55 // pred_check
          %p804 = pneg %p409
        $region62: #{embeddings_net_forward.5} parent=55 // pred_check_branch
          %806 = sbr.rel (%p804) target = $region64
        $region63: #{embeddings_net_forward.5} parent=55 // pred_region
          %v807 = vld [vmem:[#allocation2] sm:$0x1]
          %v808 = vmul.f32 %v807, 0.015625
          %v809 = vpack.c.bf16 %v808, %v808
          %v810 = vld [vmem:[%s7] sm:$0xf]
          %v811 = vld [vmem:[%s7 + $0x4] sm:$0xf]
          %v812 = vld [vmem:[%s7 + $0x8] sm:$0xf]
          %v813 = vld [vmem:[%s7 + $0xc] sm:$0xf]
          %v814 = vld [vmem:[%s7 + $0x10] sm:$0xf]
          %v815 = vld [vmem:[%s7 + $0x14] sm:$0xf]
          %v816 = vld [vmem:[%s7 + $0x18] sm:$0xf]
          %v817 = vld [vmem:[%s7 + $0x1c] sm:$0xf]
          %v818 = vld [vmem:[%s7 + $0x20] sm:$0xf]
          %v819 = vld [vmem:[%s7 + $0x24] sm:$0xf]
          %v820 = vld [vmem:[%s7 + $0x28] sm:$0xf]
          %v821 = vld [vmem:[%s7 + $0x2c] sm:$0xf]
          %v822 = vld [vmem:[%s7 + $0x30] sm:$0xf]
          %v823 = vld [vmem:[%s7 + $0x34] sm:$0xf]
          %v824 = vld [vmem:[%s7 + $0x38] sm:$0xf]
          %v825 = vld [vmem:[%s7 + $0x3c] sm:$0xf]
          %v826 = vld [vmem:[%s8] sm:$0x1]
          %v843 = vunpack.c.l.b16 %v810
          %v844 = vunpack.c.l.b16 %v811
          %v845 = vunpack.c.l.b16 %v812
          %v846 = vunpack.c.l.b16 %v813
          %v847 = vunpack.c.l.b16 %v814
          %v848 = vunpack.c.l.b16 %v815
          %v849 = vunpack.c.l.b16 %v816
          %v850 = vunpack.c.l.b16 %v817
          %v851 = vunpack.c.l.b16 %v818
          %v852 = vunpack.c.l.b16 %v819
          %v853 = vunpack.c.l.b16 %v820
          %v854 = vunpack.c.l.b16 %v821
          %v855 = vunpack.c.l.b16 %v822
          %v856 = vunpack.c.l.b16 %v823
          %v857 = vunpack.c.l.b16 %v824
          %v858 = vunpack.c.l.b16 %v825
          %v859 = vpack.c.b16 %v844, %v843
          %v860 = vpack.c.b16 %v846, %v845
          %v861 = vpack.c.b16 %v848, %v847
          %v862 = vpack.c.b16 %v850, %v849
          %v863 = vpack.c.b16 %v852, %v851
          %v864 = vpack.c.b16 %v854, %v853
          %v865 = vpack.c.b16 %v856, %v855
          %v866 = vpack.c.b16 %v858, %v857
          %875 = vmatprep.subr.bf16.mxu0 0
          %876 = vmatpush1.bf16.msra.mxu0 %v866
          %877 = vmatprep.subr.bf16.mxu0 0
          %878 = vmatpush1.bf16.msra.mxu0 %v865
          %879 = vmatprep.subr.bf16.mxu0 0
          %880 = vmatpush1.bf16.msra.mxu0 %v864
          %881 = vmatprep.subr.bf16.mxu0 0
          %882 = vmatpush1.bf16.msra.mxu0 %v863
          %883 = vmatprep.subr.bf16.mxu0 0
          %884 = vmatpush1.bf16.msra.mxu0 %v862
          %885 = vmatprep.subr.bf16.mxu0 0
          %886 = vmatpush1.bf16.msra.mxu0 %v861
          %887 = vmatprep.subr.bf16.mxu0 0
          %888 = vmatpush1.bf16.msra.mxu0 %v860
          %889 = vmatprep.subr.bf16.mxu0 0
          %890 = vmatpush1.bf16.msra.mxu0 %v859
          %891 = vmatprep.subr.bf16.mxu0 0
          %892 = vmatpush2.bf16.msra.mxu0 0
          %893 = vmatprep.subr.bf16.mxu0 0
          %894 = vmatpush2.bf16.msra.mxu0 0
          %895 = vmatprep.subr.bf16.mxu0 0
          %896 = vmatpush2.bf16.msra.mxu0 0
          %897 = vmatprep.subr.bf16.mxu0 0
          %898 = vmatpush2.bf16.msra.mxu0 0
          %899 = vmatprep.subr.bf16.mxu0 0
          %900 = vmatpush2.bf16.msra.mxu0 0
          %901 = vmatprep.subr.bf16.mxu0 0
          %902 = vmatpush2.bf16.msra.mxu0 0
          %903 = vmatprep.subr.bf16.mxu0 0
          %904 = vmatpush2.bf16.msra.mxu0 0
          %905 = vmatprep.subr.bf16.mxu0 0
          %906 = vmatpush2.bf16.msra.mxu0 0
          %907 = vmatprep.mubr.bf16.mxu0 0
          %908 = vmatmul.mubr.bf16.gmra.mxu0 %v809
          %v909 = vpop.f32.mrf.mxu0
          %v910 = vadd.f32 %v826, %v909
          %v911 = vpop.f32.mrf.mxu0
          %v912 = vpop.f32.mrf.mxu0
          %v913 = vpop.f32.mrf.mxu0
          %914 = vdwg.mxu0
          %915 = vst [vmem:[%s384] sm:$0x1] %v910
        $region64: #{embeddings_net_forward.5} parent=55 // pred_fallthru
          _
        %s916 = sand.u32 %s251, 1
        %s917 = scalar_lea.sflag [#allocation4], %s916
        %s918 = sand.u32 %s251, 1
        %s919 = scalar_lea.vmem [#allocation3], %s918
        // Predicated region
        $region65: #{embeddings_net_forward.5} parent=55 // pred_check
          %p920 = pneg %p261
        $region66: #{embeddings_net_forward.5} parent=55 // pred_check_branch
          %922 = sbr.rel (%p920) target = $region68
        $region67: #{embeddings_net_forward.5} parent=55 // pred_region
          %s924 = ssub.s32 16, 16
          %925 = vsyncadd %s917, %s924
          %s926 = smul.addr %s27, 16
          %s927 = scalar_lea.hbm %s9, %s926
          %s929 = sshll.u32 %s919, 4
          %s930 = int_to_ptr.vmem [resolvable:$true] %s929
          %932 = dma.vmem_to_hbm [thread:$0]  %s930, 16, %s927, %s917
        $region68: #{embeddings_net_forward.5} parent=55 // pred_fallthru
          _
      $region56: #{embeddings_net_forward.5} parent=5 // pred_fallthru
        _
      %p933 = scmp.le.s32.totalorder 2, %s18
      // Predicated region
      $region69: #{embeddings_net_forward.5} parent=5 // pred_check
        %p934 = pneg %p933
      $region70: #{embeddings_net_forward.5} parent=5 // pred_check_branch
        %936 = sbr.rel (%p934) target = $region72
      $region71: #{embeddings_net_forward.5} parent=5 // pred_region
        %s937 = ssub.s32 %s18, 2
        // Predicated region
        $region73: #{embeddings_net_forward.5} parent=71 // pred_check
          %p938 = pneg %p267
        $region74: #{embeddings_net_forward.5} parent=71 // pred_check_branch
          %940 = sbr.rel (%p938) target = $region76
        $region75: #{embeddings_net_forward.5} parent=71 // pred_region
          %s941 = sand.u32 %s252, 1
          %s942 = scalar_lea.sflag [#allocation4], %s941
          %s943 = sand.u32 %s252, 1
          %s944 = scalar_lea.vmem [#allocation3], %s943
          %945 = dma.done %s942, 16
        $region76: #{embeddings_net_forward.5} parent=71 // pred_fallthru
          _
      $region72: #{embeddings_net_forward.5} parent=5 // pred_fallthru
        _
    $region6: #{embeddings_net_forward.5} parent=1 // loop_footer
      %s22 = sadd.s32 1, %s18
    $region7: #{embeddings_net_forward.5} parent=1 // loop_footer_branch
      %17 = sbr.rel target = $region3
    $region8: #{embeddings_net_forward.5} parent=1 // loop_exit
      _
    %946 = vsyncpa [#allocation4], 1
    %s947 = scalar_lea.sflag [#allocation4], 1
    %948 = vsyncpa %s947, 1

// kernel: embeddings_net_forward.4
$region0: #{embeddings_net_forward.4}
  #allocation0 [shape = 'u32[]', space=smem, size = 0x4, offset = 0x4, fixed_abs, tag = 'smem constant byte address 0x4 - core index']
  #allocation1 [shape = 'u32[144,128]{1,0:T(1,128)}', space=vmem, size = 0x12000, scoped, tag = 'internal scratch']
  #allocation2 [shape = 'bf16[10,10,128]{2,1,0:T(8,128)(2,1)}', space=vmem, size = 0xa000, scoped, tag = 'scratch operand']
  %s0 = inlined_call_operand.vmem [shape: bf16[2,8,8,128], index: 0, kind: input, shape index: {}]
  %s1 = inlined_call_operand.vmem [shape: f32[9,1,1,128], index: 1, kind: input, shape index: {}]
  %s2 = inlined_call_operand.vmem [shape: f32[1,1,128], index: 2, kind: input, shape index: {}]
  %s3 = inlined_call_operand.vmem [shape: bf16[128,8], index: 3, kind: input, shape index: {}]
  %s4 = inlined_call_operand.vmem [shape: f32[1,8], index: 4, kind: input, shape index: {}]
  %s5 = inlined_call_operand.vmem [shape: bf16[8,128], index: 5, kind: input, shape index: {}]
  %s6 = inlined_call_operand.vmem [shape: f32[1,128], index: 6, kind: input, shape index: {}]
  %s7 = inlined_call_operand.vmem [shape: bf16[2,8,8,128], index: 7, kind: output, shape index: {0}]
  %s8 = inlined_call_operand.vmem [shape: f32[2,1,128], index: 8, kind: output, shape index: {1}]
  %9 = xla_tuple %s7, %s8
  %s10 = sld [smem:[#allocation0]]
  $region69: #{embeddings_net_forward.4} parent=0
    _
  %s12 = ssub.s32 1, %s10
  %s13 = scalar_select 0, %s12, %s10
  loop: start=0, step=1, limit=4
  $region2: #{embeddings_net_forward.4} parent=0 // loop_pre_header
    _
  $region3: #{embeddings_net_forward.4} parent=0 // loop_header
    %s15 = sphi 0, %s19
    %p16 = scmp.ge.s32.totalorder %s15, 4
    %s25 = sphi 0, %s27
    %s28 = sphi 0, %s25
    %s29 = sphi 0, %s28
    %s45 = sphi 0, %s29
    %s49 = sphi 0, %s49
    %s51 = sphi 0, %s49
    %s52 = sphi 0, %s51
    %s66 = sphi 0, %s52
    %s70 = sphi 0, %s70
    %s72 = sphi 0, %s70
    %s73 = sphi 0, %s72
    %s87 = sphi 0, %s73
    %s91 = sphi 0, %s91
    %s93 = sphi 0, %s91
    %s94 = sphi 0, %s93
    %s108 = sphi 0, %s94
    %s112 = sphi 0, %s112
    %s114 = sphi 0, %s112
    %s115 = sphi 0, %s114
    %s129 = sphi 0, %s115
    %s133 = sphi 0, %s133
    %s135 = sphi 0, %s133
    %s136 = sphi 0, %s135
    %s150 = sphi 0, %s136
    %s154 = sphi 0, %s154
    %s156 = sphi 0, %s154
    %s157 = sphi 0, %s156
    %s171 = sphi 0, %s157
    %s177 = sphi 0, %s179
    %s180 = sphi 0, %s177
    %s181 = sphi 0, %s180
    %s197 = sphi 0, %s181
    %s203 = sphi 0, %s205
    %s206 = sphi 0, %s203
    %s207 = sphi 0, %s206
    %s223 = sphi 0, %s207
  $region4: #{embeddings_net_forward.4} parent=0 // loop_header_branch
    %18 = sbr.rel (%p16) target = $region8
  $region5: #{embeddings_net_forward.4} parent=0 // loop_body
    %s20 = ssub.s32 %s15, 1
    %s21 = ssub.s32 %s15, 2
    %s22 = sadd.s32 %s15, 1
    %s23 = ssub.s32 %s15, %s22
    %p24 = scmp.eq.s32.totalorder %s23, 0
    %s26 = sadd.s32 %s25, 1
    %s27 = scalar_select %p24, %s25, %s26
    %p30 = pneg %p24
    %p31 = scmp.eq.s32.totalorder %s15, 1
    %p32 = por %p30, %p31
    %p33 = scmp.ne.s32.totalorder %s25, %s28
    %p34 = scmp.eq.s32.totalorder %s15, 0
    %p35 = por %p33, %p34
    %p36 = scmp.ne.s32.totalorder %s25, %s28
    %p37 = scmp.eq.s32.totalorder %s20, 1
    %p38 = por %p36, %p37
    %p39 = scmp.ne.s32.totalorder %s28, %s29
    %p40 = scmp.eq.s32.totalorder %s20, 0
    %p41 = por %p39, %p40
    %p42 = scmp.ne.s32.totalorder %s28, %s29
    %p43 = scmp.eq.s32.totalorder %s21, 1
    %p44 = por %p42, %p43
    %p46 = scmp.ne.s32.totalorder %s29, %s45
    %p47 = scmp.eq.s32.totalorder %s21, 0
    %p48 = por %p46, %p47
    %s50 = sadd.s32 %s49, 1
    %p53 = scmp.eq.s32.totalorder %s15, 1
    %p54 = scmp.ne.s32.totalorder %s49, %s51
    %p55 = scmp.eq.s32.totalorder %s15, 0
    %p56 = por %p54, %p55
    %p57 = scmp.ne.s32.totalorder %s49, %s51
    %p58 = scmp.eq.s32.totalorder %s20, 1
    %p59 = por %p57, %p58
    %p60 = scmp.ne.s32.totalorder %s51, %s52
    %p61 = scmp.eq.s32.totalorder %s20, 0
    %p62 = por %p60, %p61
    %p63 = scmp.ne.s32.totalorder %s51, %s52
    %p64 = scmp.eq.s32.totalorder %s21, 1
    %p65 = por %p63, %p64
    %p67 = scmp.ne.s32.totalorder %s52, %s66
    %p68 = scmp.eq.s32.totalorder %s21, 0
    %p69 = por %p67, %p68
    %s71 = sadd.s32 %s70, 1
    %p74 = scmp.eq.s32.totalorder %s15, 1
    %p75 = scmp.ne.s32.totalorder %s70, %s72
    %p76 = scmp.eq.s32.totalorder %s15, 0
    %p77 = por %p75, %p76
    %p78 = scmp.ne.s32.totalorder %s70, %s72
    %p79 = scmp.eq.s32.totalorder %s20, 1
    %p80 = por %p78, %p79
    %p81 = scmp.ne.s32.totalorder %s72, %s73
    %p82 = scmp.eq.s32.totalorder %s20, 0
    %p83 = por %p81, %p82
    %p84 = scmp.ne.s32.totalorder %s72, %s73
    %p85 = scmp.eq.s32.totalorder %s21, 1
    %p86 = por %p84, %p85
    %p88 = scmp.ne.s32.totalorder %s73, %s87
    %p89 = scmp.eq.s32.totalorder %s21, 0
    %p90 = por %p88, %p89
    %s92 = sadd.s32 %s91, 1
    %p95 = scmp.eq.s32.totalorder %s15, 1
    %p96 = scmp.ne.s32.totalorder %s91, %s93
    %p97 = scmp.eq.s32.totalorder %s15, 0
    %p98 = por %p96, %p97
    %p99 = scmp.ne.s32.totalorder %s91, %s93
    %p100 = scmp.eq.s32.totalorder %s20, 1
    %p101 = por %p99, %p100
    %p102 = scmp.ne.s32.totalorder %s93, %s94
    %p103 = scmp.eq.s32.totalorder %s20, 0
    %p104 = por %p102, %p103
    %p105 = scmp.ne.s32.totalorder %s93, %s94
    %p106 = scmp.eq.s32.totalorder %s21, 1
    %p107 = por %p105, %p106
    %p109 = scmp.ne.s32.totalorder %s94, %s108
    %p110 = scmp.eq.s32.totalorder %s21, 0
    %p111 = por %p109, %p110
    %s113 = sadd.s32 %s112, 1
    %p116 = scmp.eq.s32.totalorder %s15, 1
    %p117 = scmp.ne.s32.totalorder %s112, %s114
    %p118 = scmp.eq.s32.totalorder %s15, 0
    %p119 = por %p117, %p118
    %p120 = scmp.ne.s32.totalorder %s112, %s114
    %p121 = scmp.eq.s32.totalorder %s20, 1
    %p122 = por %p120, %p121
    %p123 = scmp.ne.s32.totalorder %s114, %s115
    %p124 = scmp.eq.s32.totalorder %s20, 0
    %p125 = por %p123, %p124
    %p126 = scmp.ne.s32.totalorder %s114, %s115
    %p127 = scmp.eq.s32.totalorder %s21, 1
    %p128 = por %p126, %p127
    %p130 = scmp.ne.s32.totalorder %s115, %s129
    %p131 = scmp.eq.s32.totalorder %s21, 0
    %p132 = por %p130, %p131
    %s134 = sadd.s32 %s133, 1
    %p137 = scmp.eq.s32.totalorder %s15, 1
    %p138 = scmp.ne.s32.totalorder %s133, %s135
    %p139 = scmp.eq.s32.totalorder %s15, 0
    %p140 = por %p138, %p139
    %p141 = scmp.ne.s32.totalorder %s133, %s135
    %p142 = scmp.eq.s32.totalorder %s20, 1
    %p143 = por %p141, %p142
    %p144 = scmp.ne.s32.totalorder %s135, %s136
    %p145 = scmp.eq.s32.totalorder %s20, 0
    %p146 = por %p144, %p145
    %p147 = scmp.ne.s32.totalorder %s135, %s136
    %p148 = scmp.eq.s32.totalorder %s21, 1
    %p149 = por %p147, %p148
    %p151 = scmp.ne.s32.totalorder %s136, %s150
    %p152 = scmp.eq.s32.totalorder %s21, 0
    %p153 = por %p151, %p152
    %s155 = sadd.s32 %s154, 1
    %p158 = scmp.eq.s32.totalorder %s15, 1
    %p159 = scmp.ne.s32.totalorder %s154, %s156
    %p160 = scmp.eq.s32.totalorder %s15, 0
    %p161 = por %p159, %p160
    %p162 = scmp.ne.s32.totalorder %s154, %s156
    %p163 = scmp.eq.s32.totalorder %s20, 1
    %p164 = por %p162, %p163
    %p165 = scmp.ne.s32.totalorder %s156, %s157
    %p166 = scmp.eq.s32.totalorder %s20, 0
    %p167 = por %p165, %p166
    %p168 = scmp.ne.s32.totalorder %s156, %s157
    %p169 = scmp.eq.s32.totalorder %s21, 1
    %p170 = por %p168, %p169
    %p172 = scmp.ne.s32.totalorder %s157, %s171
    %p173 = scmp.eq.s32.totalorder %s21, 0
    %p174 = por %p172, %p173
    %s175 = ssub.s32 %s15, %s22
    %p176 = scmp.eq.s32.totalorder %s175, 0
    %s178 = sadd.s32 %s177, 1
    %s179 = scalar_select %p176, %s177, %s178
    %p182 = pneg %p176
    %p183 = scmp.eq.s32.totalorder %s15, 1
    %p184 = por %p182, %p183
    %p185 = scmp.ne.s32.totalorder %s177, %s180
    %p186 = scmp.eq.s32.totalorder %s15, 0
    %p187 = por %p185, %p186
    %p188 = scmp.ne.s32.totalorder %s177, %s180
    %p189 = scmp.eq.s32.totalorder %s20, 1
    %p190 = por %p188, %p189
    %p191 = scmp.ne.s32.totalorder %s180, %s181
    %p192 = scmp.eq.s32.totalorder %s20, 0
    %p193 = por %p191, %p192
    %p194 = scmp.ne.s32.totalorder %s180, %s181
    %p195 = scmp.eq.s32.totalorder %s21, 1
    %p196 = por %p194, %p195
    %p198 = scmp.ne.s32.totalorder %s181, %s197
    %p199 = scmp.eq.s32.totalorder %s21, 0
    %p200 = por %p198, %p199
    %s201 = ssub.s32 %s15, %s22
    %p202 = scmp.eq.s32.totalorder %s201, 0
    %s204 = sadd.s32 %s203, 1
    %s205 = scalar_select %p202, %s203, %s204
    %p208 = pneg %p202
    %p209 = scmp.eq.s32.totalorder %s15, 1
    %p210 = por %p208, %p209
    %p211 = scmp.ne.s32.totalorder %s203, %s206
    %p212 = scmp.eq.s32.totalorder %s15, 0
    %p213 = por %p211, %p212
    %p214 = scmp.ne.s32.totalorder %s203, %s206
    %p215 = scmp.eq.s32.totalorder %s20, 1
    %p216 = por %p214, %p215
    %p217 = scmp.ne.s32.totalorder %s206, %s207
    %p218 = scmp.eq.s32.totalorder %s20, 0
    %p219 = por %p217, %p218
    %p220 = scmp.ne.s32.totalorder %s206, %s207
    %p221 = scmp.eq.s32.totalorder %s21, 1
    %p222 = por %p220, %p221
    %p224 = scmp.ne.s32.totalorder %s207, %s223
    %p225 = scmp.eq.s32.totalorder %s21, 0
    %p226 = por %p224, %p225
    %p227 = scmp.le.s32.totalorder 1, %s15
    %p228 = scmp.lt.s32.totalorder %s15, 3
    %p229 = pnand %p227, %p228
    %p230 = pneg %p229
    // Predicated region
    $region9: #{embeddings_net_forward.4} parent=5 // pred_check
      _
    $region10: #{embeddings_net_forward.4} parent=5 // pred_check_branch
      %232 = sbr.rel (%p229) target = $region12
    $region11: #{embeddings_net_forward.4} parent=5 // pred_region
      %s233 = ssub.s32 %s15, 1
      // Predicated region
      $region13: #{embeddings_net_forward.4} parent=11 // pred_check
        %p234 = pneg %p62
      $region14: #{embeddings_net_forward.4} parent=11 // pred_check_branch
        %236 = sbr.rel (%p234) target = $region16
      $region15: #{embeddings_net_forward.4} parent=11 // pred_region
        _
      $region16: #{embeddings_net_forward.4} parent=11 // pred_fallthru
        _
      // Predicated region
      $region17: #{embeddings_net_forward.4} parent=11 // pred_check
        %p237 = pneg %p83
      $region18: #{embeddings_net_forward.4} parent=11 // pred_check_branch
        %239 = sbr.rel (%p237) target = $region20
      $region19: #{embeddings_net_forward.4} parent=11 // pred_region
        _
      $region20: #{embeddings_net_forward.4} parent=11 // pred_fallthru
        _
      // Predicated region
      $region21: #{embeddings_net_forward.4} parent=11 // pred_check
        %p240 = pneg %p104
      $region22: #{embeddings_net_forward.4} parent=11 // pred_check_branch
        %242 = sbr.rel (%p240) target = $region24
      $region23: #{embeddings_net_forward.4} parent=11 // pred_region
        _
      $region24: #{embeddings_net_forward.4} parent=11 // pred_fallthru
        _
      // Predicated region
      $region25: #{embeddings_net_forward.4} parent=11 // pred_check
        %p243 = pneg %p125
      $region26: #{embeddings_net_forward.4} parent=11 // pred_check_branch
        %245 = sbr.rel (%p243) target = $region28
      $region27: #{embeddings_net_forward.4} parent=11 // pred_region
        _
      $region28: #{embeddings_net_forward.4} parent=11 // pred_fallthru
        _
      // Predicated region
      $region29: #{embeddings_net_forward.4} parent=11 // pred_check
        %p246 = pneg %p146
      $region30: #{embeddings_net_forward.4} parent=11 // pred_check_branch
        %248 = sbr.rel (%p246) target = $region32
      $region31: #{embeddings_net_forward.4} parent=11 // pred_region
        _
      $region32: #{embeddings_net_forward.4} parent=11 // pred_fallthru
        _
      // Predicated region
      $region33: #{embeddings_net_forward.4} parent=11 // pred_check
        %p249 = pneg %p167
      $region34: #{embeddings_net_forward.4} parent=11 // pred_check_branch
        %251 = sbr.rel (%p249) target = $region36
      $region35: #{embeddings_net_forward.4} parent=11 // pred_region
        _
      $region36: #{embeddings_net_forward.4} parent=11 // pred_fallthru
        _
    $region12: #{embeddings_net_forward.4} parent=5 // pred_fallthru
      _
    %p252 = scmp.lt.s32.totalorder %s15, 2
    // Predicated region
    $region37: #{embeddings_net_forward.4} parent=5 // pred_check
      %p253 = pneg %p252
    $region38: #{embeddings_net_forward.4} parent=5 // pred_check_branch
      %255 = sbr.rel (%p253) target = $region40
    $region39: #{embeddings_net_forward.4} parent=5 // pred_region
      // Predicated region
      $region41: #{embeddings_net_forward.4} parent=39 // pred_check
        %p256 = pneg %p35
      $region42: #{embeddings_net_forward.4} parent=39 // pred_check_branch
        %258 = sbr.rel (%p256) target = $region44
      $region43: #{embeddings_net_forward.4} parent=39 // pred_region
        %p259 = scmp.lt.s32.totalorder %s15, 1
        %s260 = scalar_select %p259, %s15, 1
        %s261 = smul.addr %s260, 8
        %s262 = smul.addr %s261, 4
        %s263 = scalar_lea.vmem %s0, %s262
      $region44: #{embeddings_net_forward.4} parent=39 // pred_fallthru
        _
    $region40: #{embeddings_net_forward.4} parent=5 // pred_fallthru
      _
    %p264 = scmp.le.s32.totalorder 1, %s15
    %p265 = scmp.lt.s32.totalorder %s15, 3
    %p266 = pnand %p264, %p265
    %p267 = pneg %p266
    // Predicated region
    $region45: #{embeddings_net_forward.4} parent=5 // pred_check
      _
    $region46: #{embeddings_net_forward.4} parent=5 // pred_check_branch
      %269 = sbr.rel (%p266) target = $region48
    $region47: #{embeddings_net_forward.4} parent=5 // pred_region
      %s270 = ssub.s32 %s15, 1
      %p271 = scmp.lt.s32.totalorder %s20, 1
      %s272 = scalar_select %p271, %s20, 1
      %s273 = smul.addr %s272, 8
      %s274 = smul.addr %s273, 4
      %s275 = scalar_lea.vmem %s0, %s274
      %p276 = pneg %p41
      %p277 = pneg %p38
      %p278 = pneg %p62
      %p279 = pneg %p59
      %p280 = pneg %p83
      %p281 = pneg %p80
      %p282 = pneg %p104
      %p283 = pneg %p101
      %p284 = pneg %p125
      %p285 = pneg %p122
      %p286 = pneg %p146
      %p287 = pneg %p143
      %p288 = pneg %p167
      %p289 = pneg %p164
      %p290 = pneg %p193
      %p291 = pneg %p190
      %p292 = scmp.lt.s32.totalorder %s20, 1
      %s293 = scalar_select %p292, %s20, 1
      %s294 = smul.addr %s293, 8
      %s295 = smul.addr %s294, 4
      %s296 = scalar_lea.vmem %s7, %s295
      %p297 = pneg %p219
      %p298 = pneg %p216
      %p299 = scmp.lt.s32.totalorder %s20, 1
      %s300 = scalar_select %p299, %s20, 1
      %s301 = scalar_lea.vmem %s8, %s300
      %p302 = scmp.lt.s32.totalorder %s20, 1
      %s303 = scalar_select %p302, %s20, 1
      %s304 = smul.addr %s303, 8
      %s305 = smul.addr %s304, 4
      %s306 = scalar_lea.vmem %s0, %s305
      %p307 = scmp.lt.s32.totalorder %s20, 1
      %s308 = scalar_select %p307, %s20, 1
      %s309 = smul.addr %s308, 8
      %s310 = smul.addr %s309, 4
      %s311 = scalar_lea.vmem %s7, %s310
      %p312 = scmp.lt.s32.totalorder %s20, 1
      %s313 = scalar_select %p312, %s20, 1
      %s314 = scalar_lea.vmem %s8, %s313
      %316 = vst [vmem:[#allocation2] sm:$0xf] 0
      %317 = vst [vmem:[#allocation2 + $0x4] sm:$0x1] 0
      %318 = vst [vmem:[#allocation2 + $0x8] sm:$0xf] 0
      %319 = vst [vmem:[#allocation2 + $0xc] sm:$0x1] 0
      %320 = vst [vmem:[#allocation2 + $0x10] sm:$0xf] 0
      %321 = vst [vmem:[#allocation2 + $0x14] sm:$0x1] 0
      %322 = vst [vmem:[#allocation2 + $0x18] sm:$0xf] 0
      %323 = vst [vmem:[#allocation2 + $0x1c] sm:$0x1] 0
      %324 = vst [vmem:[#allocation2 + $0x20] sm:$0xf] 0
      %325 = vst [vmem:[#allocation2 + $0x24] sm:$0x1] 0
      %326 = vst [vmem:[#allocation2 + $0x28] sm:$0xf] 0
      %327 = vst [vmem:[#allocation2 + $0x2c] sm:$0x1] 0
      %328 = vst [vmem:[#allocation2 + $0x30] sm:$0xf] 0
      %329 = vst [vmem:[#allocation2 + $0x34] sm:$0x1] 0
      %330 = vst [vmem:[#allocation2 + $0x38] sm:$0xf] 0
      %331 = vst [vmem:[#allocation2 + $0x3c] sm:$0x1] 0
      %332 = vst [vmem:[#allocation2 + $0x40] sm:$0xf] 0
      %333 = vst [vmem:[#allocation2 + $0x44] sm:$0x1] 0
      %334 = vst [vmem:[#allocation2 + $0x48] sm:$0xf] 0
      %335 = vst [vmem:[#allocation2 + $0x4c] sm:$0x1] 0
      %v336 = vld [vmem:[%s306] sm:$0xf]
      %v337 = vld [vmem:[%s306 + $0x4] sm:$0xf]
      %v338 = vld [vmem:[%s306 + $0x8] sm:$0xf]
      %v339 = vld [vmem:[%s306 + $0xc] sm:$0xf]
      %v340 = vld [vmem:[%s306 + $0x10] sm:$0xf]
      %v341 = vld [vmem:[%s306 + $0x14] sm:$0xf]
      %v342 = vld [vmem:[%s306 + $0x18] sm:$0xf]
      %v343 = vld [vmem:[%s306 + $0x1c] sm:$0xf]
      %v345 = vshrl.u32 %v336, 16
      %v347 = vrot.slane %v345, 7
      %v348 = vshll.u32 %v336, 16
      %v350 = vor.u32 %v347, %v348
      %v351 = vrot.slane %v347, 4
      %v353 = vshrl.u32 %v337, 16
      %v355 = vrot.slane %v353, 7
      %v356 = vshll.u32 %v337, 16
      %v358 = vor.u32 %v355, %v356
      %v359 = vrot.slane %v355, 4
      %v361 = vshrl.u32 %v338, 16
      %v363 = vrot.slane %v361, 7
      %v364 = vshll.u32 %v338, 16
      %v366 = vor.u32 %v363, %v364
      %v367 = vrot.slane %v363, 4
      %v369 = vshrl.u32 %v339, 16
      %v371 = vrot.slane %v369, 7
      %v372 = vshll.u32 %v339, 16
      %v374 = vor.u32 %v371, %v372
      %v375 = vrot.slane %v371, 4
      %v377 = vshrl.u32 %v340, 16
      %v379 = vrot.slane %v377, 7
      %v380 = vshll.u32 %v340, 16
      %v382 = vor.u32 %v379, %v380
      %v383 = vrot.slane %v379, 4
      %v385 = vshrl.u32 %v341, 16
      %v387 = vrot.slane %v385, 7
      %v388 = vshll.u32 %v341, 16
      %v390 = vor.u32 %v387, %v388
      %v391 = vrot.slane %v387, 4
      %v393 = vshrl.u32 %v342, 16
      %v395 = vrot.slane %v393, 7
      %v396 = vshll.u32 %v342, 16
      %v398 = vor.u32 %v395, %v396
      %v399 = vrot.slane %v395, 4
      %v401 = vshrl.u32 %v343, 16
      %v403 = vrot.slane %v401, 7
      %v404 = vshll.u32 %v343, 16
      %v406 = vor.u32 %v403, %v404
      %v407 = vrot.slane %v403, 4
      %s424 = scalar_lea.vmem [#allocation2], 8
      %vm425 = vcmask 1043456
      %vm426 = vsmask.f32 7938
      %vm427 = vmand %vm425, %vm426
      %v428 = vld [vmem:[%s424] sm:$0xf]
      %v429 = vsel %vm427, %v350, %v428
      %430 = vst [vmem:[%s424] sm:$0xf] %v429
      %vm431 = vcmask 1040384
      %vm432 = vsmask.f32 256
      %vm433 = vmand %vm431, %vm432
      %v434 = vld [vmem:[%s424 + $0x4] sm:$0x1]
      %v435 = vsel %vm433, %v351, %v434
      %436 = vst [vmem:[%s424 + $0x4] sm:$0x1] %v435
      %v437 = vld [vmem:[%s424 + $0x8] sm:$0xf]
      %v438 = vsel %vm427, %v358, %v437
      %439 = vst [vmem:[%s424 + $0x8] sm:$0xf] %v438
      %v440 = vld [vmem:[%s424 + $0xc] sm:$0x1]
      %v441 = vsel %vm433, %v359, %v440
      %442 = vst [vmem:[%s424 + $0xc] sm:$0x1] %v441
      %v443 = vld [vmem:[%s424 + $0x10] sm:$0xf]
      %v444 = vsel %vm427, %v366, %v443
      %445 = vst [vmem:[%s424 + $0x10] sm:$0xf] %v444
      %v446 = vld [vmem:[%s424 + $0x14] sm:$0x1]
      %v447 = vsel %vm433, %v367, %v446
      %448 = vst [vmem:[%s424 + $0x14] sm:$0x1] %v447
      %v449 = vld [vmem:[%s424 + $0x18] sm:$0xf]
      %v450 = vsel %vm427, %v374, %v449
      %451 = vst [vmem:[%s424 + $0x18] sm:$0xf] %v450
      %v452 = vld [vmem:[%s424 + $0x1c] sm:$0x1]
      %v453 = vsel %vm433, %v375, %v452
      %454 = vst [vmem:[%s424 + $0x1c] sm:$0x1] %v453
      %v455 = vld [vmem:[%s424 + $0x20] sm:$0xf]
      %v456 = vsel %vm427, %v382, %v455
      %457 = vst [vmem:[%s424 + $0x20] sm:$0xf] %v456
      %v458 = vld [vmem:[%s424 + $0x24] sm:$0x1]
      %v459 = vsel %vm433, %v383, %v458
      %460 = vst [vmem:[%s424 + $0x24] sm:$0x1] %v459
      %v461 = vld [vmem:[%s424 + $0x28] sm:$0xf]
      %v462 = vsel %vm427, %v390, %v461
      %463 = vst [vmem:[%s424 + $0x28] sm:$0xf] %v462
      %v464 = vld [vmem:[%s424 + $0x2c] sm:$0x1]
      %v465 = vsel %vm433, %v391, %v464
      %466 = vst [vmem:[%s424 + $0x2c] sm:$0x1] %v465
      %v467 = vld [vmem:[%s424 + $0x30] sm:$0xf]
      %v468 = vsel %vm427, %v398, %v467
      %469 = vst [vmem:[%s424 + $0x30] sm:$0xf] %v468
      %v470 = vld [vmem:[%s424 + $0x34] sm:$0x1]
      %v471 = vsel %vm433, %v399, %v470
      %472 = vst [vmem:[%s424 + $0x34] sm:$0x1] %v471
      %v473 = vld [vmem:[%s424 + $0x38] sm:$0xf]
      %v474 = vsel %vm427, %v406, %v473
      %475 = vst [vmem:[%s424 + $0x38] sm:$0xf] %v474
      %v476 = vld [vmem:[%s424 + $0x3c] sm:$0x1]
      %v477 = vsel %vm433, %v407, %v476
      %478 = vst [vmem:[%s424 + $0x3c] sm:$0x1] %v477
      %v479 = vld [vmem:[%s1] sm:$0x1]
      %v480 = vld [vmem:[%s1 + $0x1] sm:$0x1]
      %v481 = vld [vmem:[%s1 + $0x2] sm:$0x1]
      %v482 = vld [vmem:[%s1 + $0x3] sm:$0x1]
      %v483 = vld [vmem:[%s1 + $0x4] sm:$0x1]
      %v484 = vld [vmem:[%s1 + $0x5] sm:$0x1]
      %v485 = vld [vmem:[%s1 + $0x6] sm:$0x1]
      %v486 = vld [vmem:[%s1 + $0x7] sm:$0x1]
      %v487 = vld [vmem:[%s1 + $0x8] sm:$0x1]
      %v488 = vpack.c.bf16 %v479, %v479
      %v489 = vpack.c.bf16 %v480, %v480
      %v490 = vpack.c.bf16 %v481, %v481
      %v491 = vpack.c.bf16 %v482, %v482
      %v492 = vpack.c.bf16 %v483, %v483
      %v493 = vpack.c.bf16 %v484, %v484
      %v494 = vpack.c.bf16 %v485, %v485
      %v495 = vpack.c.bf16 %v486, %v486
      %v496 = vpack.c.bf16 %v487, %v487
      %v497 = vld [vmem:[#allocation2] sm:$0xf]
      %v498 = vld [vmem:[#allocation2 + $0x8] sm:$0xf]
      %v499 = vld [vmem:[#allocation2 + $0x10] sm:$0xf]
      %v500 = vld [vmem:[#allocation2 + $0x18] sm:$0xf]
      %v501 = vld [vmem:[#allocation2 + $0x20] sm:$0xf]
      %v502 = vld [vmem:[#allocation2 + $0x28] sm:$0xf]
      %v503 = vld [vmem:[#allocation2 + $0x30] sm:$0xf]
      %v504 = vld [vmem:[#allocation2 + $0x38] sm:$0xf]
      %v506 = vpack.i.b16 %v488, %v488
      %v508 = vlaneseq
      %v509 = vshrl.u32 %v508, 7
      %v510 = vsub.s32 0, %v509
      %v511 = vrot.slane %v506, %v510
      %v512 = vmul.bf16 %v497, %v511
      %v513 = vmul.bf16 %v498, %v511
      %v514 = vmul.bf16 %v499, %v511
      %v515 = vmul.bf16 %v500, %v511
      %v516 = vmul.bf16 %v501, %v511
      %v517 = vmul.bf16 %v502, %v511
      %v518 = vmul.bf16 %v503, %v511
      %v519 = vmul.bf16 %v504, %v511
      %v520 = vadd.bf16 %v512, 0
      %v521 = vadd.bf16 %v513, 0
      %v522 = vadd.bf16 %v514, 0
      %v523 = vadd.bf16 %v515, 0
      %v524 = vadd.bf16 %v516, 0
      %v525 = vadd.bf16 %v517, 0
      %v526 = vadd.bf16 %v518, 0
      %v527 = vadd.bf16 %v519, 0
      %v528 = vld [vmem:[#allocation2 + $0x4] sm:$0x1]
      %v529 = vld [vmem:[#allocation2 + $0xc] sm:$0x1]
      %v530 = vld [vmem:[#allocation2 + $0x14] sm:$0x1]
      %v531 = vld [vmem:[#allocation2 + $0x1c] sm:$0x1]
      %v532 = vld [vmem:[#allocation2 + $0x24] sm:$0x1]
      %v533 = vld [vmem:[#allocation2 + $0x2c] sm:$0x1]
      %v534 = vld [vmem:[#allocation2 + $0x34] sm:$0x1]
      %v535 = vld [vmem:[#allocation2 + $0x3c] sm:$0x1]
      %v537 = vpack.i.b16 %v489, %v489
      %v539 = vlaneseq
      %v540 = vshrl.u32 %v539, 7
      %v541 = vsub.s32 0, %v540
      %v542 = vrot.slane %v537, %v541
      %v544 = vunpack.c.l.b16 %v542
      %v545 = vpack.c.b16 %v544, %v544
      %v547 = vmul.bf16 %v497, %v545
      %v548 = vmul.bf16 %v528, %v545
      %v549 = vmul.bf16 %v498, %v545
      %v550 = vmul.bf16 %v529, %v545
      %v551 = vmul.bf16 %v499, %v545
      %v552 = vmul.bf16 %v530, %v545
      %v553 = vmul.bf16 %v500, %v545
      %v554 = vmul.bf16 %v531, %v545
      %v555 = vmul.bf16 %v501, %v545
      %v556 = vmul.bf16 %v532, %v545
      %v557 = vmul.bf16 %v502, %v545
      %v558 = vmul.bf16 %v533, %v545
      %v559 = vmul.bf16 %v503, %v545
      %v560 = vmul.bf16 %v534, %v545
      %v561 = vmul.bf16 %v504, %v545
      %v562 = vmul.bf16 %v535, %v545
      %vm563 = vsmask.f32 3328
      %vm564 = vsmask.f32 7440
      %vm565 = vmor %vm563, %vm564
      %v567 = vshrl.u32 %v547, 16
      %v569 = vrot.slane %v567, 4
      %v570 = vshll.u32 %v547, 16
      %v572 = vrot.slane %v570, 5
      %v573 = vor.u32 %v569, %v572
      %v574 = vrot.slane %v573, 4
      %v576 = vshll.u32 %v548, 16
      %v578 = vrot.slane %v576, 5
      %v579 = vsel %vm565, %v574, %v578
      %v581 = vshrl.u32 %v549, 16
      %v583 = vrot.slane %v581, 4
      %v584 = vshll.u32 %v549, 16
      %v586 = vrot.slane %v584, 5
      %v587 = vor.u32 %v583, %v586
      %v588 = vrot.slane %v587, 4
      %v590 = vshll.u32 %v550, 16
      %v592 = vrot.slane %v590, 5
      %v593 = vsel %vm565, %v588, %v592
      %v595 = vshrl.u32 %v551, 16
      %v597 = vrot.slane %v595, 4
      %v598 = vshll.u32 %v551, 16
      %v600 = vrot.slane %v598, 5
      %v601 = vor.u32 %v597, %v600
      %v602 = vrot.slane %v601, 4
      %v604 = vshll.u32 %v552, 16
      %v606 = vrot.slane %v604, 5
      %v607 = vsel %vm565, %v602, %v606
      %v609 = vshrl.u32 %v553, 16
      %v611 = vrot.slane %v609, 4
      %v612 = vshll.u32 %v553, 16
      %v614 = vrot.slane %v612, 5
      %v615 = vor.u32 %v611, %v614
      %v616 = vrot.slane %v615, 4
      %v618 = vshll.u32 %v554, 16
      %v620 = vrot.slane %v618, 5
      %v621 = vsel %vm565, %v616, %v620
      %v623 = vshrl.u32 %v555, 16
      %v625 = vrot.slane %v623, 4
      %v626 = vshll.u32 %v555, 16
      %v628 = vrot.slane %v626, 5
      %v629 = vor.u32 %v625, %v628
      %v630 = vrot.slane %v629, 4
      %v632 = vshll.u32 %v556, 16
      %v634 = vrot.slane %v632, 5
      %v635 = vsel %vm565, %v630, %v634
      %v637 = vshrl.u32 %v557, 16
      %v639 = vrot.slane %v637, 4
      %v640 = vshll.u32 %v557, 16
      %v642 = vrot.slane %v640, 5
      %v643 = vor.u32 %v639, %v642
      %v644 = vrot.slane %v643, 4
      %v646 = vshll.u32 %v558, 16
      %v648 = vrot.slane %v646, 5
      %v649 = vsel %vm565, %v644, %v648
      %v651 = vshrl.u32 %v559, 16
      %v653 = vrot.slane %v651, 4
      %v654 = vshll.u32 %v559, 16
      %v656 = vrot.slane %v654, 5
      %v657 = vor.u32 %v653, %v656
      %v658 = vrot.slane %v657, 4
      %v660 = vshll.u32 %v560, 16
      %v662 = vrot.slane %v660, 5
      %v663 = vsel %vm565, %v658, %v662
      %v665 = vshrl.u32 %v561, 16
      %v667 = vrot.slane %v665, 4
      %v668 = vshll.u32 %v561, 16
      %v670 = vrot.slane %v668, 5
      %v671 = vor.u32 %v667, %v670
      %v672 = vrot.slane %v671, 4
      %v674 = vshll.u32 %v562, 16
      %v676 = vrot.slane %v674, 5
      %v677 = vsel %vm565, %v672, %v676
      %v686 = vadd.bf16 %v520, %v579
      %v687 = vadd.bf16 %v521, %v593
      %v688 = vadd.bf16 %v522, %v607
      %v689 = vadd.bf16 %v523, %v621
      %v690 = vadd.bf16 %v524, %v635
      %v691 = vadd.bf16 %v525, %v649
      %v692 = vadd.bf16 %v526, %v663
      %v693 = vadd.bf16 %v527, %v677
      %v694 = vld [vmem:[#allocation2] sm:$0xe]
      %v695 = vld [vmem:[#allocation2 + $0x8] sm:$0xe]
      %v696 = vld [vmem:[#allocation2 + $0x10] sm:$0xe]
      %v697 = vld [vmem:[#allocation2 + $0x18] sm:$0xe]
      %v698 = vld [vmem:[#allocation2 + $0x20] sm:$0xe]
      %v699 = vld [vmem:[#allocation2 + $0x28] sm:$0xe]
      %v700 = vld [vmem:[#allocation2 + $0x30] sm:$0xe]
      %v701 = vld [vmem:[#allocation2 + $0x38] sm:$0xe]
      %v703 = vpack.i.b16 %v490, %v490
      %v705 = vlaneseq
      %v706 = vshrl.u32 %v705, 7
      %v707 = vsub.s32 0, %v706
      %v708 = vrot.slane %v703, %v707
      %v710 = vunpack.c.l.b16 %v708
      %v711 = vpack.c.b16 %v710, %v710
      %v713 = vmul.bf16 %v694, %v711
      %v714 = vmul.bf16 %v528, %v711
      %v715 = vmul.bf16 %v695, %v711
      %v716 = vmul.bf16 %v529, %v711
      %v717 = vmul.bf16 %v696, %v711
      %v718 = vmul.bf16 %v530, %v711
      %v719 = vmul.bf16 %v697, %v711
      %v720 = vmul.bf16 %v531, %v711
      %v721 = vmul.bf16 %v698, %v711
      %v722 = vmul.bf16 %v532, %v711
      %v723 = vmul.bf16 %v699, %v711
      %v724 = vmul.bf16 %v533, %v711
      %v725 = vmul.bf16 %v700, %v711
      %v726 = vmul.bf16 %v534, %v711
      %v727 = vmul.bf16 %v701, %v711
      %v728 = vmul.bf16 %v535, %v711
      %vm745 = vcmask 1042432
      %vm746 = vcmask 1046532
      %vm747 = vmor %vm745, %vm746
      %v748 = vrot.slane %v713, 5
      %v749 = vrot.slane %v748, 4
      %v750 = vrot.slane %v714, 5
      %v751 = vsel %vm747, %v749, %v750
      %v752 = vrot.slane %v715, 5
      %v753 = vrot.slane %v752, 4
      %v754 = vrot.slane %v716, 5
      %v755 = vsel %vm747, %v753, %v754
      %v756 = vrot.slane %v717, 5
      %v757 = vrot.slane %v756, 4
      %v758 = vrot.slane %v718, 5
      %v759 = vsel %vm747, %v757, %v758
      %v760 = vrot.slane %v719, 5
      %v761 = vrot.slane %v760, 4
      %v762 = vrot.slane %v720, 5
      %v763 = vsel %vm747, %v761, %v762
      %v764 = vrot.slane %v721, 5
      %v765 = vrot.slane %v764, 4
      %v766 = vrot.slane %v722, 5
      %v767 = vsel %vm747, %v765, %v766
      %v768 = vrot.slane %v723, 5
      %v769 = vrot.slane %v768, 4
      %v770 = vrot.slane %v724, 5
      %v771 = vsel %vm747, %v769, %v770
      %v772 = vrot.slane %v725, 5
      %v773 = vrot.slane %v772, 4
      %v774 = vrot.slane %v726, 5
      %v775 = vsel %vm747, %v773, %v774
      %v776 = vrot.slane %v727, 5
      %v777 = vrot.slane %v776, 4
      %v778 = vrot.slane %v728, 5
      %v779 = vsel %vm747, %v777, %v778
      %v788 = vadd.bf16 %v686, %v751
      %v789 = vadd.bf16 %v687, %v755
      %v790 = vadd.bf16 %v688, %v759
      %v791 = vadd.bf16 %v689, %v763
      %v792 = vadd.bf16 %v690, %v767
      %v793 = vadd.bf16 %v691, %v771
      %v794 = vadd.bf16 %v692, %v775
      %v795 = vadd.bf16 %v693, %v779
      %v796 = vld [vmem:[%s424] sm:$0xf]
      %v797 = vld [vmem:[%s424 + $0x8] sm:$0xf]
      %v798 = vld [vmem:[%s424 + $0x10] sm:$0xf]
      %v799 = vld [vmem:[%s424 + $0x18] sm:$0xf]
      %v800 = vld [vmem:[%s424 + $0x20] sm:$0xf]
      %v801 = vld [vmem:[%s424 + $0x28] sm:$0xf]
      %v802 = vld [vmem:[%s424 + $0x30] sm:$0xf]
      %v803 = vld [vmem:[%s424 + $0x38] sm:$0xf]
      %v805 = vpack.i.b16 %v491, %v491
      %v807 = vlaneseq
      %v808 = vshrl.u32 %v807, 7
      %v809 = vsub.s32 0, %v808
      %v810 = vrot.slane %v805, %v809
      %v811 = vmul.bf16 %v796, %v810
      %v812 = vmul.bf16 %v797, %v810
      %v813 = vmul.bf16 %v798, %v810
      %v814 = vmul.bf16 %v799, %v810
      %v815 = vmul.bf16 %v800, %v810
      %v816 = vmul.bf16 %v801, %v810
      %v817 = vmul.bf16 %v802, %v810
      %v818 = vmul.bf16 %v803, %v810
      %v819 = vadd.bf16 %v788, %v811
      %v820 = vadd.bf16 %v789, %v812
      %v821 = vadd.bf16 %v790, %v813
      %v822 = vadd.bf16 %v791, %v814
      %v823 = vadd.bf16 %v792, %v815
      %v824 = vadd.bf16 %v793, %v816
      %v825 = vadd.bf16 %v794, %v817
      %v826 = vadd.bf16 %v795, %v818
      %v827 = vld [vmem:[%s424 + $0x4] sm:$0x1]
      %v828 = vld [vmem:[%s424 + $0xc] sm:$0x1]
      %v829 = vld [vmem:[%s424 + $0x14] sm:$0x1]
      %v830 = vld [vmem:[%s424 + $0x1c] sm:$0x1]
      %v831 = vld [vmem:[%s424 + $0x24] sm:$0x1]
      %v832 = vld [vmem:[%s424 + $0x2c] sm:$0x1]
      %v833 = vld [vmem:[%s424 + $0x34] sm:$0x1]
      %v834 = vld [vmem:[%s424 + $0x3c] sm:$0x1]
      %v836 = vpack.i.b16 %v492, %v492
      %v838 = vlaneseq
      %v839 = vshrl.u32 %v838, 7
      %v840 = vsub.s32 0, %v839
      %v841 = vrot.slane %v836, %v840
      %v843 = vunpack.c.l.b16 %v841
      %v844 = vpack.c.b16 %v843, %v843
      %v846 = vmul.bf16 %v796, %v844
      %v847 = vmul.bf16 %v827, %v844
      %v848 = vmul.bf16 %v797, %v844
      %v849 = vmul.bf16 %v828, %v844
      %v850 = vmul.bf16 %v798, %v844
      %v851 = vmul.bf16 %v829, %v844
      %v852 = vmul.bf16 %v799, %v844
      %v853 = vmul.bf16 %v830, %v844
      %v854 = vmul.bf16 %v800, %v844
      %v855 = vmul.bf16 %v831, %v844
      %v856 = vmul.bf16 %v801, %v844
      %v857 = vmul.bf16 %v832, %v844
      %v858 = vmul.bf16 %v802, %v844
      %v859 = vmul.bf16 %v833, %v844
      %v860 = vmul.bf16 %v803, %v844
      %v861 = vmul.bf16 %v834, %v844
      %v863 = vshrl.u32 %v846, 16
      %v865 = vrot.slane %v863, 4
      %v866 = vshll.u32 %v846, 16
      %v868 = vrot.slane %v866, 5
      %v869 = vor.u32 %v865, %v868
      %v870 = vrot.slane %v869, 4
      %v872 = vshll.u32 %v847, 16
      %v874 = vrot.slane %v872, 5
      %v875 = vsel %vm565, %v870, %v874
      %v877 = vshrl.u32 %v848, 16
      %v879 = vrot.slane %v877, 4
      %v880 = vshll.u32 %v848, 16
      %v882 = vrot.slane %v880, 5
      %v883 = vor.u32 %v879, %v882
      %v884 = vrot.slane %v883, 4
      %v886 = vshll.u32 %v849, 16
      %v888 = vrot.slane %v886, 5
      %v889 = vsel %vm565, %v884, %v888
      %v891 = vshrl.u32 %v850, 16
      %v893 = vrot.slane %v891, 4
      %v894 = vshll.u32 %v850, 16
      %v896 = vrot.slane %v894, 5
      %v897 = vor.u32 %v893, %v896
      %v898 = vrot.slane %v897, 4
      %v900 = vshll.u32 %v851, 16
      %v902 = vrot.slane %v900, 5
      %v903 = vsel %vm565, %v898, %v902
      %v905 = vshrl.u32 %v852, 16
      %v907 = vrot.slane %v905, 4
      %v908 = vshll.u32 %v852, 16
      %v910 = vrot.slane %v908, 5
      %v911 = vor.u32 %v907, %v910
      %v912 = vrot.slane %v911, 4
      %v914 = vshll.u32 %v853, 16
      %v916 = vrot.slane %v914, 5
      %v917 = vsel %vm565, %v912, %v916
      %v919 = vshrl.u32 %v854, 16
      %v921 = vrot.slane %v919, 4
      %v922 = vshll.u32 %v854, 16
      %v924 = vrot.slane %v922, 5
      %v925 = vor.u32 %v921, %v924
      %v926 = vrot.slane %v925, 4
      %v928 = vshll.u32 %v855, 16
      %v930 = vrot.slane %v928, 5
      %v931 = vsel %vm565, %v926, %v930
      %v933 = vshrl.u32 %v856, 16
      %v935 = vrot.slane %v933, 4
      %v936 = vshll.u32 %v856, 16
      %v938 = vrot.slane %v936, 5
      %v939 = vor.u32 %v935, %v938
      %v940 = vrot.slane %v939, 4
      %v942 = vshll.u32 %v857, 16
      %v944 = vrot.slane %v942, 5
      %v945 = vsel %vm565, %v940, %v944
      %v947 = vshrl.u32 %v858, 16
      %v949 = vrot.slane %v947, 4
      %v950 = vshll.u32 %v858, 16
      %v952 = vrot.slane %v950, 5
      %v953 = vor.u32 %v949, %v952
      %v954 = vrot.slane %v953, 4
      %v956 = vshll.u32 %v859, 16
      %v958 = vrot.slane %v956, 5
      %v959 = vsel %vm565, %v954, %v958
      %v961 = vshrl.u32 %v860, 16
      %v963 = vrot.slane %v961, 4
      %v964 = vshll.u32 %v860, 16
      %v966 = vrot.slane %v964, 5
      %v967 = vor.u32 %v963, %v966
      %v968 = vrot.slane %v967, 4
      %v970 = vshll.u32 %v861, 16
      %v972 = vrot.slane %v970, 5
      %v973 = vsel %vm565, %v968, %v972
      %v982 = vadd.bf16 %v819, %v875
      %v983 = vadd.bf16 %v820, %v889
      %v984 = vadd.bf16 %v821, %v903
      %v985 = vadd.bf16 %v822, %v917
      %v986 = vadd.bf16 %v823, %v931
      %v987 = vadd.bf16 %v824, %v945
      %v988 = vadd.bf16 %v825, %v959
      %v989 = vadd.bf16 %v826, %v973
      %v990 = vld [vmem:[%s424] sm:$0xe]
      %v991 = vld [vmem:[%s424 + $0x8] sm:$0xe]
      %v992 = vld [vmem:[%s424 + $0x10] sm:$0xe]
      %v993 = vld [vmem:[%s424 + $0x18] sm:$0xe]
      %v994 = vld [vmem:[%s424 + $0x20] sm:$0xe]
      %v995 = vld [vmem:[%s424 + $0x28] sm:$0xe]
      %v996 = vld [vmem:[%s424 + $0x30] sm:$0xe]
      %v997 = vld [vmem:[%s424 + $0x38] sm:$0xe]
      %v999 = vpack.i.b16 %v493, %v493
      %v1001 = vlaneseq
      %v1002 = vshrl.u32 %v1001, 7
      %v1003 = vsub.s32 0, %v1002
      %v1004 = vrot.slane %v999, %v1003
      %v1006 = vunpack.c.l.b16 %v1004
      %v1007 = vpack.c.b16 %v1006, %v1006
      %v1009 = vmul.bf16 %v990, %v1007
      %v1010 = vmul.bf16 %v827, %v1007
      %v1011 = vmul.bf16 %v991, %v1007
      %v1012 = vmul.bf16 %v828, %v1007
      %v1013 = vmul.bf16 %v992, %v1007
      %v1014 = vmul.bf16 %v829, %v1007
      %v1015 = vmul.bf16 %v993, %v1007
      %v1016 = vmul.bf16 %v830, %v1007
      %v1017 = vmul.bf16 %v994, %v1007
      %v1018 = vmul.bf16 %v831, %v1007
      %v1019 = vmul.bf16 %v995, %v1007
      %v1020 = vmul.bf16 %v832, %v1007
      %v1021 = vmul.bf16 %v996, %v1007
      %v1022 = vmul.bf16 %v833, %v1007
      %v1023 = vmul.bf16 %v997, %v1007
      %v1024 = vmul.bf16 %v834, %v1007
      %v1041 = vrot.slane %v1009, 5
      %v1042 = vrot.slane %v1041, 4
      %v1043 = vrot.slane %v1010, 5
      %v1044 = vsel %vm747, %v1042, %v1043
      %v1045 = vrot.slane %v1011, 5
      %v1046 = vrot.slane %v1045, 4
      %v1047 = vrot.slane %v1012, 5
      %v1048 = vsel %vm747, %v1046, %v1047
      %v1049 = vrot.slane %v1013, 5
      %v1050 = vrot.slane %v1049, 4
      %v1051 = vrot.slane %v1014, 5
      %v1052 = vsel %vm747, %v1050, %v1051
      %v1053 = vrot.slane %v1015, 5
      %v1054 = vrot.slane %v1053, 4
      %v1055 = vrot.slane %v1016, 5
      %v1056 = vsel %vm747, %v1054, %v1055
      %v1057 = vrot.slane %v1017, 5
      %v1058 = vrot.slane %v1057, 4
      %v1059 = vrot.slane %v1018, 5
      %v1060 = vsel %vm747, %v1058, %v1059
      %v1061 = vrot.slane %v1019, 5
      %v1062 = vrot.slane %v1061, 4
      %v1063 = vrot.slane %v1020, 5
      %v1064 = vsel %vm747, %v1062, %v1063
      %v1065 = vrot.slane %v1021, 5
      %v1066 = vrot.slane %v1065, 4
      %v1067 = vrot.slane %v1022, 5
      %v1068 = vsel %vm747, %v1066, %v1067
      %v1069 = vrot.slane %v1023, 5
      %v1070 = vrot.slane %v1069, 4
      %v1071 = vrot.slane %v1024, 5
      %v1072 = vsel %vm747, %v1070, %v1071
      %v1081 = vadd.bf16 %v982, %v1044
      %v1082 = vadd.bf16 %v983, %v1048
      %v1083 = vadd.bf16 %v984, %v1052
      %v1084 = vadd.bf16 %v985, %v1056
      %v1085 = vadd.bf16 %v986, %v1060
      %v1086 = vadd.bf16 %v987, %v1064
      %v1087 = vadd.bf16 %v988, %v1068
      %v1088 = vadd.bf16 %v989, %v1072
      %s1089 = scalar_lea.vmem [#allocation2], 16
      %v1090 = vld [vmem:[%s1089] sm:$0xf]
      %v1091 = vld [vmem:[%s1089 + $0x8] sm:$0xf]
      %v1092 = vld [vmem:[%s1089 + $0x10] sm:$0xf]
      %v1093 = vld [vmem:[%s1089 + $0x18] sm:$0xf]
      %v1094 = vld [vmem:[%s1089 + $0x20] sm:$0xf]
      %v1095 = vld [vmem:[%s1089 + $0x28] sm:$0xf]
      %v1096 = vld [vmem:[%s1089 + $0x30] sm:$0xf]
      %v1097 = vld [vmem:[%s1089 + $0x38] sm:$0xf]
      %v1099 = vpack.i.b16 %v494, %v494
      %v1101 = vlaneseq
      %v1102 = vshrl.u32 %v1101, 7
      %v1103 = vsub.s32 0, %v1102
      %v1104 = vrot.slane %v1099, %v1103
      %v1105 = vmul.bf16 %v1090, %v1104
      %v1106 = vmul.bf16 %v1091, %v1104
      %v1107 = vmul.bf16 %v1092, %v1104
      %v1108 = vmul.bf16 %v1093, %v1104
      %v1109 = vmul.bf16 %v1094, %v1104
      %v1110 = vmul.bf16 %v1095, %v1104
      %v1111 = vmul.bf16 %v1096, %v1104
      %v1112 = vmul.bf16 %v1097, %v1104
      %v1113 = vadd.bf16 %v1081, %v1105
      %v1114 = vadd.bf16 %v1082, %v1106
      %v1115 = vadd.bf16 %v1083, %v1107
      %v1116 = vadd.bf16 %v1084, %v1108
      %v1117 = vadd.bf16 %v1085, %v1109
      %v1118 = vadd.bf16 %v1086, %v1110
      %v1119 = vadd.bf16 %v1087, %v1111
      %v1120 = vadd.bf16 %v1088, %v1112
      %v1121 = vld [vmem:[%s1089 + $0x4] sm:$0x1]
      %v1122 = vld [vmem:[%s1089 + $0xc] sm:$0x1]
      %v1123 = vld [vmem:[%s1089 + $0x14] sm:$0x1]
      %v1124 = vld [vmem:[%s1089 + $0x1c] sm:$0x1]
      %v1125 = vld [vmem:[%s1089 + $0x24] sm:$0x1]
      %v1126 = vld [vmem:[%s1089 + $0x2c] sm:$0x1]
      %v1127 = vld [vmem:[%s1089 + $0x34] sm:$0x1]
      %v1128 = vld [vmem:[%s1089 + $0x3c] sm:$0x1]
      %v1130 = vpack.i.b16 %v495, %v495
      %v1132 = vlaneseq
      %v1133 = vshrl.u32 %v1132, 7
      %v1134 = vsub.s32 0, %v1133
      %v1135 = vrot.slane %v1130, %v1134
      %v1137 = vunpack.c.l.b16 %v1135
      %v1138 = vpack.c.b16 %v1137, %v1137
      %v1140 = vmul.bf16 %v1090, %v1138
      %v1141 = vmul.bf16 %v1121, %v1138
      %v1142 = vmul.bf16 %v1091, %v1138
      %v1143 = vmul.bf16 %v1122, %v1138
      %v1144 = vmul.bf16 %v1092, %v1138
      %v1145 = vmul.bf16 %v1123, %v1138
      %v1146 = vmul.bf16 %v1093, %v1138
      %v1147 = vmul.bf16 %v1124, %v1138
      %v1148 = vmul.bf16 %v1094, %v1138
      %v1149 = vmul.bf16 %v1125, %v1138
      %v1150 = vmul.bf16 %v1095, %v1138
      %v1151 = vmul.bf16 %v1126, %v1138
      %v1152 = vmul.bf16 %v1096, %v1138
      %v1153 = vmul.bf16 %v1127, %v1138
      %v1154 = vmul.bf16 %v1097, %v1138
      %v1155 = vmul.bf16 %v1128, %v1138
      %v1157 = vshrl.u32 %v1140, 16
      %v1159 = vrot.slane %v1157, 4
      %v1160 = vshll.u32 %v1140, 16
      %v1162 = vrot.slane %v1160, 5
      %v1163 = vor.u32 %v1159, %v1162
      %v1164 = vrot.slane %v1163, 4
      %v1166 = vshll.u32 %v1141, 16
      %v1168 = vrot.slane %v1166, 5
      %v1169 = vsel %vm565, %v1164, %v1168
      %v1171 = vshrl.u32 %v1142, 16
      %v1173 = vrot.slane %v1171, 4
      %v1174 = vshll.u32 %v1142, 16
      %v1176 = vrot.slane %v1174, 5
      %v1177 = vor.u32 %v1173, %v1176
      %v1178 = vrot.slane %v1177, 4
      %v1180 = vshll.u32 %v1143, 16
      %v1182 = vrot.slane %v1180, 5
      %v1183 = vsel %vm565, %v1178, %v1182
      %v1185 = vshrl.u32 %v1144, 16
      %v1187 = vrot.slane %v1185, 4
      %v1188 = vshll.u32 %v1144, 16
      %v1190 = vrot.slane %v1188, 5
      %v1191 = vor.u32 %v1187, %v1190
      %v1192 = vrot.slane %v1191, 4
      %v1194 = vshll.u32 %v1145, 16
      %v1196 = vrot.slane %v1194, 5
      %v1197 = vsel %vm565, %v1192, %v1196
      %v1199 = vshrl.u32 %v1146, 16
      %v1201 = vrot.slane %v1199, 4
      %v1202 = vshll.u32 %v1146, 16
      %v1204 = vrot.slane %v1202, 5
      %v1205 = vor.u32 %v1201, %v1204
      %v1206 = vrot.slane %v1205, 4
      %v1208 = vshll.u32 %v1147, 16
      %v1210 = vrot.slane %v1208, 5
      %v1211 = vsel %vm565, %v1206, %v1210
      %v1213 = vshrl.u32 %v1148, 16
      %v1215 = vrot.slane %v1213, 4
      %v1216 = vshll.u32 %v1148, 16
      %v1218 = vrot.slane %v1216, 5
      %v1219 = vor.u32 %v1215, %v1218
      %v1220 = vrot.slane %v1219, 4
      %v1222 = vshll.u32 %v1149, 16
      %v1224 = vrot.slane %v1222, 5
      %v1225 = vsel %vm565, %v1220, %v1224
      %v1227 = vshrl.u32 %v1150, 16
      %v1229 = vrot.slane %v1227, 4
      %v1230 = vshll.u32 %v1150, 16
      %v1232 = vrot.slane %v1230, 5
      %v1233 = vor.u32 %v1229, %v1232
      %v1234 = vrot.slane %v1233, 4
      %v1236 = vshll.u32 %v1151, 16
      %v1238 = vrot.slane %v1236, 5
      %v1239 = vsel %vm565, %v1234, %v1238
      %v1241 = vshrl.u32 %v1152, 16
      %v1243 = vrot.slane %v1241, 4
      %v1244 = vshll.u32 %v1152, 16
      %v1246 = vrot.slane %v1244, 5
      %v1247 = vor.u32 %v1243, %v1246
      %v1248 = vrot.slane %v1247, 4
      %v1250 = vshll.u32 %v1153, 16
      %v1252 = vrot.slane %v1250, 5
      %v1253 = vsel %vm565, %v1248, %v1252
      %v1255 = vshrl.u32 %v1154, 16
      %v1257 = vrot.slane %v1255, 4
      %v1258 = vshll.u32 %v1154, 16
      %v1260 = vrot.slane %v1258, 5
      %v1261 = vor.u32 %v1257, %v1260
      %v1262 = vrot.slane %v1261, 4
      %v1264 = vshll.u32 %v1155, 16
      %v1266 = vrot.slane %v1264, 5
      %v1267 = vsel %vm565, %v1262, %v1266
      %v1276 = vadd.bf16 %v1113, %v1169
      %v1277 = vadd.bf16 %v1114, %v1183
      %v1278 = vadd.bf16 %v1115, %v1197
      %v1279 = vadd.bf16 %v1116, %v1211
      %v1280 = vadd.bf16 %v1117, %v1225
      %v1281 = vadd.bf16 %v1118, %v1239
      %v1282 = vadd.bf16 %v1119, %v1253
      %v1283 = vadd.bf16 %v1120, %v1267
      %v1284 = vld [vmem:[%s1089] sm:$0xe]
      %v1285 = vld [vmem:[%s1089 + $0x8] sm:$0xe]
      %v1286 = vld [vmem:[%s1089 + $0x10] sm:$0xe]
      %v1287 = vld [vmem:[%s1089 + $0x18] sm:$0xe]
      %v1288 = vld [vmem:[%s1089 + $0x20] sm:$0xe]
      %v1289 = vld [vmem:[%s1089 + $0x28] sm:$0xe]
      %v1290 = vld [vmem:[%s1089 + $0x30] sm:$0xe]
      %v1291 = vld [vmem:[%s1089 + $0x38] sm:$0xe]
      %v1293 = vpack.i.b16 %v496, %v496
      %v1295 = vlaneseq
      %v1296 = vshrl.u32 %v1295, 7
      %v1297 = vsub.s32 0, %v1296
      %v1298 = vrot.slane %v1293, %v1297
      %v1300 = vunpack.c.l.b16 %v1298
      %v1301 = vpack.c.b16 %v1300, %v1300
      %v1303 = vmul.bf16 %v1284, %v1301
      %v1304 = vmul.bf16 %v1121, %v1301
      %v1305 = vmul.bf16 %v1285, %v1301
      %v1306 = vmul.bf16 %v1122, %v1301
      %v1307 = vmul.bf16 %v1286, %v1301
      %v1308 = vmul.bf16 %v1123, %v1301
      %v1309 = vmul.bf16 %v1287, %v1301
      %v1310 = vmul.bf16 %v1124, %v1301
      %v1311 = vmul.bf16 %v1288, %v1301
      %v1312 = vmul.bf16 %v1125, %v1301
      %v1313 = vmul.bf16 %v1289, %v1301
      %v1314 = vmul.bf16 %v1126, %v1301
      %v1315 = vmul.bf16 %v1290, %v1301
      %v1316 = vmul.bf16 %v1127, %v1301
      %v1317 = vmul.bf16 %v1291, %v1301
      %v1318 = vmul.bf16 %v1128, %v1301
      %v1335 = vrot.slane %v1303, 5
      %v1336 = vrot.slane %v1335, 4
      %v1337 = vrot.slane %v1304, 5
      %v1338 = vsel %vm747, %v1336, %v1337
      %v1339 = vrot.slane %v1305, 5
      %v1340 = vrot.slane %v1339, 4
      %v1341 = vrot.slane %v1306, 5
      %v1342 = vsel %vm747, %v1340, %v1341
      %v1343 = vrot.slane %v1307, 5
      %v1344 = vrot.slane %v1343, 4
      %v1345 = vrot.slane %v1308, 5
      %v1346 = vsel %vm747, %v1344, %v1345
      %v1347 = vrot.slane %v1309, 5
      %v1348 = vrot.slane %v1347, 4
      %v1349 = vrot.slane %v1310, 5
      %v1350 = vsel %vm747, %v1348, %v1349
      %v1351 = vrot.slane %v1311, 5
      %v1352 = vrot.slane %v1351, 4
      %v1353 = vrot.slane %v1312, 5
      %v1354 = vsel %vm747, %v1352, %v1353
      %v1355 = vrot.slane %v1313, 5
      %v1356 = vrot.slane %v1355, 4
      %v1357 = vrot.slane %v1314, 5
      %v1358 = vsel %vm747, %v1356, %v1357
      %v1359 = vrot.slane %v1315, 5
      %v1360 = vrot.slane %v1359, 4
      %v1361 = vrot.slane %v1316, 5
      %v1362 = vsel %vm747, %v1360, %v1361
      %v1363 = vrot.slane %v1317, 5
      %v1364 = vrot.slane %v1363, 4
      %v1365 = vrot.slane %v1318, 5
      %v1366 = vsel %vm747, %v1364, %v1365
      %v1375 = vadd.bf16 %v1276, %v1338
      %v1376 = vadd.bf16 %v1277, %v1342
      %v1377 = vadd.bf16 %v1278, %v1346
      %v1378 = vadd.bf16 %v1279, %v1350
      %v1379 = vadd.bf16 %v1280, %v1354
      %v1380 = vadd.bf16 %v1281, %v1358
      %v1381 = vadd.bf16 %v1282, %v1362
      %v1382 = vadd.bf16 %v1283, %v1366
      %v1383 = vunpack.c.l.bf16 %v1375
      %v1384 = vunpack.c.l.bf16 %v1376
      %v1385 = vunpack.c.l.bf16 %v1377
      %v1386 = vunpack.c.l.bf16 %v1378
      %v1387 = vunpack.c.l.bf16 %v1379
      %v1388 = vunpack.c.l.bf16 %v1380
      %v1389 = vunpack.c.l.bf16 %v1381
      %v1390 = vunpack.c.l.bf16 %v1382
      %v1391 = vld [vmem:[%s2] sm:$0x1]
      %v1393 = vlaneseq
      %v1394 = vshrl.u32 %v1393, 7
      %v1395 = vsub.s32 0, %v1394
      %v1396 = vrot.slane %v1391, %v1395
      %v1398 = vadd.f32 %v1383, %v1396
      %v1399 = vadd.f32 %v1384, %v1396
      %v1400 = vadd.f32 %v1385, %v1396
      %v1401 = vadd.f32 %v1386, %v1396
      %v1402 = vadd.f32 %v1387, %v1396
      %v1403 = vadd.f32 %v1388, %v1396
      %v1404 = vadd.f32 %v1389, %v1396
      %v1405 = vadd.f32 %v1390, %v1396
      %v1406 = vxor.u32 %v1398, 2147483648
      %v1407 = vxor.u32 %v1399, 2147483648
      %v1408 = vxor.u32 %v1400, 2147483648
      %v1409 = vxor.u32 %v1401, 2147483648
      %v1410 = vxor.u32 %v1402, 2147483648
      %v1411 = vxor.u32 %v1403, 2147483648
      %v1412 = vxor.u32 %v1404, 2147483648
      %v1413 = vxor.u32 %v1405, 2147483648
      %v1414 = vmul.f32 %v1406, 1.442695
      %v1415 = vpow.pop %v1414
      %v1416 = vmul.f32 %v1407, 1.442695
      %v1417 = vpow.pop %v1416
      %v1418 = vmul.f32 %v1408, 1.442695
      %v1419 = vpow.pop %v1418
      %v1420 = vmul.f32 %v1409, 1.442695
      %v1421 = vpow.pop %v1420
      %v1422 = vmul.f32 %v1410, 1.442695
      %v1423 = vpow.pop %v1422
      %v1424 = vmul.f32 %v1411, 1.442695
      %v1425 = vpow.pop %v1424
      %v1426 = vmul.f32 %v1412, 1.442695
      %v1427 = vpow.pop %v1426
      %v1428 = vmul.f32 %v1413, 1.442695
      %v1429 = vpow.pop %v1428
      %v1430 = vadd.f32 %v1415, 1.0
      %v1431 = vadd.f32 %v1417, 1.0
      %v1432 = vadd.f32 %v1419, 1.0
      %v1433 = vadd.f32 %v1421, 1.0
      %v1434 = vadd.f32 %v1423, 1.0
      %v1435 = vadd.f32 %v1425, 1.0
      %v1436 = vadd.f32 %v1427, 1.0
      %v1437 = vadd.f32 %v1429, 1.0
      %v1438 = vrcp.pop %v1430
      %v1439 = vmul.f32 1.0, %v1438
      %v1440 = vrcp.pop %v1431
      %v1441 = vmul.f32 1.0, %v1440
      %v1442 = vrcp.pop %v1432
      %v1443 = vmul.f32 1.0, %v1442
      %v1444 = vrcp.pop %v1433
      %v1445 = vmul.f32 1.0, %v1444
      %v1446 = vrcp.pop %v1434
      %v1447 = vmul.f32 1.0, %v1446
      %v1448 = vrcp.pop %v1435
      %v1449 = vmul.f32 1.0, %v1448
      %v1450 = vrcp.pop %v1436
      %v1451 = vmul.f32 1.0, %v1450
      %v1452 = vrcp.pop %v1437
      %v1453 = vmul.f32 1.0, %v1452
      %v1454 = vmul.f32 %v1398, %v1439
      %v1455 = vmul.f32 %v1399, %v1441
      %v1456 = vmul.f32 %v1400, %v1443
      %v1457 = vmul.f32 %v1401, %v1445
      %v1458 = vmul.f32 %v1402, %v1447
      %v1459 = vmul.f32 %v1403, %v1449
      %v1460 = vmul.f32 %v1404, %v1451
      %v1461 = vmul.f32 %v1405, %v1453
      %v1462 = vpack.c.bf16 %v1454, %v1454
      %v1463 = vpack.c.bf16 %v1455, %v1455
      %v1464 = vpack.c.bf16 %v1456, %v1456
      %v1465 = vpack.c.bf16 %v1457, %v1457
      %v1466 = vpack.c.bf16 %v1458, %v1458
      %v1467 = vpack.c.bf16 %v1459, %v1459
      %v1468 = vpack.c.bf16 %v1460, %v1460
      %v1469 = vpack.c.bf16 %v1461, %v1461
      %1470 = vst [vmem:[%s311] sm:$0xf] %v1462
      %1471 = vst [vmem:[%s311 + $0x4] sm:$0xf] %v1463
      %1472 = vst [vmem:[%s311 + $0x8] sm:$0xf] %v1464
      %1473 = vst [vmem:[%s311 + $0xc] sm:$0xf] %v1465
      %1474 = vst [vmem:[%s311 + $0x10] sm:$0xf] %v1466
      %1475 = vst [vmem:[%s311 + $0x14] sm:$0xf] %v1467
      %1476 = vst [vmem:[%s311 + $0x18] sm:$0xf] %v1468
      %1477 = vst [vmem:[%s311 + $0x1c] sm:$0xf] %v1469
      %v1478 = vadd.f32 %v1454, %v1455
      %v1479 = vadd.f32 %v1478, %v1456
      %v1480 = vadd.f32 %v1479, %v1457
      %v1481 = vadd.f32 %v1480, %v1458
      %v1482 = vadd.f32 %v1481, %v1459
      %v1483 = vadd.f32 %v1482, %v1460
      %v1484 = vadd.f32 %v1483, %v1461
      %v1485 = vrot.slane %v1484, 4
      %v1486 = vadd.f32 %v1484, %v1485
      %v1487 = vrot.slane %v1486, 2
      %v1488 = vadd.f32 %v1486, %v1487
      %v1489 = vrot.slane %v1488, 1
      %v1490 = vadd.f32 %v1488, %v1489
      %v1491 = vmul.f32 %v1490, 0.015625
      %v1492 = vpack.c.bf16 %v1491, %v1491
      %v1493 = vld [vmem:[%s3] sm:$0xf]
      %v1494 = vld [vmem:[%s3 + $0x4] sm:$0xf]
      %v1495 = vld [vmem:[%s3 + $0x8] sm:$0xf]
      %v1496 = vld [vmem:[%s3 + $0xc] sm:$0xf]
      %v1497 = vld [vmem:[%s3 + $0x10] sm:$0xf]
      %v1498 = vld [vmem:[%s3 + $0x14] sm:$0xf]
      %v1499 = vld [vmem:[%s3 + $0x18] sm:$0xf]
      %v1500 = vld [vmem:[%s3 + $0x1c] sm:$0xf]
      %v1501 = vld [vmem:[%s3 + $0x20] sm:$0xf]
      %v1502 = vld [vmem:[%s3 + $0x24] sm:$0xf]
      %v1503 = vld [vmem:[%s3 + $0x28] sm:$0xf]
      %v1504 = vld [vmem:[%s3 + $0x2c] sm:$0xf]
      %v1505 = vld [vmem:[%s3 + $0x30] sm:$0xf]
      %v1506 = vld [vmem:[%s3 + $0x34] sm:$0xf]
      %v1507 = vld [vmem:[%s3 + $0x38] sm:$0xf]
      %v1508 = vld [vmem:[%s3 + $0x3c] sm:$0xf]
      %v1509 = vld [vmem:[%s4] sm:$0x1]
      %v1526 = vunpack.c.l.b16 %v1493
      %v1527 = vunpack.c.l.b16 %v1494
      %v1528 = vunpack.c.l.b16 %v1495
      %v1529 = vunpack.c.l.b16 %v1496
      %v1530 = vunpack.c.l.b16 %v1497
      %v1531 = vunpack.c.l.b16 %v1498
      %v1532 = vunpack.c.l.b16 %v1499
      %v1533 = vunpack.c.l.b16 %v1500
      %v1534 = vunpack.c.l.b16 %v1501
      %v1535 = vunpack.c.l.b16 %v1502
      %v1536 = vunpack.c.l.b16 %v1503
      %v1537 = vunpack.c.l.b16 %v1504
      %v1538 = vunpack.c.l.b16 %v1505
      %v1539 = vunpack.c.l.b16 %v1506
      %v1540 = vunpack.c.l.b16 %v1507
      %v1541 = vunpack.c.l.b16 %v1508
      %v1542 = vpack.c.b16 %v1527, %v1526
      %v1543 = vpack.c.b16 %v1529, %v1528
      %v1544 = vpack.c.b16 %v1531, %v1530
      %v1545 = vpack.c.b16 %v1533, %v1532
      %v1546 = vpack.c.b16 %v1535, %v1534
      %v1547 = vpack.c.b16 %v1537, %v1536
      %v1548 = vpack.c.b16 %v1539, %v1538
      %v1549 = vpack.c.b16 %v1541, %v1540
      %1558 = vmatprep.subr.bf16.mxu0 0
      %1559 = vmatpush1.bf16.msra.mxu0 %v1549
      %1560 = vmatprep.subr.bf16.mxu0 0
      %1561 = vmatpush1.bf16.msra.mxu0 %v1548
      %1562 = vmatprep.subr.bf16.mxu0 0
      %1563 = vmatpush1.bf16.msra.mxu0 %v1547
      %1564 = vmatprep.subr.bf16.mxu0 0
      %1565 = vmatpush1.bf16.msra.mxu0 %v1546
      %1566 = vmatprep.subr.bf16.mxu0 0
      %1567 = vmatpush1.bf16.msra.mxu0 %v1545
      %1568 = vmatprep.subr.bf16.mxu0 0
      %1569 = vmatpush1.bf16.msra.mxu0 %v1544
      %1570 = vmatprep.subr.bf16.mxu0 0
      %1571 = vmatpush1.bf16.msra.mxu0 %v1543
      %1572 = vmatprep.subr.bf16.mxu0 0
      %1573 = vmatpush1.bf16.msra.mxu0 %v1542
      %1574 = vmatprep.subr.bf16.mxu0 0
      %1575 = vmatpush2.bf16.msra.mxu0 0
      %1576 = vmatprep.subr.bf16.mxu0 0
      %1577 = vmatpush2.bf16.msra.mxu0 0
      %1578 = vmatprep.subr.bf16.mxu0 0
      %1579 = vmatpush2.bf16.msra.mxu0 0
      %1580 = vmatprep.subr.bf16.mxu0 0
      %1581 = vmatpush2.bf16.msra.mxu0 0
      %1582 = vmatprep.subr.bf16.mxu0 0
      %1583 = vmatpush2.bf16.msra.mxu0 0
      %1584 = vmatprep.subr.bf16.mxu0 0
      %1585 = vmatpush2.bf16.msra.mxu0 0
      %1586 = vmatprep.subr.bf16.mxu0 0
      %1587 = vmatpush2.bf16.msra.mxu0 0
      %1588 = vmatprep.subr.bf16.mxu0 0
      %1589 = vmatpush2.bf16.msra.mxu0 0
      %1590 = vmatprep.mubr.bf16.mxu0 0
      %1591 = vmatmul.mubr.bf16.gmra.mxu0 %v1492
      %v1592 = vpop.f32.mrf.mxu0
      %v1593 = vadd.f32 %v1509, %v1592
      %v1594 = vpop.f32.mrf.mxu0
      %v1595 = vpop.f32.mrf.mxu0
      %v1596 = vpop.f32.mrf.mxu0
      %1597 = vdwg.mxu0
      %v1598 = vxor.u32 %v1593, 2147483648
      %v1599 = vmul.f32 %v1598, 1.442695
      %v1600 = vpow.pop %v1599
      %v1601 = vadd.f32 %v1600, 1.0
      %v1602 = vrcp.pop %v1601
      %v1603 = vmul.f32 1.0, %v1602
      %v1604 = vmul.f32 %v1593, %v1603
      %v1605 = vpack.c.bf16 %v1604, %v1604
      %v1606 = vld [vmem:[%s5] sm:$0xf]
      %v1607 = vld [vmem:[%s6] sm:$0x1]
      %vm1608 = vcmask 64512
      %v1610 = vsel %vm1608, %v1605, 0
      %vm1612 = vcmask 1043456
      %v1614 = vsel %vm1612, %v1606, 0
      %1616 = vmatprep.subr.bf16.mxu0 0
      %1617 = vmatpush1.bf16.msra.mxu0 0
      %1618 = vmatprep.subr.bf16.mxu0 0
      %1619 = vmatpush1.bf16.msra.mxu0 0
      %1620 = vmatprep.subr.bf16.mxu0 0
      %1621 = vmatpush1.bf16.msra.mxu0 0
      %1622 = vmatprep.subr.bf16.mxu0 0
      %1623 = vmatpush1.bf16.msra.mxu0 0
      %1624 = vmatprep.subr.bf16.mxu0 0
      %1625 = vmatpush1.bf16.msra.mxu0 0
      %1626 = vmatprep.subr.bf16.mxu0 0
      %1627 = vmatpush1.bf16.msra.mxu0 0
      %1628 = vmatprep.subr.bf16.mxu0 0
      %1629 = vmatpush1.bf16.msra.mxu0 0
      %1630 = vmatprep.subr.bf16.mxu0 0
      %1631 = vmatpush1.bf16.msra.mxu0 %v1614
      %1632 = vmatprep.subr.bf16.mxu0 0
      %1633 = vmatpush2.bf16.msra.mxu0 0
      %1634 = vmatprep.subr.bf16.mxu0 0
      %1635 = vmatpush2.bf16.msra.mxu0 0
      %1636 = vmatprep.subr.bf16.mxu0 0
      %1637 = vmatpush2.bf16.msra.mxu0 0
      %1638 = vmatprep.subr.bf16.mxu0 0
      %1639 = vmatpush2.bf16.msra.mxu0 0
      %1640 = vmatprep.subr.bf16.mxu0 0
      %1641 = vmatpush2.bf16.msra.mxu0 0
      %1642 = vmatprep.subr.bf16.mxu0 0
      %1643 = vmatpush2.bf16.msra.mxu0 0
      %1644 = vmatprep.subr.bf16.mxu0 0
      %1645 = vmatpush2.bf16.msra.mxu0 0
      %1646 = vmatprep.subr.bf16.mxu0 0
      %1647 = vmatpush2.bf16.msra.mxu0 0
      %1648 = vmatprep.mubr.bf16.mxu0 0
      %1649 = vmatmul.mubr.bf16.gmra.mxu0 %v1610
      %v1650 = vpop.f32.mrf.mxu0
      %v1651 = vadd.f32 %v1607, %v1650
      %v1652 = vpop.f32.mrf.mxu0
      %v1653 = vpop.f32.mrf.mxu0
      %v1654 = vpop.f32.mrf.mxu0
      %1655 = vdwg.mxu0
      %v1656 = vxor.u32 %v1651, 2147483648
      %v1657 = vmul.f32 %v1656, 1.442695
      %v1658 = vpow.pop %v1657
      %v1659 = vadd.f32 %v1658, 1.0
      %v1660 = vrcp.pop %v1659
      %v1661 = vmul.f32 1.0, %v1660
      %1662 = vst [vmem:[%s314] sm:$0x1] %v1661
      %p1663 = scmp.lt.s32.totalorder %s20, 1
      %s1664 = scalar_select %p1663, %s20, 1
      %s1665 = smul.addr %s1664, 8
      %s1666 = smul.addr %s1665, 4
      %s1667 = scalar_lea.vmem %s7, %s1666
      %p1668 = scmp.lt.s32.totalorder %s20, 1
      %s1669 = scalar_select %p1668, %s20, 1
      %s1670 = scalar_lea.vmem %s8, %s1669
      // Predicated region
      $region49: #{embeddings_net_forward.4} parent=47 // pred_check
        %p1671 = pneg %p190
      $region50: #{embeddings_net_forward.4} parent=47 // pred_check_branch
        %1673 = sbr.rel (%p1671) target = $region52
      $region51: #{embeddings_net_forward.4} parent=47 // pred_region
        _
      $region52: #{embeddings_net_forward.4} parent=47 // pred_fallthru
        _
      // Predicated region
      $region53: #{embeddings_net_forward.4} parent=47 // pred_check
        %p1674 = pneg %p216
      $region54: #{embeddings_net_forward.4} parent=47 // pred_check_branch
        %1676 = sbr.rel (%p1674) target = $region56
      $region55: #{embeddings_net_forward.4} parent=47 // pred_region
        _
      $region56: #{embeddings_net_forward.4} parent=47 // pred_fallthru
        _
    $region48: #{embeddings_net_forward.4} parent=5 // pred_fallthru
      _
    %p1677 = scmp.le.s32.totalorder 2, %s15
    // Predicated region
    $region57: #{embeddings_net_forward.4} parent=5 // pred_check
      %p1678 = pneg %p1677
    $region58: #{embeddings_net_forward.4} parent=5 // pred_check_branch
      %1680 = sbr.rel (%p1678) target = $region60
    $region59: #{embeddings_net_forward.4} parent=5 // pred_region
      %s1681 = ssub.s32 %s15, 2
      // Predicated region
      $region61: #{embeddings_net_forward.4} parent=59 // pred_check
        %p1682 = pneg %p196
      $region62: #{embeddings_net_forward.4} parent=59 // pred_check_branch
        %1684 = sbr.rel (%p1682) target = $region64
      $region63: #{embeddings_net_forward.4} parent=59 // pred_region
        %p1685 = scmp.lt.s32.totalorder %s21, 1
        %s1686 = scalar_select %p1685, %s21, 1
        %s1687 = smul.addr %s1686, 8
        %s1688 = smul.addr %s1687, 4
        %s1689 = scalar_lea.vmem %s7, %s1688
      $region64: #{embeddings_net_forward.4} parent=59 // pred_fallthru
        _
      // Predicated region
      $region65: #{embeddings_net_forward.4} parent=59 // pred_check
        %p1690 = pneg %p222
      $region66: #{embeddings_net_forward.4} parent=59 // pred_check_branch
        %1692 = sbr.rel (%p1690) target = $region68
      $region67: #{embeddings_net_forward.4} parent=59 // pred_region
        %p1693 = scmp.lt.s32.totalorder %s21, 1
        %s1694 = scalar_select %p1693, %s21, 1
        %s1695 = scalar_lea.vmem %s8, %s1694
      $region68: #{embeddings_net_forward.4} parent=59 // pred_fallthru
        _
    $region60: #{embeddings_net_forward.4} parent=5 // pred_fallthru
      _
  $region6: #{embeddings_net_forward.4} parent=0 // loop_footer
    %s19 = sadd.s32 1, %s15
  $region7: #{embeddings_net_forward.4} parent=0 // loop_footer_branch
    %14 = sbr.rel target = $region3
  $region8: #{embeddings_net_forward.4} parent=0 // loop_exit
    _

</llo_original>
